<compile_context>
chip_gen: v6e
topology: v6e:2x2x1
jax: 0.10.0
libtpu: 0.0.40
codegen_flags: <defaults>
</compile_context>

<pallas_src>
import jax
import jax.numpy as jnp
from jax import lax
from jax.experimental import pallas as pl
from jax.experimental.pallas import tpu as pltpu


def _decoder_kernel(
    emb_ref,        # (T-1, B, WD)  bf16  teacher-forced embedded targets, step-major
    enc_ref,        # (B, S, H)     bf16  encoder outputs
    enc_score_ref,  # (B, S)        f32   precomputed encoder-side attention scores
    u_hid_ref,      # (1, H)        f32   folded hidden-side attention vector
    h0_ref,         # (B, H)        f32   initial decoder hidden state
    w_ih_ref,       # (WD+H, 3H)    bf16  stacked GRU input weights [emb; context]
    b_ih_ref,       # (1, 3H)       f32
    w_hh_ref,       # (H, 3H)       bf16  GRU hidden weights
    b_hh_ref,       # (1, 3H)       f32
    w_out_ref,      # (H, V)        bf16  output head
    b_out_ref,      # (1, V)        f32
    logp_ref,       # out: (T-1, B, V) f32
):
    Tm1 = emb_ref.shape[0]
    H = h0_ref.shape[-1]

    # Time-invariant operands: load once, reuse across all decode steps.
    enc = enc_ref[...]                    # (B, S, H) bf16
    enc_score = enc_score_ref[...]        # (B, S)    f32
    u_hid = u_hid_ref[...]                # (1, H)    f32
    w_ih = w_ih_ref[...]
    w_hh = w_hh_ref[...]
    w_out = w_out_ref[...]
    b_ih = b_ih_ref[...]
    b_hh = b_hh_ref[...]
    b_out = b_out_ref[...]

    def step(t, h):
        # ---- attention: only the hidden-dependent part is per-step ----
        # scores = enc_score + h @ u_hid   (VPU multiply + lane reduce, no MXU)
        scores = enc_score + jnp.sum(h * u_hid, axis=-1, keepdims=True)   # (B, S)
        scores = scores - jnp.max(scores, axis=-1, keepdims=True)
        p = jnp.exp(scores)
        attn = p * pl.reciprocal(jnp.sum(p, axis=-1, keepdims=True), approx=True)
        # context = softmax(scores) @ enc  -> VPU multiply + sublane reduce
        context = jnp.sum(attn[:, :, None] * enc, axis=1)                 # (B, H) f32

        # ---- GRU cell, single timestep (PyTorch gate order r, z, n) ----
        x = jnp.concatenate([emb_ref[t], context.astype(jnp.bfloat16)], axis=-1)
        gi = jnp.dot(x, w_ih, preferred_element_type=jnp.float32) + b_ih
        gh = (jnp.dot(h.astype(jnp.bfloat16), w_hh,
                      preferred_element_type=jnp.float32) + b_hh)
        r = jax.nn.sigmoid(gi[:, :H] + gh[:, :H])
        z = jax.nn.sigmoid(gi[:, H:2 * H] + gh[:, H:2 * H])
        n = jnp.tanh(gi[:, 2 * H:] + r * gh[:, 2 * H:])
        h_new = (1.0 - z) * n + z * h                                     # f32 carry

        # ---- to_final_output ----
        logits = (jnp.dot(h_new.astype(jnp.bfloat16), w_out,
                          preferred_element_type=jnp.float32) + b_out)
        logp_ref[t] = logits.astype(logp_ref.dtype)
        return h_new

    # Short fixed trip count -> fully unrolled for LLO scheduler visibility.
    lax.fori_loop(0, Tm1, step, h0_ref[...], unroll=True)


def decoder_forward(params, encoder_last_hidden_state, encoder_output, targets):
    # TODO(synk): the original forward stochastically mixes teacher forcing with
    # the model's own argmax prediction (random.uniform vs an expit schedule);
    # here we deterministically teacher-force with targets[:, i].
    B, S, H = encoder_output.shape
    T = targets.shape[1]
    V = params["w_out"].shape[1]

    # Embedding lookup (gather) stays in glue.
    emb = params["embedding"][targets[:, :T - 1]]                # (B, T-1, WD)
    emb_t = jnp.transpose(emb, (1, 0, 2)).astype(jnp.bfloat16)   # (T-1, B, WD)

    h0 = encoder_last_hidden_state[0].astype(jnp.float32)        # (B, H)

    # ---- Fold the purely-linear attention chain (no nonlinearity in module) ----
    # scores = ((cat(enc, h) @ W1 + b1) @ W2 + b2) @ w_att
    #        = enc @ u_enc + h @ u_hid + c
    v = jnp.dot(params["w2"], params["w_att"])                   # (H, 1)
    u_enc = jnp.dot(params["w1_enc"], v)[:, 0]                   # (H,)
    u_hid = jnp.dot(params["w1_hid"], v).reshape(1, H)           # (1, H)
    c = (jnp.dot(params["b1"], v)
         + jnp.dot(params["b2"], params["w_att"]))[0, 0]         # scalar
    # Encoder-side scores are time-invariant -> hoisted out of the decode loop.
    enc_score = jnp.einsum("bsh,h->bs", encoder_output, u_enc) + c   # (B, S) f32

    # ---- Stack GRU input weights so [emb | context] is one matmul ----
    w_ih = jnp.concatenate([params["w_ih_x"], params["w_ih_c"]], axis=0)  # (WD+H, 3H)

    to_bf16 = lambda a: a.astype(jnp.bfloat16)

    vmem_spec = pl.BlockSpec(memory_space=pltpu.MemorySpace.VMEM)
    logp_tmajor = pl.pallas_call(
        _decoder_kernel,
        out_shape=jax.ShapeDtypeStruct((T - 1, B, V), jnp.float32),
        in_specs=[vmem_spec] * 11,
        out_specs=vmem_spec,
        compiler_params=pltpu.CompilerParams(
            # Explicit VMEM budget (tiny here; matters at H=512/WD=1024 on v7x).
            vmem_limit_bytes=32 * 1024 * 1024),
    )(
        emb_t,
        to_bf16(encoder_output),
        enc_score.astype(jnp.float32),
        u_hid.astype(jnp.float32),
        h0,
        to_bf16(w_ih),
        params["b_ih"],
        to_bf16(params["w_hh"]),
        params["b_hh"],
        to_bf16(params["w_out"]),
        params["b_out"],
    )

    seq_logProb = jnp.transpose(logp_tmajor, (1, 0, 2))          # (B, T-1, V)
    seq_predictions = jnp.argmax(seq_logProb, axis=2)            # (B, T-1)
    return seq_logProb, seq_predictions


def init_params(key, hidden_size, output_size, word_dim):
    ks = jax.random.split(key, 9)
    s = 0.05

    def w(k, shape):
        return jax.random.normal(k, shape, jnp.float32) * s

    return {
        "embedding": w(ks[0], (output_size, word_dim)),
        "w1_enc": w(ks[1], (hidden_size, hidden_size)),
        "w1_hid": w(ks[2], (hidden_size, hidden_size)),
        "b1": jnp.zeros((1, hidden_size), jnp.float32),
        "w2": w(ks[3], (hidden_size, hidden_size)),
        "b2": jnp.zeros((1, hidden_size), jnp.float32),
        "w_att": w(ks[4], (hidden_size, 1)),
        "w_ih_x": w(ks[5], (word_dim, 3 * hidden_size)),
        "w_ih_c": w(ks[6], (hidden_size, 3 * hidden_size)),
        "b_ih": jnp.zeros((1, 3 * hidden_size), jnp.float32),
        "w_hh": w(ks[7], (hidden_size, 3 * hidden_size)),
        "b_hh": jnp.zeros((1, 3 * hidden_size), jnp.float32),
        "w_out": w(ks[8], (hidden_size, output_size)),
        "b_out": jnp.zeros((1, output_size), jnp.float32),
    }


if __name__ == "__main__":
    B, S, T = 8, 16, 8            # batch, encoder seq len, target seq len
    H, WD, V = 128, 128, 256      # hidden, word_dim, output_size (vocab head)

    key = jax.random.PRNGKey(0)
    kp, k1, k2, k3 = jax.random.split(key, 4)
    params = init_params(kp, H, V, WD)

    encoder_last_hidden_state = jax.random.normal(k1, (1, B, H), jnp.float32)
    encoder_output = jax.random.normal(k2, (B, S, H), jnp.float32)
    targets = jax.random.randint(k3, (B, T), 0, V, dtype=jnp.int32)

    fwd = jax.jit(decoder_forward)
    seq_logProb, seq_preds = fwd(params, encoder_last_hidden_state,
                                 encoder_output, targets)
    jax.block_until_ready((seq_logProb, seq_preds))

    assert seq_logProb.shape == (B, T - 1, V)
    assert seq_preds.shape == (B, T - 1)
    print("KERNEL_OK")
</pallas_src>

<mosaic_0001>
module attributes {stable_mosaic.version = 11 : i64} {
  func.func @_decoder_kernel(%arg0: memref<7x8x128xbf16, #tpu.memory_space<vmem>>, %arg1: memref<8x16x128xbf16, #tpu.memory_space<vmem>>, %arg2: memref<8x16xf32, #tpu.memory_space<vmem>>, %arg3: memref<1x128xf32, #tpu.memory_space<vmem>>, %arg4: memref<8x128xf32, #tpu.memory_space<vmem>>, %arg5: memref<256x384xbf16, #tpu.memory_space<vmem>>, %arg6: memref<1x384xf32, #tpu.memory_space<vmem>>, %arg7: memref<128x384xbf16, #tpu.memory_space<vmem>>, %arg8: memref<1x384xf32, #tpu.memory_space<vmem>>, %arg9: memref<128x256xbf16, #tpu.memory_space<vmem>>, %arg10: memref<1x256xf32, #tpu.memory_space<vmem>>, %arg11: memref<7x8x256xf32, #tpu.memory_space<vmem>>) attributes {dimension_semantics = [], scalar_prefetch = 0 : i64, scratch_operands = 0 : i64, tpu.core_type = #tpu.core_type<tc>} {
    %c0 = arith.constant 0 : index
    %c0_0 = arith.constant 0 : index
    %c0_1 = arith.constant 0 : index
    %0 = vector.load %arg1[%c0, %c0_0, %c0_1] : memref<8x16x128xbf16, #tpu.memory_space<vmem>>, vector<8x16x128xbf16>
    %c0_2 = arith.constant 0 : index
    %c0_3 = arith.constant 0 : index
    %1 = vector.load %arg2[%c0_2, %c0_3] : memref<8x16xf32, #tpu.memory_space<vmem>>, vector<8x16xf32>
    %c0_4 = arith.constant 0 : index
    %c0_5 = arith.constant 0 : index
    %2 = vector.load %arg3[%c0_4, %c0_5] : memref<1x128xf32, #tpu.memory_space<vmem>>, vector<1x128xf32>
    %c0_6 = arith.constant 0 : index
    %c0_7 = arith.constant 0 : index
    %3 = vector.load %arg5[%c0_6, %c0_7] : memref<256x384xbf16, #tpu.memory_space<vmem>>, vector<256x384xbf16>
    %c0_8 = arith.constant 0 : index
    %c0_9 = arith.constant 0 : index
    %4 = vector.load %arg7[%c0_8, %c0_9] : memref<128x384xbf16, #tpu.memory_space<vmem>>, vector<128x384xbf16>
    %c0_10 = arith.constant 0 : index
    %c0_11 = arith.constant 0 : index
    %5 = vector.load %arg9[%c0_10, %c0_11] : memref<128x256xbf16, #tpu.memory_space<vmem>>, vector<128x256xbf16>
    %c0_12 = arith.constant 0 : index
    %c0_13 = arith.constant 0 : index
    %6 = vector.load %arg6[%c0_12, %c0_13] : memref<1x384xf32, #tpu.memory_space<vmem>>, vector<1x384xf32>
    %c0_14 = arith.constant 0 : index
    %c0_15 = arith.constant 0 : index
    %7 = vector.load %arg8[%c0_14, %c0_15] : memref<1x384xf32, #tpu.memory_space<vmem>>, vector<1x384xf32>
    %c0_16 = arith.constant 0 : index
    %c0_17 = arith.constant 0 : index
    %8 = vector.load %arg10[%c0_16, %c0_17] : memref<1x256xf32, #tpu.memory_space<vmem>>, vector<1x256xf32>
    %c0_18 = arith.constant 0 : index
    %c0_19 = arith.constant 0 : index
    %9 = vector.load %arg4[%c0_18, %c0_19] : memref<8x128xf32, #tpu.memory_space<vmem>>, vector<8x128xf32>
    %c0_i32 = arith.constant 0 : i32
    %10 = vector.broadcast %2 : vector<1x128xf32> to vector<8x128xf32>
    %11 = arith.mulf %9, %10 : vector<8x128xf32>
    %cst = arith.constant dense<0.000000e+00> : vector<8xf32>
    %12 = vector.multi_reduction <add>, %11, %cst [1] : vector<8x128xf32> to vector<8xf32>
    %13 = vector.shape_cast %12 : vector<8xf32> to vector<8x1xf32>
    %14 = vector.broadcast %13 : vector<8x1xf32> to vector<8x16xf32>
    %15 = arith.addf %1, %14 : vector<8x16xf32>
    %cst_20 = arith.constant dense<0xFF800000> : vector<8xf32>
    %16 = vector.multi_reduction <maximumf>, %15, %cst_20 [1] : vector<8x16xf32> to vector<8xf32>
    %17 = vector.shape_cast %16 : vector<8xf32> to vector<8x1xf32>
    %18 = vector.broadcast %17 : vector<8x1xf32> to vector<8x16xf32>
    %19 = arith.subf %15, %18 : vector<8x16xf32>
    %20 = math.exp %19 : vector<8x16xf32>
    %cst_21 = arith.constant dense<0.000000e+00> : vector<8xf32>
    %21 = vector.multi_reduction <add>, %20, %cst_21 [1] : vector<8x16xf32> to vector<8xf32>
    %22 = vector.shape_cast %21 : vector<8xf32> to vector<8x1xf32>
    %23 = tpu.reciprocal %22 {approx = true} : vector<8x1xf32> -> vector<8x1xf32>
    %24 = vector.broadcast %23 : vector<8x1xf32> to vector<8x16xf32>
    %25 = arith.mulf %20, %24 : vector<8x16xf32>
    %26 = vector.shape_cast %25 : vector<8x16xf32> to vector<8x16x1xf32>
    %27 = arith.extf %0 : vector<8x16x128xbf16> to vector<8x16x128xf32>
    %28 = vector.broadcast %26 : vector<8x16x1xf32> to vector<8x16x128xf32>
    %29 = arith.mulf %28, %27 : vector<8x16x128xf32>
    %cst_22 = arith.constant dense<0.000000e+00> : vector<8x128xf32>
    %30 = vector.multi_reduction <add>, %29, %cst_22 [1] : vector<8x16x128xf32> to vector<8x128xf32>
    %31 = arith.index_cast %c0_i32 : i32 to index
    %c0_23 = arith.constant 0 : index
    %c0_24 = arith.constant 0 : index
    %32 = vector.load %arg0[%31, %c0_23, %c0_24] : memref<7x8x128xbf16, #tpu.memory_space<vmem>>, vector<1x8x128xbf16>
    %33 = vector.shape_cast %32 : vector<1x8x128xbf16> to vector<8x128xbf16>
    %34 = arith.truncf %30 : vector<8x128xf32> to vector<8x128xbf16>
    %35 = tpu.concatenate %33, %34 in 1 : vector<8x128xbf16>, vector<8x128xbf16> -> vector<8x256xbf16>
    %cst_25 = arith.constant dense<0.000000e+00> : vector<8x384xf32>
    %36 = tpu.matmul %35, %3, %cst_25 {dimension_numbers = #tpu.dot_dimension_numbers<[1], [0], [0], [1], [0, 0, 1, 1], [], []>} : vector<8x256xbf16>, vector<256x384xbf16>, vector<8x384xf32> -> vector<8x384xf32>
    %37 = vector.broadcast %6 : vector<1x384xf32> to vector<8x384xf32>
    %38 = arith.addf %36, %37 : vector<8x384xf32>
    %39 = arith.truncf %9 : vector<8x128xf32> to vector<8x128xbf16>
    %cst_26 = arith.constant dense<0.000000e+00> : vector<8x384xf32>
    %40 = tpu.matmul %39, %4, %cst_26 {dimension_numbers = #tpu.dot_dimension_numbers<[1], [0], [0], [1], [0, 0, 1, 1], [], []>} : vector<8x128xbf16>, vector<128x384xbf16>, vector<8x384xf32> -> vector<8x384xf32>
    %41 = vector.broadcast %7 : vector<1x384xf32> to vector<8x384xf32>
    %42 = arith.addf %40, %41 : vector<8x384xf32>
    %43 = vector.extract_strided_slice %38 {offsets = [0, 0], sizes = [8, 128], strides = [1, 1]} : vector<8x384xf32> to vector<8x128xf32>
    %44 = vector.extract_strided_slice %42 {offsets = [0, 0], sizes = [8, 128], strides = [1, 1]} : vector<8x384xf32> to vector<8x128xf32>
    %45 = arith.addf %43, %44 : vector<8x128xf32>
    %46 = arith.negf %45 : vector<8x128xf32>
    %47 = math.exp %46 : vector<8x128xf32>
    %cst_27 = arith.constant 1.000000e+00 : f32
    %48 = vector.broadcast %cst_27 : f32 to vector<8x128xf32>
    %49 = arith.addf %48, %47 : vector<8x128xf32>
    %50 = arith.divf %48, %49 : vector<8x128xf32>
    %51 = vector.extract_strided_slice %38 {offsets = [0, 128], sizes = [8, 128], strides = [1, 1]} : vector<8x384xf32> to vector<8x128xf32>
    %52 = vector.extract_strided_slice %42 {offsets = [0, 128], sizes = [8, 128], strides = [1, 1]} : vector<8x384xf32> to vector<8x128xf32>
    %53 = arith.addf %51, %52 : vector<8x128xf32>
    %54 = arith.negf %53 : vector<8x128xf32>
    %55 = math.exp %54 : vector<8x128xf32>
    %cst_28 = arith.constant 1.000000e+00 : f32
    %56 = vector.broadcast %cst_28 : f32 to vector<8x128xf32>
    %57 = arith.addf %56, %55 : vector<8x128xf32>
    %58 = arith.divf %56, %57 : vector<8x128xf32>
    %59 = vector.extract_strided_slice %38 {offsets = [0, 256], sizes = [8, 128], strides = [1, 1]} : vector<8x384xf32> to vector<8x128xf32>
    %60 = vector.extract_strided_slice %42 {offsets = [0, 256], sizes = [8, 128], strides = [1, 1]} : vector<8x384xf32> to vector<8x128xf32>
    %61 = arith.mulf %50, %60 : vector<8x128xf32>
    %62 = arith.addf %59, %61 : vector<8x128xf32>
    %63 = math.tanh %62 : vector<8x128xf32>
    %cst_29 = arith.constant 1.000000e+00 : f32
    %64 = vector.broadcast %cst_29 : f32 to vector<8x128xf32>
    %65 = arith.subf %64, %58 : vector<8x128xf32>
    %66 = arith.mulf %65, %63 : vector<8x128xf32>
    %67 = arith.mulf %58, %9 : vector<8x128xf32>
    %68 = arith.addf %66, %67 : vector<8x128xf32>
    %69 = arith.truncf %68 : vector<8x128xf32> to vector<8x128xbf16>
    %cst_30 = arith.constant dense<0.000000e+00> : vector<8x256xf32>
    %70 = tpu.matmul %69, %5, %cst_30 {dimension_numbers = #tpu.dot_dimension_numbers<[1], [0], [0], [1], [0, 0, 1, 1], [], []>} : vector<8x128xbf16>, vector<128x256xbf16>, vector<8x256xf32> -> vector<8x256xf32>
    %71 = vector.broadcast %8 : vector<1x256xf32> to vector<8x256xf32>
    %72 = arith.addf %70, %71 : vector<8x256xf32>
    %73 = arith.index_cast %c0_i32 : i32 to index
    %c0_31 = arith.constant 0 : index
    %c0_32 = arith.constant 0 : index
    %74 = vector.load %arg11[%73, %c0_31, %c0_32] : memref<7x8x256xf32, #tpu.memory_space<vmem>>, vector<1x8x256xf32>
    %75 = vector.shape_cast %74 : vector<1x8x256xf32> to vector<8x256xf32>
    %76 = vector.shape_cast %72 : vector<8x256xf32> to vector<1x8x256xf32>
    tpu.vector_store %arg11[%73, %c0_31, %c0_32], %76 {strides = array<i32>} : memref<7x8x256xf32, #tpu.memory_space<vmem>>, vector<1x8x256xf32>,
    %c1_i32 = arith.constant 1 : i32
    %77 = vector.broadcast %2 : vector<1x128xf32> to vector<8x128xf32>
    %78 = arith.mulf %68, %77 : vector<8x128xf32>
    %cst_33 = arith.constant dense<0.000000e+00> : vector<8xf32>
    %79 = vector.multi_reduction <add>, %78, %cst_33 [1] : vector<8x128xf32> to vector<8xf32>
    %80 = vector.shape_cast %79 : vector<8xf32> to vector<8x1xf32>
    %81 = vector.broadcast %80 : vector<8x1xf32> to vector<8x16xf32>
    %82 = arith.addf %1, %81 : vector<8x16xf32>
    %cst_34 = arith.constant dense<0xFF800000> : vector<8xf32>
    %83 = vector.multi_reduction <maximumf>, %82, %cst_34 [1] : vector<8x16xf32> to vector<8xf32>
    %84 = vector.shape_cast %83 : vector<8xf32> to vector<8x1xf32>
    %85 = vector.broadcast %84 : vector<8x1xf32> to vector<8x16xf32>
    %86 = arith.subf %82, %85 : vector<8x16xf32>
    %87 = math.exp %86 : vector<8x16xf32>
    %cst_35 = arith.constant dense<0.000000e+00> : vector<8xf32>
    %88 = vector.multi_reduction <add>, %87, %cst_35 [1] : vector<8x16xf32> to vector<8xf32>
    %89 = vector.shape_cast %88 : vector<8xf32> to vector<8x1xf32>
    %90 = tpu.reciprocal %89 {approx = true} : vector<8x1xf32> -> vector<8x1xf32>
    %91 = vector.broadcast %90 : vector<8x1xf32> to vector<8x16xf32>
    %92 = arith.mulf %87, %91 : vector<8x16xf32>
    %93 = vector.shape_cast %92 : vector<8x16xf32> to vector<8x16x1xf32>
    %94 = arith.extf %0 : vector<8x16x128xbf16> to vector<8x16x128xf32>
    %95 = vector.broadcast %93 : vector<8x16x1xf32> to vector<8x16x128xf32>
    %96 = arith.mulf %95, %94 : vector<8x16x128xf32>
    %cst_36 = arith.constant dense<0.000000e+00> : vector<8x128xf32>
    %97 = vector.multi_reduction <add>, %96, %cst_36 [1] : vector<8x16x128xf32> to vector<8x128xf32>
    %98 = arith.index_cast %c1_i32 : i32 to index
    %c0_37 = arith.constant 0 : index
    %c0_38 = arith.constant 0 : index
    %99 = vector.load %arg0[%98, %c0_37, %c0_38] : memref<7x8x128xbf16, #tpu.memory_space<vmem>>, vector<1x8x128xbf16>
    %100 = vector.shape_cast %99 : vector<1x8x128xbf16> to vector<8x128xbf16>
    %101 = arith.truncf %97 : vector<8x128xf32> to vector<8x128xbf16>
    %102 = tpu.concatenate %100, %101 in 1 : vector<8x128xbf16>, vector<8x128xbf16> -> vector<8x256xbf16>
    %cst_39 = arith.constant dense<0.000000e+00> : vector<8x384xf32>
    %103 = tpu.matmul %102, %3, %cst_39 {dimension_numbers = #tpu.dot_dimension_numbers<[1], [0], [0], [1], [0, 0, 1, 1], [], []>} : vector<8x256xbf16>, vector<256x384xbf16>, vector<8x384xf32> -> vector<8x384xf32>
    %104 = vector.broadcast %6 : vector<1x384xf32> to vector<8x384xf32>
    %105 = arith.addf %103, %104 : vector<8x384xf32>
    %106 = arith.truncf %68 : vector<8x128xf32> to vector<8x128xbf16>
    %cst_40 = arith.constant dense<0.000000e+00> : vector<8x384xf32>
    %107 = tpu.matmul %106, %4, %cst_40 {dimension_numbers = #tpu.dot_dimension_numbers<[1], [0], [0], [1], [0, 0, 1, 1], [], []>} : vector<8x128xbf16>, vector<128x384xbf16>, vector<8x384xf32> -> vector<8x384xf32>
    %108 = vector.broadcast %7 : vector<1x384xf32> to vector<8x384xf32>
    %109 = arith.addf %107, %108 : vector<8x384xf32>
    %110 = vector.extract_strided_slice %105 {offsets = [0, 0], sizes = [8, 128], strides = [1, 1]} : vector<8x384xf32> to vector<8x128xf32>
    %111 = vector.extract_strided_slice %109 {offsets = [0, 0], sizes = [8, 128], strides = [1, 1]} : vector<8x384xf32> to vector<8x128xf32>
    %112 = arith.addf %110, %111 : vector<8x128xf32>
    %113 = arith.negf %112 : vector<8x128xf32>
    %114 = math.exp %113 : vector<8x128xf32>
    %cst_41 = arith.constant 1.000000e+00 : f32
    %115 = vector.broadcast %cst_41 : f32 to vector<8x128xf32>
    %116 = arith.addf %115, %114 : vector<8x128xf32>
    %117 = arith.divf %115, %116 : vector<8x128xf32>
    %118 = vector.extract_strided_slice %105 {offsets = [0, 128], sizes = [8, 128], strides = [1, 1]} : vector<8x384xf32> to vector<8x128xf32>
    %119 = vector.extract_strided_slice %109 {offsets = [0, 128], sizes = [8, 128], strides = [1, 1]} : vector<8x384xf32> to vector<8x128xf32>
    %120 = arith.addf %118, %119 : vector<8x128xf32>
    %121 = arith.negf %120 : vector<8x128xf32>
    %122 = math.exp %121 : vector<8x128xf32>
    %cst_42 = arith.constant 1.000000e+00 : f32
    %123 = vector.broadcast %cst_42 : f32 to vector<8x128xf32>
    %124 = arith.addf %123, %122 : vector<8x128xf32>
    %125 = arith.divf %123, %124 : vector<8x128xf32>
    %126 = vector.extract_strided_slice %105 {offsets = [0, 256], sizes = [8, 128], strides = [1, 1]} : vector<8x384xf32> to vector<8x128xf32>
    %127 = vector.extract_strided_slice %109 {offsets = [0, 256], sizes = [8, 128], strides = [1, 1]} : vector<8x384xf32> to vector<8x128xf32>
    %128 = arith.mulf %117, %127 : vector<8x128xf32>
    %129 = arith.addf %126, %128 : vector<8x128xf32>
    %130 = math.tanh %129 : vector<8x128xf32>
    %cst_43 = arith.constant 1.000000e+00 : f32
    %131 = vector.broadcast %cst_43 : f32 to vector<8x128xf32>
    %132 = arith.subf %131, %125 : vector<8x128xf32>
    %133 = arith.mulf %132, %130 : vector<8x128xf32>
    %134 = arith.mulf %125, %68 : vector<8x128xf32>
    %135 = arith.addf %133, %134 : vector<8x128xf32>
    %136 = arith.truncf %135 : vector<8x128xf32> to vector<8x128xbf16>
    %cst_44 = arith.constant dense<0.000000e+00> : vector<8x256xf32>
    %137 = tpu.matmul %136, %5, %cst_44 {dimension_numbers = #tpu.dot_dimension_numbers<[1], [0], [0], [1], [0, 0, 1, 1], [], []>} : vector<8x128xbf16>, vector<128x256xbf16>, vector<8x256xf32> -> vector<8x256xf32>
    %138 = vector.broadcast %8 : vector<1x256xf32> to vector<8x256xf32>
    %139 = arith.addf %137, %138 : vector<8x256xf32>
    %140 = arith.index_cast %c1_i32 : i32 to index
    %c0_45 = arith.constant 0 : index
    %c0_46 = arith.constant 0 : index
    %141 = vector.load %arg11[%140, %c0_45, %c0_46] : memref<7x8x256xf32, #tpu.memory_space<vmem>>, vector<1x8x256xf32>
    %142 = vector.shape_cast %141 : vector<1x8x256xf32> to vector<8x256xf32>
    %143 = vector.shape_cast %139 : vector<8x256xf32> to vector<1x8x256xf32>
    tpu.vector_store %arg11[%140, %c0_45, %c0_46], %143 {strides = array<i32>} : memref<7x8x256xf32, #tpu.memory_space<vmem>>, vector<1x8x256xf32>,
    %c2_i32 = arith.constant 2 : i32
    %144 = vector.broadcast %2 : vector<1x128xf32> to vector<8x128xf32>
    %145 = arith.mulf %135, %144 : vector<8x128xf32>
    %cst_47 = arith.constant dense<0.000000e+00> : vector<8xf32>
    %146 = vector.multi_reduction <add>, %145, %cst_47 [1] : vector<8x128xf32> to vector<8xf32>
    %147 = vector.shape_cast %146 : vector<8xf32> to vector<8x1xf32>
    %148 = vector.broadcast %147 : vector<8x1xf32> to vector<8x16xf32>
    %149 = arith.addf %1, %148 : vector<8x16xf32>
    %cst_48 = arith.constant dense<0xFF800000> : vector<8xf32>
    %150 = vector.multi_reduction <maximumf>, %149, %cst_48 [1] : vector<8x16xf32> to vector<8xf32>
    %151 = vector.shape_cast %150 : vector<8xf32> to vector<8x1xf32>
    %152 = vector.broadcast %151 : vector<8x1xf32> to vector<8x16xf32>
    %153 = arith.subf %149, %152 : vector<8x16xf32>
    %154 = math.exp %153 : vector<8x16xf32>
    %cst_49 = arith.constant dense<0.000000e+00> : vector<8xf32>
    %155 = vector.multi_reduction <add>, %154, %cst_49 [1] : vector<8x16xf32> to vector<8xf32>
    %156 = vector.shape_cast %155 : vector<8xf32> to vector<8x1xf32>
    %157 = tpu.reciprocal %156 {approx = true} : vector<8x1xf32> -> vector<8x1xf32>
    %158 = vector.broadcast %157 : vector<8x1xf32> to vector<8x16xf32>
    %159 = arith.mulf %154, %158 : vector<8x16xf32>
    %160 = vector.shape_cast %159 : vector<8x16xf32> to vector<8x16x1xf32>
    %161 = arith.extf %0 : vector<8x16x128xbf16> to vector<8x16x128xf32>
    %162 = vector.broadcast %160 : vector<8x16x1xf32> to vector<8x16x128xf32>
    %163 = arith.mulf %162, %161 : vector<8x16x128xf32>
    %cst_50 = arith.constant dense<0.000000e+00> : vector<8x128xf32>
    %164 = vector.multi_reduction <add>, %163, %cst_50 [1] : vector<8x16x128xf32> to vector<8x128xf32>
    %165 = arith.index_cast %c2_i32 : i32 to index
    %c0_51 = arith.constant 0 : index
    %c0_52 = arith.constant 0 : index
    %166 = vector.load %arg0[%165, %c0_51, %c0_52] : memref<7x8x128xbf16, #tpu.memory_space<vmem>>, vector<1x8x128xbf16>
    %167 = vector.shape_cast %166 : vector<1x8x128xbf16> to vector<8x128xbf16>
    %168 = arith.truncf %164 : vector<8x128xf32> to vector<8x128xbf16>
    %169 = tpu.concatenate %167, %168 in 1 : vector<8x128xbf16>, vector<8x128xbf16> -> vector<8x256xbf16>
    %cst_53 = arith.constant dense<0.000000e+00> : vector<8x384xf32>
    %170 = tpu.matmul %169, %3, %cst_53 {dimension_numbers = #tpu.dot_dimension_numbers<[1], [0], [0], [1], [0, 0, 1, 1], [], []>} : vector<8x256xbf16>, vector<256x384xbf16>, vector<8x384xf32> -> vector<8x384xf32>
    %171 = vector.broadcast %6 : vector<1x384xf32> to vector<8x384xf32>
    %172 = arith.addf %170, %171 : vector<8x384xf32>
    %173 = arith.truncf %135 : vector<8x128xf32> to vector<8x128xbf16>
    %cst_54 = arith.constant dense<0.000000e+00> : vector<8x384xf32>
    %174 = tpu.matmul %173, %4, %cst_54 {dimension_numbers = #tpu.dot_dimension_numbers<[1], [0], [0], [1], [0, 0, 1, 1], [], []>} : vector<8x128xbf16>, vector<128x384xbf16>, vector<8x384xf32> -> vector<8x384xf32>
    %175 = vector.broadcast %7 : vector<1x384xf32> to vector<8x384xf32>
    %176 = arith.addf %174, %175 : vector<8x384xf32>
    %177 = vector.extract_strided_slice %172 {offsets = [0, 0], sizes = [8, 128], strides = [1, 1]} : vector<8x384xf32> to vector<8x128xf32>
    %178 = vector.extract_strided_slice %176 {offsets = [0, 0], sizes = [8, 128], strides = [1, 1]} : vector<8x384xf32> to vector<8x128xf32>
    %179 = arith.addf %177, %178 : vector<8x128xf32>
    %180 = arith.negf %179 : vector<8x128xf32>
    %181 = math.exp %180 : vector<8x128xf32>
    %cst_55 = arith.constant 1.000000e+00 : f32
    %182 = vector.broadcast %cst_55 : f32 to vector<8x128xf32>
    %183 = arith.addf %182, %181 : vector<8x128xf32>
    %184 = arith.divf %182, %183 : vector<8x128xf32>
    %185 = vector.extract_strided_slice %172 {offsets = [0, 128], sizes = [8, 128], strides = [1, 1]} : vector<8x384xf32> to vector<8x128xf32>
    %186 = vector.extract_strided_slice %176 {offsets = [0, 128], sizes = [8, 128], strides = [1, 1]} : vector<8x384xf32> to vector<8x128xf32>
    %187 = arith.addf %185, %186 : vector<8x128xf32>
    %188 = arith.negf %187 : vector<8x128xf32>
    %189 = math.exp %188 : vector<8x128xf32>
    %cst_56 = arith.constant 1.000000e+00 : f32
    %190 = vector.broadcast %cst_56 : f32 to vector<8x128xf32>
    %191 = arith.addf %190, %189 : vector<8x128xf32>
    %192 = arith.divf %190, %191 : vector<8x128xf32>
    %193 = vector.extract_strided_slice %172 {offsets = [0, 256], sizes = [8, 128], strides = [1, 1]} : vector<8x384xf32> to vector<8x128xf32>
    %194 = vector.extract_strided_slice %176 {offsets = [0, 256], sizes = [8, 128], strides = [1, 1]} : vector<8x384xf32> to vector<8x128xf32>
    %195 = arith.mulf %184, %194 : vector<8x128xf32>
    %196 = arith.addf %193, %195 : vector<8x128xf32>
    %197 = math.tanh %196 : vector<8x128xf32>
    %cst_57 = arith.constant 1.000000e+00 : f32
    %198 = vector.broadcast %cst_57 : f32 to vector<8x128xf32>
    %199 = arith.subf %198, %192 : vector<8x128xf32>
    %200 = arith.mulf %199, %197 : vector<8x128xf32>
    %201 = arith.mulf %192, %135 : vector<8x128xf32>
    %202 = arith.addf %200, %201 : vector<8x128xf32>
    %203 = arith.truncf %202 : vector<8x128xf32> to vector<8x128xbf16>
    %cst_58 = arith.constant dense<0.000000e+00> : vector<8x256xf32>
    %204 = tpu.matmul %203, %5, %cst_58 {dimension_numbers = #tpu.dot_dimension_numbers<[1], [0], [0], [1], [0, 0, 1, 1], [], []>} : vector<8x128xbf16>, vector<128x256xbf16>, vector<8x256xf32> -> vector<8x256xf32>
    %205 = vector.broadcast %8 : vector<1x256xf32> to vector<8x256xf32>
    %206 = arith.addf %204, %205 : vector<8x256xf32>
    %207 = arith.index_cast %c2_i32 : i32 to index
    %c0_59 = arith.constant 0 : index
    %c0_60 = arith.constant 0 : index
    %208 = vector.load %arg11[%207, %c0_59, %c0_60] : memref<7x8x256xf32, #tpu.memory_space<vmem>>, vector<1x8x256xf32>
    %209 = vector.shape_cast %208 : vector<1x8x256xf32> to vector<8x256xf32>
    %210 = vector.shape_cast %206 : vector<8x256xf32> to vector<1x8x256xf32>
    tpu.vector_store %arg11[%207, %c0_59, %c0_60], %210 {strides = array<i32>} : memref<7x8x256xf32, #tpu.memory_space<vmem>>, vector<1x8x256xf32>,
    %c3_i32 = arith.constant 3 : i32
    %211 = vector.broadcast %2 : vector<1x128xf32> to vector<8x128xf32>
    %212 = arith.mulf %202, %211 : vector<8x128xf32>
    %cst_61 = arith.constant dense<0.000000e+00> : vector<8xf32>
    %213 = vector.multi_reduction <add>, %212, %cst_61 [1] : vector<8x128xf32> to vector<8xf32>
    %214 = vector.shape_cast %213 : vector<8xf32> to vector<8x1xf32>
    %215 = vector.broadcast %214 : vector<8x1xf32> to vector<8x16xf32>
    %216 = arith.addf %1, %215 : vector<8x16xf32>
    %cst_62 = arith.constant dense<0xFF800000> : vector<8xf32>
    %217 = vector.multi_reduction <maximumf>, %216, %cst_62 [1] : vector<8x16xf32> to vector<8xf32>
    %218 = vector.shape_cast %217 : vector<8xf32> to vector<8x1xf32>
    %219 = vector.broadcast %218 : vector<8x1xf32> to vector<8x16xf32>
    %220 = arith.subf %216, %219 : vector<8x16xf32>
    %221 = math.exp %220 : vector<8x16xf32>
    %cst_63 = arith.constant dense<0.000000e+00> : vector<8xf32>
    %222 = vector.multi_reduction <add>, %221, %cst_63 [1] : vector<8x16xf32> to vector<8xf32>
    %223 = vector.shape_cast %222 : vector<8xf32> to vector<8x1xf32>
    %224 = tpu.reciprocal %223 {approx = true} : vector<8x1xf32> -> vector<8x1xf32>
    %225 = vector.broadcast %224 : vector<8x1xf32> to vector<8x16xf32>
    %226 = arith.mulf %221, %225 : vector<8x16xf32>
    %227 = vector.shape_cast %226 : vector<8x16xf32> to vector<8x16x1xf32>
    %228 = arith.extf %0 : vector<8x16x128xbf16> to vector<8x16x128xf32>
    %229 = vector.broadcast %227 : vector<8x16x1xf32> to vector<8x16x128xf32>
    %230 = arith.mulf %229, %228 : vector<8x16x128xf32>
    %cst_64 = arith.constant dense<0.000000e+00> : vector<8x128xf32>
    %231 = vector.multi_reduction <add>, %230, %cst_64 [1] : vector<8x16x128xf32> to vector<8x128xf32>
    %232 = arith.index_cast %c3_i32 : i32 to index
    %c0_65 = arith.constant 0 : index
    %c0_66 = arith.constant 0 : index
    %233 = vector.load %arg0[%232, %c0_65, %c0_66] : memref<7x8x128xbf16, #tpu.memory_space<vmem>>, vector<1x8x128xbf16>
    %234 = vector.shape_cast %233 : vector<1x8x128xbf16> to vector<8x128xbf16>
    %235 = arith.truncf %231 : vector<8x128xf32> to vector<8x128xbf16>
    %236 = tpu.concatenate %234, %235 in 1 : vector<8x128xbf16>, vector<8x128xbf16> -> vector<8x256xbf16>
    %cst_67 = arith.constant dense<0.000000e+00> : vector<8x384xf32>
    %237 = tpu.matmul %236, %3, %cst_67 {dimension_numbers = #tpu.dot_dimension_numbers<[1], [0], [0], [1], [0, 0, 1, 1], [], []>} : vector<8x256xbf16>, vector<256x384xbf16>, vector<8x384xf32> -> vector<8x384xf32>
    %238 = vector.broadcast %6 : vector<1x384xf32> to vector<8x384xf32>
    %239 = arith.addf %237, %238 : vector<8x384xf32>
    %240 = arith.truncf %202 : vector<8x128xf32> to vector<8x128xbf16>
    %cst_68 = arith.constant dense<0.000000e+00> : vector<8x384xf32>
    %241 = tpu.matmul %240, %4, %cst_68 {dimension_numbers = #tpu.dot_dimension_numbers<[1], [0], [0], [1], [0, 0, 1, 1], [], []>} : vector<8x128xbf16>, vector<128x384xbf16>, vector<8x384xf32> -> vector<8x384xf32>
    %242 = vector.broadcast %7 : vector<1x384xf32> to vector<8x384xf32>
    %243 = arith.addf %241, %242 : vector<8x384xf32>
    %244 = vector.extract_strided_slice %239 {offsets = [0, 0], sizes = [8, 128], strides = [1, 1]} : vector<8x384xf32> to vector<8x128xf32>
    %245 = vector.extract_strided_slice %243 {offsets = [0, 0], sizes = [8, 128], strides = [1, 1]} : vector<8x384xf32> to vector<8x128xf32>
    %246 = arith.addf %244, %245 : vector<8x128xf32>
    %247 = arith.negf %246 : vector<8x128xf32>
    %248 = math.exp %247 : vector<8x128xf32>
    %cst_69 = arith.constant 1.000000e+00 : f32
    %249 = vector.broadcast %cst_69 : f32 to vector<8x128xf32>
    %250 = arith.addf %249, %248 : vector<8x128xf32>
    %251 = arith.divf %249, %250 : vector<8x128xf32>
    %252 = vector.extract_strided_slice %239 {offsets = [0, 128], sizes = [8, 128], strides = [1, 1]} : vector<8x384xf32> to vector<8x128xf32>
    %253 = vector.extract_strided_slice %243 {offsets = [0, 128], sizes = [8, 128], strides = [1, 1]} : vector<8x384xf32> to vector<8x128xf32>
    %254 = arith.addf %252, %253 : vector<8x128xf32>
    %255 = arith.negf %254 : vector<8x128xf32>
    %256 = math.exp %255 : vector<8x128xf32>
    %cst_70 = arith.constant 1.000000e+00 : f32
    %257 = vector.broadcast %cst_70 : f32 to vector<8x128xf32>
    %258 = arith.addf %257, %256 : vector<8x128xf32>
    %259 = arith.divf %257, %258 : vector<8x128xf32>
    %260 = vector.extract_strided_slice %239 {offsets = [0, 256], sizes = [8, 128], strides = [1, 1]} : vector<8x384xf32> to vector<8x128xf32>
    %261 = vector.extract_strided_slice %243 {offsets = [0, 256], sizes = [8, 128], strides = [1, 1]} : vector<8x384xf32> to vector<8x128xf32>
    %262 = arith.mulf %251, %261 : vector<8x128xf32>
    %263 = arith.addf %260, %262 : vector<8x128xf32>
    %264 = math.tanh %263 : vector<8x128xf32>
    %cst_71 = arith.constant 1.000000e+00 : f32
    %265 = vector.broadcast %cst_71 : f32 to vector<8x128xf32>
    %266 = arith.subf %265, %259 : vector<8x128xf32>
    %267 = arith.mulf %266, %264 : vector<8x128xf32>
    %268 = arith.mulf %259, %202 : vector<8x128xf32>
    %269 = arith.addf %267, %268 : vector<8x128xf32>
    %270 = arith.truncf %269 : vector<8x128xf32> to vector<8x128xbf16>
    %cst_72 = arith.constant dense<0.000000e+00> : vector<8x256xf32>
    %271 = tpu.matmul %270, %5, %cst_72 {dimension_numbers = #tpu.dot_dimension_numbers<[1], [0], [0], [1], [0, 0, 1, 1], [], []>} : vector<8x128xbf16>, vector<128x256xbf16>, vector<8x256xf32> -> vector<8x256xf32>
    %272 = vector.broadcast %8 : vector<1x256xf32> to vector<8x256xf32>
    %273 = arith.addf %271, %272 : vector<8x256xf32>
    %274 = arith.index_cast %c3_i32 : i32 to index
    %c0_73 = arith.constant 0 : index
    %c0_74 = arith.constant 0 : index
    %275 = vector.load %arg11[%274, %c0_73, %c0_74] : memref<7x8x256xf32, #tpu.memory_space<vmem>>, vector<1x8x256xf32>
    %276 = vector.shape_cast %275 : vector<1x8x256xf32> to vector<8x256xf32>
    %277 = vector.shape_cast %273 : vector<8x256xf32> to vector<1x8x256xf32>
    tpu.vector_store %arg11[%274, %c0_73, %c0_74], %277 {strides = array<i32>} : memref<7x8x256xf32, #tpu.memory_space<vmem>>, vector<1x8x256xf32>,
    %c4_i32 = arith.constant 4 : i32
    %278 = vector.broadcast %2 : vector<1x128xf32> to vector<8x128xf32>
    %279 = arith.mulf %269, %278 : vector<8x128xf32>
    %cst_75 = arith.constant dense<0.000000e+00> : vector<8xf32>
    %280 = vector.multi_reduction <add>, %279, %cst_75 [1] : vector<8x128xf32> to vector<8xf32>
    %281 = vector.shape_cast %280 : vector<8xf32> to vector<8x1xf32>
    %282 = vector.broadcast %281 : vector<8x1xf32> to vector<8x16xf32>
    %283 = arith.addf %1, %282 : vector<8x16xf32>
    %cst_76 = arith.constant dense<0xFF800000> : vector<8xf32>
    %284 = vector.multi_reduction <maximumf>, %283, %cst_76 [1] : vector<8x16xf32> to vector<8xf32>
    %285 = vector.shape_cast %284 : vector<8xf32> to vector<8x1xf32>
    %286 = vector.broadcast %285 : vector<8x1xf32> to vector<8x16xf32>
    %287 = arith.subf %283, %286 : vector<8x16xf32>
    %288 = math.exp %287 : vector<8x16xf32>
    %cst_77 = arith.constant dense<0.000000e+00> : vector<8xf32>
    %289 = vector.multi_reduction <add>, %288, %cst_77 [1] : vector<8x16xf32> to vector<8xf32>
    %290 = vector.shape_cast %289 : vector<8xf32> to vector<8x1xf32>
    %291 = tpu.reciprocal %290 {approx = true} : vector<8x1xf32> -> vector<8x1xf32>
    %292 = vector.broadcast %291 : vector<8x1xf32> to vector<8x16xf32>
    %293 = arith.mulf %288, %292 : vector<8x16xf32>
    %294 = vector.shape_cast %293 : vector<8x16xf32> to vector<8x16x1xf32>
    %295 = arith.extf %0 : vector<8x16x128xbf16> to vector<8x16x128xf32>
    %296 = vector.broadcast %294 : vector<8x16x1xf32> to vector<8x16x128xf32>
    %297 = arith.mulf %296, %295 : vector<8x16x128xf32>
    %cst_78 = arith.constant dense<0.000000e+00> : vector<8x128xf32>
    %298 = vector.multi_reduction <add>, %297, %cst_78 [1] : vector<8x16x128xf32> to vector<8x128xf32>
    %299 = arith.index_cast %c4_i32 : i32 to index
    %c0_79 = arith.constant 0 : index
    %c0_80 = arith.constant 0 : index
    %300 = vector.load %arg0[%299, %c0_79, %c0_80] : memref<7x8x128xbf16, #tpu.memory_space<vmem>>, vector<1x8x128xbf16>
    %301 = vector.shape_cast %300 : vector<1x8x128xbf16> to vector<8x128xbf16>
    %302 = arith.truncf %298 : vector<8x128xf32> to vector<8x128xbf16>
    %303 = tpu.concatenate %301, %302 in 1 : vector<8x128xbf16>, vector<8x128xbf16> -> vector<8x256xbf16>
    %cst_81 = arith.constant dense<0.000000e+00> : vector<8x384xf32>
    %304 = tpu.matmul %303, %3, %cst_81 {dimension_numbers = #tpu.dot_dimension_numbers<[1], [0], [0], [1], [0, 0, 1, 1], [], []>} : vector<8x256xbf16>, vector<256x384xbf16>, vector<8x384xf32> -> vector<8x384xf32>
    %305 = vector.broadcast %6 : vector<1x384xf32> to vector<8x384xf32>
    %306 = arith.addf %304, %305 : vector<8x384xf32>
    %307 = arith.truncf %269 : vector<8x128xf32> to vector<8x128xbf16>
    %cst_82 = arith.constant dense<0.000000e+00> : vector<8x384xf32>
    %308 = tpu.matmul %307, %4, %cst_82 {dimension_numbers = #tpu.dot_dimension_numbers<[1], [0], [0], [1], [0, 0, 1, 1], [], []>} : vector<8x128xbf16>, vector<128x384xbf16>, vector<8x384xf32> -> vector<8x384xf32>
    %309 = vector.broadcast %7 : vector<1x384xf32> to vector<8x384xf32>
    %310 = arith.addf %308, %309 : vector<8x384xf32>
    %311 = vector.extract_strided_slice %306 {offsets = [0, 0], sizes = [8, 128], strides = [1, 1]} : vector<8x384xf32> to vector<8x128xf32>
    %312 = vector.extract_strided_slice %310 {offsets = [0, 0], sizes = [8, 128], strides = [1, 1]} : vector<8x384xf32> to vector<8x128xf32>
    %313 = arith.addf %311, %312 : vector<8x128xf32>
    %314 = arith.negf %313 : vector<8x128xf32>
    %315 = math.exp %314 : vector<8x128xf32>
    %cst_83 = arith.constant 1.000000e+00 : f32
    %316 = vector.broadcast %cst_83 : f32 to vector<8x128xf32>
    %317 = arith.addf %316, %315 : vector<8x128xf32>
    %318 = arith.divf %316, %317 : vector<8x128xf32>
    %319 = vector.extract_strided_slice %306 {offsets = [0, 128], sizes = [8, 128], strides = [1, 1]} : vector<8x384xf32> to vector<8x128xf32>
    %320 = vector.extract_strided_slice %310 {offsets = [0, 128], sizes = [8, 128], strides = [1, 1]} : vector<8x384xf32> to vector<8x128xf32>
    %321 = arith.addf %319, %320 : vector<8x128xf32>
    %322 = arith.negf %321 : vector<8x128xf32>
    %323 = math.exp %322 : vector<8x128xf32>
    %cst_84 = arith.constant 1.000000e+00 : f32
    %324 = vector.broadcast %cst_84 : f32 to vector<8x128xf32>
    %325 = arith.addf %324, %323 : vector<8x128xf32>
    %326 = arith.divf %324, %325 : vector<8x128xf32>
    %327 = vector.extract_strided_slice %306 {offsets = [0, 256], sizes = [8, 128], strides = [1, 1]} : vector<8x384xf32> to vector<8x128xf32>
    %328 = vector.extract_strided_slice %310 {offsets = [0, 256], sizes = [8, 128], strides = [1, 1]} : vector<8x384xf32> to vector<8x128xf32>
    %329 = arith.mulf %318, %328 : vector<8x128xf32>
    %330 = arith.addf %327, %329 : vector<8x128xf32>
    %331 = math.tanh %330 : vector<8x128xf32>
    %cst_85 = arith.constant 1.000000e+00 : f32
    %332 = vector.broadcast %cst_85 : f32 to vector<8x128xf32>
    %333 = arith.subf %332, %326 : vector<8x128xf32>
    %334 = arith.mulf %333, %331 : vector<8x128xf32>
    %335 = arith.mulf %326, %269 : vector<8x128xf32>
    %336 = arith.addf %334, %335 : vector<8x128xf32>
    %337 = arith.truncf %336 : vector<8x128xf32> to vector<8x128xbf16>
    %cst_86 = arith.constant dense<0.000000e+00> : vector<8x256xf32>
    %338 = tpu.matmul %337, %5, %cst_86 {dimension_numbers = #tpu.dot_dimension_numbers<[1], [0], [0], [1], [0, 0, 1, 1], [], []>} : vector<8x128xbf16>, vector<128x256xbf16>, vector<8x256xf32> -> vector<8x256xf32>
    %339 = vector.broadcast %8 : vector<1x256xf32> to vector<8x256xf32>
    %340 = arith.addf %338, %339 : vector<8x256xf32>
    %341 = arith.index_cast %c4_i32 : i32 to index
    %c0_87 = arith.constant 0 : index
    %c0_88 = arith.constant 0 : index
    %342 = vector.load %arg11[%341, %c0_87, %c0_88] : memref<7x8x256xf32, #tpu.memory_space<vmem>>, vector<1x8x256xf32>
    %343 = vector.shape_cast %342 : vector<1x8x256xf32> to vector<8x256xf32>
    %344 = vector.shape_cast %340 : vector<8x256xf32> to vector<1x8x256xf32>
    tpu.vector_store %arg11[%341, %c0_87, %c0_88], %344 {strides = array<i32>} : memref<7x8x256xf32, #tpu.memory_space<vmem>>, vector<1x8x256xf32>,
    %c5_i32 = arith.constant 5 : i32
    %345 = vector.broadcast %2 : vector<1x128xf32> to vector<8x128xf32>
    %346 = arith.mulf %336, %345 : vector<8x128xf32>
    %cst_89 = arith.constant dense<0.000000e+00> : vector<8xf32>
    %347 = vector.multi_reduction <add>, %346, %cst_89 [1] : vector<8x128xf32> to vector<8xf32>
    %348 = vector.shape_cast %347 : vector<8xf32> to vector<8x1xf32>
    %349 = vector.broadcast %348 : vector<8x1xf32> to vector<8x16xf32>
    %350 = arith.addf %1, %349 : vector<8x16xf32>
    %cst_90 = arith.constant dense<0xFF800000> : vector<8xf32>
    %351 = vector.multi_reduction <maximumf>, %350, %cst_90 [1] : vector<8x16xf32> to vector<8xf32>
    %352 = vector.shape_cast %351 : vector<8xf32> to vector<8x1xf32>
    %353 = vector.broadcast %352 : vector<8x1xf32> to vector<8x16xf32>
    %354 = arith.subf %350, %353 : vector<8x16xf32>
    %355 = math.exp %354 : vector<8x16xf32>
    %cst_91 = arith.constant dense<0.000000e+00> : vector<8xf32>
    %356 = vector.multi_reduction <add>, %355, %cst_91 [1] : vector<8x16xf32> to vector<8xf32>
    %357 = vector.shape_cast %356 : vector<8xf32> to vector<8x1xf32>
    %358 = tpu.reciprocal %357 {approx = true} : vector<8x1xf32> -> vector<8x1xf32>
    %359 = vector.broadcast %358 : vector<8x1xf32> to vector<8x16xf32>
    %360 = arith.mulf %355, %359 : vector<8x16xf32>
    %361 = vector.shape_cast %360 : vector<8x16xf32> to vector<8x16x1xf32>
    %362 = arith.extf %0 : vector<8x16x128xbf16> to vector<8x16x128xf32>
    %363 = vector.broadcast %361 : vector<8x16x1xf32> to vector<8x16x128xf32>
    %364 = arith.mulf %363, %362 : vector<8x16x128xf32>
    %cst_92 = arith.constant dense<0.000000e+00> : vector<8x128xf32>
    %365 = vector.multi_reduction <add>, %364, %cst_92 [1] : vector<8x16x128xf32> to vector<8x128xf32>
    %366 = arith.index_cast %c5_i32 : i32 to index
    %c0_93 = arith.constant 0 : index
    %c0_94 = arith.constant 0 : index
    %367 = vector.load %arg0[%366, %c0_93, %c0_94] : memref<7x8x128xbf16, #tpu.memory_space<vmem>>, vector<1x8x128xbf16>
    %368 = vector.shape_cast %367 : vector<1x8x128xbf16> to vector<8x128xbf16>
    %369 = arith.truncf %365 : vector<8x128xf32> to vector<8x128xbf16>
    %370 = tpu.concatenate %368, %369 in 1 : vector<8x128xbf16>, vector<8x128xbf16> -> vector<8x256xbf16>
    %cst_95 = arith.constant dense<0.000000e+00> : vector<8x384xf32>
    %371 = tpu.matmul %370, %3, %cst_95 {dimension_numbers = #tpu.dot_dimension_numbers<[1], [0], [0], [1], [0, 0, 1, 1], [], []>} : vector<8x256xbf16>, vector<256x384xbf16>, vector<8x384xf32> -> vector<8x384xf32>
    %372 = vector.broadcast %6 : vector<1x384xf32> to vector<8x384xf32>
    %373 = arith.addf %371, %372 : vector<8x384xf32>
    %374 = arith.truncf %336 : vector<8x128xf32> to vector<8x128xbf16>
    %cst_96 = arith.constant dense<0.000000e+00> : vector<8x384xf32>
    %375 = tpu.matmul %374, %4, %cst_96 {dimension_numbers = #tpu.dot_dimension_numbers<[1], [0], [0], [1], [0, 0, 1, 1], [], []>} : vector<8x128xbf16>, vector<128x384xbf16>, vector<8x384xf32> -> vector<8x384xf32>
    %376 = vector.broadcast %7 : vector<1x384xf32> to vector<8x384xf32>
    %377 = arith.addf %375, %376 : vector<8x384xf32>
    %378 = vector.extract_strided_slice %373 {offsets = [0, 0], sizes = [8, 128], strides = [1, 1]} : vector<8x384xf32> to vector<8x128xf32>
    %379 = vector.extract_strided_slice %377 {offsets = [0, 0], sizes = [8, 128], strides = [1, 1]} : vector<8x384xf32> to vector<8x128xf32>
    %380 = arith.addf %378, %379 : vector<8x128xf32>
    %381 = arith.negf %380 : vector<8x128xf32>
    %382 = math.exp %381 : vector<8x128xf32>
    %cst_97 = arith.constant 1.000000e+00 : f32
    %383 = vector.broadcast %cst_97 : f32 to vector<8x128xf32>
    %384 = arith.addf %383, %382 : vector<8x128xf32>
    %385 = arith.divf %383, %384 : vector<8x128xf32>
    %386 = vector.extract_strided_slice %373 {offsets = [0, 128], sizes = [8, 128], strides = [1, 1]} : vector<8x384xf32> to vector<8x128xf32>
    %387 = vector.extract_strided_slice %377 {offsets = [0, 128], sizes = [8, 128], strides = [1, 1]} : vector<8x384xf32> to vector<8x128xf32>
    %388 = arith.addf %386, %387 : vector<8x128xf32>
    %389 = arith.negf %388 : vector<8x128xf32>
    %390 = math.exp %389 : vector<8x128xf32>
    %cst_98 = arith.constant 1.000000e+00 : f32
    %391 = vector.broadcast %cst_98 : f32 to vector<8x128xf32>
    %392 = arith.addf %391, %390 : vector<8x128xf32>
    %393 = arith.divf %391, %392 : vector<8x128xf32>
    %394 = vector.extract_strided_slice %373 {offsets = [0, 256], sizes = [8, 128], strides = [1, 1]} : vector<8x384xf32> to vector<8x128xf32>
    %395 = vector.extract_strided_slice %377 {offsets = [0, 256], sizes = [8, 128], strides = [1, 1]} : vector<8x384xf32> to vector<8x128xf32>
    %396 = arith.mulf %385, %395 : vector<8x128xf32>
    %397 = arith.addf %394, %396 : vector<8x128xf32>
    %398 = math.tanh %397 : vector<8x128xf32>
    %cst_99 = arith.constant 1.000000e+00 : f32
    %399 = vector.broadcast %cst_99 : f32 to vector<8x128xf32>
    %400 = arith.subf %399, %393 : vector<8x128xf32>
    %401 = arith.mulf %400, %398 : vector<8x128xf32>
    %402 = arith.mulf %393, %336 : vector<8x128xf32>
    %403 = arith.addf %401, %402 : vector<8x128xf32>
    %404 = arith.truncf %403 : vector<8x128xf32> to vector<8x128xbf16>
    %cst_100 = arith.constant dense<0.000000e+00> : vector<8x256xf32>
    %405 = tpu.matmul %404, %5, %cst_100 {dimension_numbers = #tpu.dot_dimension_numbers<[1], [0], [0], [1], [0, 0, 1, 1], [], []>} : vector<8x128xbf16>, vector<128x256xbf16>, vector<8x256xf32> -> vector<8x256xf32>
    %406 = vector.broadcast %8 : vector<1x256xf32> to vector<8x256xf32>
    %407 = arith.addf %405, %406 : vector<8x256xf32>
    %408 = arith.index_cast %c5_i32 : i32 to index
    %c0_101 = arith.constant 0 : index
    %c0_102 = arith.constant 0 : index
    %409 = vector.load %arg11[%408, %c0_101, %c0_102] : memref<7x8x256xf32, #tpu.memory_space<vmem>>, vector<1x8x256xf32>
    %410 = vector.shape_cast %409 : vector<1x8x256xf32> to vector<8x256xf32>
    %411 = vector.shape_cast %407 : vector<8x256xf32> to vector<1x8x256xf32>
    tpu.vector_store %arg11[%408, %c0_101, %c0_102], %411 {strides = array<i32>} : memref<7x8x256xf32, #tpu.memory_space<vmem>>, vector<1x8x256xf32>,
    %c6_i32 = arith.constant 6 : i32
    %412 = vector.broadcast %2 : vector<1x128xf32> to vector<8x128xf32>
    %413 = arith.mulf %403, %412 : vector<8x128xf32>
    %cst_103 = arith.constant dense<0.000000e+00> : vector<8xf32>
    %414 = vector.multi_reduction <add>, %413, %cst_103 [1] : vector<8x128xf32> to vector<8xf32>
    %415 = vector.shape_cast %414 : vector<8xf32> to vector<8x1xf32>
    %416 = vector.broadcast %415 : vector<8x1xf32> to vector<8x16xf32>
    %417 = arith.addf %1, %416 : vector<8x16xf32>
    %cst_104 = arith.constant dense<0xFF800000> : vector<8xf32>
    %418 = vector.multi_reduction <maximumf>, %417, %cst_104 [1] : vector<8x16xf32> to vector<8xf32>
    %419 = vector.shape_cast %418 : vector<8xf32> to vector<8x1xf32>
    %420 = vector.broadcast %419 : vector<8x1xf32> to vector<8x16xf32>
    %421 = arith.subf %417, %420 : vector<8x16xf32>
    %422 = math.exp %421 : vector<8x16xf32>
    %cst_105 = arith.constant dense<0.000000e+00> : vector<8xf32>
    %423 = vector.multi_reduction <add>, %422, %cst_105 [1] : vector<8x16xf32> to vector<8xf32>
    %424 = vector.shape_cast %423 : vector<8xf32> to vector<8x1xf32>
    %425 = tpu.reciprocal %424 {approx = true} : vector<8x1xf32> -> vector<8x1xf32>
    %426 = vector.broadcast %425 : vector<8x1xf32> to vector<8x16xf32>
    %427 = arith.mulf %422, %426 : vector<8x16xf32>
    %428 = vector.shape_cast %427 : vector<8x16xf32> to vector<8x16x1xf32>
    %429 = arith.extf %0 : vector<8x16x128xbf16> to vector<8x16x128xf32>
    %430 = vector.broadcast %428 : vector<8x16x1xf32> to vector<8x16x128xf32>
    %431 = arith.mulf %430, %429 : vector<8x16x128xf32>
    %cst_106 = arith.constant dense<0.000000e+00> : vector<8x128xf32>
    %432 = vector.multi_reduction <add>, %431, %cst_106 [1] : vector<8x16x128xf32> to vector<8x128xf32>
    %433 = arith.index_cast %c6_i32 : i32 to index
    %c0_107 = arith.constant 0 : index
    %c0_108 = arith.constant 0 : index
    %434 = vector.load %arg0[%433, %c0_107, %c0_108] : memref<7x8x128xbf16, #tpu.memory_space<vmem>>, vector<1x8x128xbf16>
    %435 = vector.shape_cast %434 : vector<1x8x128xbf16> to vector<8x128xbf16>
    %436 = arith.truncf %432 : vector<8x128xf32> to vector<8x128xbf16>
    %437 = tpu.concatenate %435, %436 in 1 : vector<8x128xbf16>, vector<8x128xbf16> -> vector<8x256xbf16>
    %cst_109 = arith.constant dense<0.000000e+00> : vector<8x384xf32>
    %438 = tpu.matmul %437, %3, %cst_109 {dimension_numbers = #tpu.dot_dimension_numbers<[1], [0], [0], [1], [0, 0, 1, 1], [], []>} : vector<8x256xbf16>, vector<256x384xbf16>, vector<8x384xf32> -> vector<8x384xf32>
    %439 = vector.broadcast %6 : vector<1x384xf32> to vector<8x384xf32>
    %440 = arith.addf %438, %439 : vector<8x384xf32>
    %441 = arith.truncf %403 : vector<8x128xf32> to vector<8x128xbf16>
    %cst_110 = arith.constant dense<0.000000e+00> : vector<8x384xf32>
    %442 = tpu.matmul %441, %4, %cst_110 {dimension_numbers = #tpu.dot_dimension_numbers<[1], [0], [0], [1], [0, 0, 1, 1], [], []>} : vector<8x128xbf16>, vector<128x384xbf16>, vector<8x384xf32> -> vector<8x384xf32>
    %443 = vector.broadcast %7 : vector<1x384xf32> to vector<8x384xf32>
    %444 = arith.addf %442, %443 : vector<8x384xf32>
    %445 = vector.extract_strided_slice %440 {offsets = [0, 0], sizes = [8, 128], strides = [1, 1]} : vector<8x384xf32> to vector<8x128xf32>
    %446 = vector.extract_strided_slice %444 {offsets = [0, 0], sizes = [8, 128], strides = [1, 1]} : vector<8x384xf32> to vector<8x128xf32>
    %447 = arith.addf %445, %446 : vector<8x128xf32>
    %448 = arith.negf %447 : vector<8x128xf32>
    %449 = math.exp %448 : vector<8x128xf32>
    %cst_111 = arith.constant 1.000000e+00 : f32
    %450 = vector.broadcast %cst_111 : f32 to vector<8x128xf32>
    %451 = arith.addf %450, %449 : vector<8x128xf32>
    %452 = arith.divf %450, %451 : vector<8x128xf32>
    %453 = vector.extract_strided_slice %440 {offsets = [0, 128], sizes = [8, 128], strides = [1, 1]} : vector<8x384xf32> to vector<8x128xf32>
    %454 = vector.extract_strided_slice %444 {offsets = [0, 128], sizes = [8, 128], strides = [1, 1]} : vector<8x384xf32> to vector<8x128xf32>
    %455 = arith.addf %453, %454 : vector<8x128xf32>
    %456 = arith.negf %455 : vector<8x128xf32>
    %457 = math.exp %456 : vector<8x128xf32>
    %cst_112 = arith.constant 1.000000e+00 : f32
    %458 = vector.broadcast %cst_112 : f32 to vector<8x128xf32>
    %459 = arith.addf %458, %457 : vector<8x128xf32>
    %460 = arith.divf %458, %459 : vector<8x128xf32>
    %461 = vector.extract_strided_slice %440 {offsets = [0, 256], sizes = [8, 128], strides = [1, 1]} : vector<8x384xf32> to vector<8x128xf32>
    %462 = vector.extract_strided_slice %444 {offsets = [0, 256], sizes = [8, 128], strides = [1, 1]} : vector<8x384xf32> to vector<8x128xf32>
    %463 = arith.mulf %452, %462 : vector<8x128xf32>
    %464 = arith.addf %461, %463 : vector<8x128xf32>
    %465 = math.tanh %464 : vector<8x128xf32>
    %cst_113 = arith.constant 1.000000e+00 : f32
    %466 = vector.broadcast %cst_113 : f32 to vector<8x128xf32>
    %467 = arith.subf %466, %460 : vector<8x128xf32>
    %468 = arith.mulf %467, %465 : vector<8x128xf32>
    %469 = arith.mulf %460, %403 : vector<8x128xf32>
    %470 = arith.addf %468, %469 : vector<8x128xf32>
    %471 = arith.truncf %470 : vector<8x128xf32> to vector<8x128xbf16>
    %cst_114 = arith.constant dense<0.000000e+00> : vector<8x256xf32>
    %472 = tpu.matmul %471, %5, %cst_114 {dimension_numbers = #tpu.dot_dimension_numbers<[1], [0], [0], [1], [0, 0, 1, 1], [], []>} : vector<8x128xbf16>, vector<128x256xbf16>, vector<8x256xf32> -> vector<8x256xf32>
    %473 = vector.broadcast %8 : vector<1x256xf32> to vector<8x256xf32>
    %474 = arith.addf %472, %473 : vector<8x256xf32>
    %475 = arith.index_cast %c6_i32 : i32 to index
    %c0_115 = arith.constant 0 : index
    %c0_116 = arith.constant 0 : index
    %476 = vector.load %arg11[%475, %c0_115, %c0_116] : memref<7x8x256xf32, #tpu.memory_space<vmem>>, vector<1x8x256xf32>
    %477 = vector.shape_cast %476 : vector<1x8x256xf32> to vector<8x256xf32>
    %478 = vector.shape_cast %474 : vector<8x256xf32> to vector<1x8x256xf32>
    tpu.vector_store %arg11[%475, %c0_115, %c0_116], %478 {strides = array<i32>} : memref<7x8x256xf32, #tpu.memory_space<vmem>>, vector<1x8x256xf32>,
    %c7_i32 = arith.constant 7 : i32
    return
  }
}

</mosaic_0001>

<llo_original>
// kernel: decoder_forward.1
$region0: #{decoder_forward.1}
  #allocation0 [shape = 'u32[]', space=smem, size = 0x4, offset = 0x4, fixed_abs, tag = 'smem constant byte address 0x4 - core index']
  #allocation1 [shape = 'u32[144,128]{1,0:T(1,128)}', space=vmem, size = 0x12000, scoped, tag = 'internal scratch']
  %s0 = inlined_call_operand.vmem [shape: bf16[7,8,128], index: 0, kind: input, shape index: {}]
  %s1 = inlined_call_operand.vmem [shape: bf16[8,16,128], index: 1, kind: input, shape index: {}]
  %s2 = inlined_call_operand.vmem [shape: f32[8,16], index: 2, kind: input, shape index: {}]
  %s3 = inlined_call_operand.vmem [shape: f32[1,128], index: 3, kind: input, shape index: {}]
  %s4 = inlined_call_operand.vmem [shape: f32[8,128], index: 4, kind: input, shape index: {}]
  %s5 = inlined_call_operand.vmem [shape: bf16[256,384], index: 5, kind: input, shape index: {}]
  %s6 = inlined_call_operand.vmem [shape: f32[1,384], index: 6, kind: input, shape index: {}]
  %s7 = inlined_call_operand.vmem [shape: bf16[128,384], index: 7, kind: input, shape index: {}]
  %s8 = inlined_call_operand.vmem [shape: f32[1,384], index: 8, kind: input, shape index: {}]
  %s9 = inlined_call_operand.vmem [shape: bf16[128,256], index: 9, kind: input, shape index: {}]
  %s10 = inlined_call_operand.vmem [shape: f32[1,256], index: 10, kind: input, shape index: {}]
  %s11 = inlined_call_operand.vmem [shape: f32[7,8,256], index: 11, kind: output, shape index: {}]
  %s12 = sld [smem:[#allocation0]]
  $region54: #{decoder_forward.1} parent=0
    _
  %s14 = ssub.s32 1, %s12
  %s15 = scalar_select 0, %s14, %s12
  // Predicated region
  $region2: #{decoder_forward.1} parent=0 // pred_check
    _
  $region3: #{decoder_forward.1} parent=0 // pred_check_branch
    %17 = sbr.rel (0) target = $region5
  $region4: #{decoder_forward.1} parent=0 // pred_region
    _
  $region5: #{decoder_forward.1} parent=0 // pred_fallthru
    _
  // Predicated region
  $region6: #{decoder_forward.1} parent=0 // pred_check
    _
  $region7: #{decoder_forward.1} parent=0 // pred_check_branch
    %19 = sbr.rel (0) target = $region9
  $region8: #{decoder_forward.1} parent=0 // pred_region
    _
  $region9: #{decoder_forward.1} parent=0 // pred_fallthru
    _
  // Predicated region
  $region10: #{decoder_forward.1} parent=0 // pred_check
    _
  $region11: #{decoder_forward.1} parent=0 // pred_check_branch
    %21 = sbr.rel (0) target = $region13
  $region12: #{decoder_forward.1} parent=0 // pred_region
    _
  $region13: #{decoder_forward.1} parent=0 // pred_fallthru
    _
  // Predicated region
  $region14: #{decoder_forward.1} parent=0 // pred_check
    _
  $region15: #{decoder_forward.1} parent=0 // pred_check_branch
    %23 = sbr.rel (0) target = $region17
  $region16: #{decoder_forward.1} parent=0 // pred_region
    _
  $region17: #{decoder_forward.1} parent=0 // pred_fallthru
    _
  // Predicated region
  $region18: #{decoder_forward.1} parent=0 // pred_check
    _
  $region19: #{decoder_forward.1} parent=0 // pred_check_branch
    %25 = sbr.rel (0) target = $region21
  $region20: #{decoder_forward.1} parent=0 // pred_region
    _
  $region21: #{decoder_forward.1} parent=0 // pred_fallthru
    _
  // Predicated region
  $region22: #{decoder_forward.1} parent=0 // pred_check
    _
  $region23: #{decoder_forward.1} parent=0 // pred_check_branch
    %27 = sbr.rel (0) target = $region25
  $region24: #{decoder_forward.1} parent=0 // pred_region
    _
  $region25: #{decoder_forward.1} parent=0 // pred_fallthru
    _
  // Predicated region
  $region26: #{decoder_forward.1} parent=0 // pred_check
    _
  $region27: #{decoder_forward.1} parent=0 // pred_check_branch
    %29 = sbr.rel (0) target = $region29
  $region28: #{decoder_forward.1} parent=0 // pred_region
    _
  $region29: #{decoder_forward.1} parent=0 // pred_fallthru
    _
  // Predicated region
  $region30: #{decoder_forward.1} parent=0 // pred_check
    _
  $region31: #{decoder_forward.1} parent=0 // pred_check_branch
    %31 = sbr.rel (0) target = $region33
  $region32: #{decoder_forward.1} parent=0 // pred_region
    _
  $region33: #{decoder_forward.1} parent=0 // pred_fallthru
    _
  // Predicated region
  $region34: #{decoder_forward.1} parent=0 // pred_check
    _
  $region35: #{decoder_forward.1} parent=0 // pred_check_branch
    %33 = sbr.rel (0) target = $region37
  $region36: #{decoder_forward.1} parent=0 // pred_region
    _
  $region37: #{decoder_forward.1} parent=0 // pred_fallthru
    _
  // Predicated region
  $region38: #{decoder_forward.1} parent=0 // pred_check
    _
  $region39: #{decoder_forward.1} parent=0 // pred_check_branch
    %35 = sbr.rel (0) target = $region41
  $region40: #{decoder_forward.1} parent=0 // pred_region
    _
  $region41: #{decoder_forward.1} parent=0 // pred_fallthru
    _
  // Predicated region
  $region42: #{decoder_forward.1} parent=0 // pred_check
    _
  $region43: #{decoder_forward.1} parent=0 // pred_check_branch
    %37 = sbr.rel (0) target = $region45
  $region44: #{decoder_forward.1} parent=0 // pred_region
    _
  $region45: #{decoder_forward.1} parent=0 // pred_fallthru
    _
  %v39 = vld [vmem:[%s1] sm:$0xf]
  %v40 = vld [vmem:[%s1 + $0x4] sm:$0xf]
  %v41 = vld [vmem:[%s1 + $0x8] sm:$0xf]
  %v42 = vld [vmem:[%s1 + $0xc] sm:$0xf]
  %v43 = vld [vmem:[%s1 + $0x10] sm:$0xf]
  %v44 = vld [vmem:[%s1 + $0x14] sm:$0xf]
  %v45 = vld [vmem:[%s1 + $0x18] sm:$0xf]
  %v46 = vld [vmem:[%s1 + $0x1c] sm:$0xf]
  %v47 = vld [vmem:[%s1 + $0x20] sm:$0xf]
  %v48 = vld [vmem:[%s1 + $0x24] sm:$0xf]
  %v49 = vld [vmem:[%s1 + $0x28] sm:$0xf]
  %v50 = vld [vmem:[%s1 + $0x2c] sm:$0xf]
  %v51 = vld [vmem:[%s1 + $0x30] sm:$0xf]
  %v52 = vld [vmem:[%s1 + $0x34] sm:$0xf]
  %v53 = vld [vmem:[%s1 + $0x38] sm:$0xf]
  %v54 = vld [vmem:[%s1 + $0x3c] sm:$0xf]
  %v55 = vld [vmem:[%s2] sm:$0xff]
  %v56 = vld [vmem:[%s3] sm:$0x1]
  %v57 = vld [vmem:[%s5] sm:$0xff]
  %v58 = vld [vmem:[%s5 + $0x8] sm:$0xf]
  %v59 = vld [vmem:[%s5 + $0xc] sm:$0xff]
  %v60 = vld [vmem:[%s5 + $0x14] sm:$0xf]
  %v61 = vld [vmem:[%s5 + $0x18] sm:$0xff]
  %v62 = vld [vmem:[%s5 + $0x20] sm:$0xf]
  %v63 = vld [vmem:[%s5 + $0x24] sm:$0xff]
  %v64 = vld [vmem:[%s5 + $0x2c] sm:$0xf]
  %v65 = vld [vmem:[%s5 + $0x30] sm:$0xff]
  %v66 = vld [vmem:[%s5 + $0x38] sm:$0xf]
  %v67 = vld [vmem:[%s5 + $0x3c] sm:$0xff]
  %v68 = vld [vmem:[%s5 + $0x44] sm:$0xf]
  %v69 = vld [vmem:[%s5 + $0x48] sm:$0xff]
  %v70 = vld [vmem:[%s5 + $0x50] sm:$0xf]
  %v71 = vld [vmem:[%s5 + $0x54] sm:$0xff]
  %v72 = vld [vmem:[%s5 + $0x5c] sm:$0xf]
  %v73 = vld [vmem:[%s5 + $0x60] sm:$0xff]
  %v74 = vld [vmem:[%s5 + $0x68] sm:$0xf]
  %v75 = vld [vmem:[%s5 + $0x6c] sm:$0xff]
  %v76 = vld [vmem:[%s5 + $0x74] sm:$0xf]
  %v77 = vld [vmem:[%s5 + $0x78] sm:$0xff]
  %v78 = vld [vmem:[%s5 + $0x80] sm:$0xf]
  %v79 = vld [vmem:[%s5 + $0x84] sm:$0xff]
  %v80 = vld [vmem:[%s5 + $0x8c] sm:$0xf]
  %v81 = vld [vmem:[%s5 + $0x90] sm:$0xff]
  %v82 = vld [vmem:[%s5 + $0x98] sm:$0xf]
  %v83 = vld [vmem:[%s5 + $0x9c] sm:$0xff]
  %v84 = vld [vmem:[%s5 + $0xa4] sm:$0xf]
  %v85 = vld [vmem:[%s5 + $0xa8] sm:$0xff]
  %v86 = vld [vmem:[%s5 + $0xb0] sm:$0xf]
  %v87 = vld [vmem:[%s5 + $0xb4] sm:$0xff]
  %v88 = vld [vmem:[%s5 + $0xbc] sm:$0xf]
  %v89 = vld [vmem:[%s5 + $0xc0] sm:$0xff]
  %v90 = vld [vmem:[%s5 + $0xc8] sm:$0xf]
  %v91 = vld [vmem:[%s5 + $0xcc] sm:$0xff]
  %v92 = vld [vmem:[%s5 + $0xd4] sm:$0xf]
  %v93 = vld [vmem:[%s5 + $0xd8] sm:$0xff]
  %v94 = vld [vmem:[%s5 + $0xe0] sm:$0xf]
  %v95 = vld [vmem:[%s5 + $0xe4] sm:$0xff]
  %v96 = vld [vmem:[%s5 + $0xec] sm:$0xf]
  %v97 = vld [vmem:[%s5 + $0xf0] sm:$0xff]
  %v98 = vld [vmem:[%s5 + $0xf8] sm:$0xf]
  %v99 = vld [vmem:[%s5 + $0xfc] sm:$0xff]
  %v100 = vld [vmem:[%s5 + $0x104] sm:$0xf]
  %v101 = vld [vmem:[%s5 + $0x108] sm:$0xff]
  %v102 = vld [vmem:[%s5 + $0x110] sm:$0xf]
  %v103 = vld [vmem:[%s5 + $0x114] sm:$0xff]
  %v104 = vld [vmem:[%s5 + $0x11c] sm:$0xf]
  %v105 = vld [vmem:[%s5 + $0x120] sm:$0xff]
  %v106 = vld [vmem:[%s5 + $0x128] sm:$0xf]
  %v107 = vld [vmem:[%s5 + $0x12c] sm:$0xff]
  %v108 = vld [vmem:[%s5 + $0x134] sm:$0xf]
  %v109 = vld [vmem:[%s5 + $0x138] sm:$0xff]
  %v110 = vld [vmem:[%s5 + $0x140] sm:$0xf]
  %v111 = vld [vmem:[%s5 + $0x144] sm:$0xff]
  %v112 = vld [vmem:[%s5 + $0x14c] sm:$0xf]
  %v113 = vld [vmem:[%s5 + $0x150] sm:$0xff]
  %v114 = vld [vmem:[%s5 + $0x158] sm:$0xf]
  %v115 = vld [vmem:[%s5 + $0x15c] sm:$0xff]
  %v116 = vld [vmem:[%s5 + $0x164] sm:$0xf]
  %v117 = vld [vmem:[%s5 + $0x168] sm:$0xff]
  %v118 = vld [vmem:[%s5 + $0x170] sm:$0xf]
  %v119 = vld [vmem:[%s5 + $0x174] sm:$0xff]
  %v120 = vld [vmem:[%s5 + $0x17c] sm:$0xf]
  %v121 = vld [vmem:[%s7] sm:$0xff]
  %v122 = vld [vmem:[%s7 + $0x8] sm:$0xf]
  %v123 = vld [vmem:[%s7 + $0xc] sm:$0xff]
  %v124 = vld [vmem:[%s7 + $0x14] sm:$0xf]
  %v125 = vld [vmem:[%s7 + $0x18] sm:$0xff]
  %v126 = vld [vmem:[%s7 + $0x20] sm:$0xf]
  %v127 = vld [vmem:[%s7 + $0x24] sm:$0xff]
  %v128 = vld [vmem:[%s7 + $0x2c] sm:$0xf]
  %v129 = vld [vmem:[%s7 + $0x30] sm:$0xff]
  %v130 = vld [vmem:[%s7 + $0x38] sm:$0xf]
  %v131 = vld [vmem:[%s7 + $0x3c] sm:$0xff]
  %v132 = vld [vmem:[%s7 + $0x44] sm:$0xf]
  %v133 = vld [vmem:[%s7 + $0x48] sm:$0xff]
  %v134 = vld [vmem:[%s7 + $0x50] sm:$0xf]
  %v135 = vld [vmem:[%s7 + $0x54] sm:$0xff]
  %v136 = vld [vmem:[%s7 + $0x5c] sm:$0xf]
  %v137 = vld [vmem:[%s7 + $0x60] sm:$0xff]
  %v138 = vld [vmem:[%s7 + $0x68] sm:$0xf]
  %v139 = vld [vmem:[%s7 + $0x6c] sm:$0xff]
  %v140 = vld [vmem:[%s7 + $0x74] sm:$0xf]
  %v141 = vld [vmem:[%s7 + $0x78] sm:$0xff]
  %v142 = vld [vmem:[%s7 + $0x80] sm:$0xf]
  %v143 = vld [vmem:[%s7 + $0x84] sm:$0xff]
  %v144 = vld [vmem:[%s7 + $0x8c] sm:$0xf]
  %v145 = vld [vmem:[%s7 + $0x90] sm:$0xff]
  %v146 = vld [vmem:[%s7 + $0x98] sm:$0xf]
  %v147 = vld [vmem:[%s7 + $0x9c] sm:$0xff]
  %v148 = vld [vmem:[%s7 + $0xa4] sm:$0xf]
  %v149 = vld [vmem:[%s7 + $0xa8] sm:$0xff]
  %v150 = vld [vmem:[%s7 + $0xb0] sm:$0xf]
  %v151 = vld [vmem:[%s7 + $0xb4] sm:$0xff]
  %v152 = vld [vmem:[%s7 + $0xbc] sm:$0xf]
  %v153 = vld [vmem:[%s9] sm:$0xff]
  %v154 = vld [vmem:[%s9 + $0x8] sm:$0xff]
  %v155 = vld [vmem:[%s9 + $0x10] sm:$0xff]
  %v156 = vld [vmem:[%s9 + $0x18] sm:$0xff]
  %v157 = vld [vmem:[%s9 + $0x20] sm:$0xff]
  %v158 = vld [vmem:[%s9 + $0x28] sm:$0xff]
  %v159 = vld [vmem:[%s9 + $0x30] sm:$0xff]
  %v160 = vld [vmem:[%s9 + $0x38] sm:$0xff]
  %v161 = vld [vmem:[%s9 + $0x40] sm:$0xff]
  %v162 = vld [vmem:[%s9 + $0x48] sm:$0xff]
  %v163 = vld [vmem:[%s9 + $0x50] sm:$0xff]
  %v164 = vld [vmem:[%s9 + $0x58] sm:$0xff]
  %v165 = vld [vmem:[%s9 + $0x60] sm:$0xff]
  %v166 = vld [vmem:[%s9 + $0x68] sm:$0xff]
  %v167 = vld [vmem:[%s9 + $0x70] sm:$0xff]
  %v168 = vld [vmem:[%s9 + $0x78] sm:$0xff]
  %v169 = vld [vmem:[%s6] sm:$0x7]
  %v170 = vld [vmem:[%s8] sm:$0x7]
  %v171 = vld [vmem:[%s10] sm:$0x3]
  %v172 = vld [vmem:[%s4] sm:$0xff]
  %v174 = vlaneseq
  %v175 = vshrl.u32 %v174, 7
  %v176 = vsub.s32 0, %v175
  %v177 = vrot.slane %v56, %v176
  %v179 = vmul.f32 %v172, %v177
  %180 = vadd.xlane.f32.xlu0 %v179
  %v181 = vpop.xlane.xlu0 %180
  %v182 = vadd.f32 %v55, %v181
  %vm183 = vcmask 130048
  %v184 = vsel %vm183, %v182, -inf
  %185 = vmax.xlane.f32.xlu0 %v184
  %v186 = vpop.xlane.xlu0 %185
  %v187 = vsub.f32 %v182, %v186
  %v188 = vmul.f32 %v187, 1.442695
  %v189 = vpow.pop %v188
  %v190 = vsel %vm183, %v189, 0.0
  %191 = vadd.xlane.f32.xlu0 %v190
  %v192 = vpop.xlane.xlu0 %191
  %v193 = vrcp.pop %v192
  %v194 = vmul.f32 %v189, %v193
  %v195 = vlaneseq
  %v196 = vshrl.u32 %v195, 7
  %v197 = vsub.s32 0, %v196
  %v198 = vrot.slane %v194, %v197
  %200 = vbcast.lane.b32.xlu0 %v198, 256
  %v201 = vpop.permute.xlu0 %200
  %s203 = sor.u32 256, 8
  %204 = vbcast.lane.b32.xlu0 %v198, %s203
  %v205 = vpop.permute.xlu0 %204
  %v206 = vlaneseq
  %v207 = vshrl.u32 %v206, 7
  %v208 = vsub.s32 1, %v207
  %v209 = vrot.slane %v194, %v208
  %211 = vbcast.lane.b32.xlu0 %v209, 256
  %v212 = vpop.permute.xlu0 %211
  %s214 = sor.u32 256, 8
  %215 = vbcast.lane.b32.xlu0 %v209, %s214
  %v216 = vpop.permute.xlu0 %215
  %v217 = vlaneseq
  %v218 = vshrl.u32 %v217, 7
  %v219 = vsub.s32 2, %v218
  %v220 = vrot.slane %v194, %v219
  %222 = vbcast.lane.b32.xlu0 %v220, 256
  %v223 = vpop.permute.xlu0 %222
  %s225 = sor.u32 256, 8
  %226 = vbcast.lane.b32.xlu0 %v220, %s225
  %v227 = vpop.permute.xlu0 %226
  %v228 = vlaneseq
  %v229 = vshrl.u32 %v228, 7
  %v230 = vsub.s32 3, %v229
  %v231 = vrot.slane %v194, %v230
  %233 = vbcast.lane.b32.xlu0 %v231, 256
  %v234 = vpop.permute.xlu0 %233
  %s236 = sor.u32 256, 8
  %237 = vbcast.lane.b32.xlu0 %v231, %s236
  %v238 = vpop.permute.xlu0 %237
  %v239 = vlaneseq
  %v240 = vshrl.u32 %v239, 7
  %v241 = vsub.s32 4, %v240
  %v242 = vrot.slane %v194, %v241
  %244 = vbcast.lane.b32.xlu0 %v242, 256
  %v245 = vpop.permute.xlu0 %244
  %s247 = sor.u32 256, 8
  %248 = vbcast.lane.b32.xlu0 %v242, %s247
  %v249 = vpop.permute.xlu0 %248
  %v250 = vlaneseq
  %v251 = vshrl.u32 %v250, 7
  %v252 = vsub.s32 5, %v251
  %v253 = vrot.slane %v194, %v252
  %255 = vbcast.lane.b32.xlu0 %v253, 256
  %v256 = vpop.permute.xlu0 %255
  %s258 = sor.u32 256, 8
  %259 = vbcast.lane.b32.xlu0 %v253, %s258
  %v260 = vpop.permute.xlu0 %259
  %v261 = vlaneseq
  %v262 = vshrl.u32 %v261, 7
  %v263 = vsub.s32 6, %v262
  %v264 = vrot.slane %v194, %v263
  %266 = vbcast.lane.b32.xlu0 %v264, 256
  %v267 = vpop.permute.xlu0 %266
  %s269 = sor.u32 256, 8
  %270 = vbcast.lane.b32.xlu0 %v264, %s269
  %v271 = vpop.permute.xlu0 %270
  %v272 = vlaneseq
  %v273 = vshrl.u32 %v272, 7
  %v274 = vsub.s32 7, %v273
  %v275 = vrot.slane %v194, %v274
  %277 = vbcast.lane.b32.xlu0 %v275, 256
  %v278 = vpop.permute.xlu0 %277
  %s280 = sor.u32 256, 8
  %281 = vbcast.lane.b32.xlu0 %v275, %s280
  %v282 = vpop.permute.xlu0 %281
  %v283 = vunpack.c.l.bf16 %v39
  %v284 = vunpack.c.l.bf16 %v40
  %v285 = vunpack.c.l.bf16 %v41
  %v286 = vunpack.c.l.bf16 %v42
  %v287 = vunpack.c.l.bf16 %v43
  %v288 = vunpack.c.l.bf16 %v44
  %v289 = vunpack.c.l.bf16 %v45
  %v290 = vunpack.c.l.bf16 %v46
  %v291 = vunpack.c.l.bf16 %v47
  %v292 = vunpack.c.l.bf16 %v48
  %v293 = vunpack.c.l.bf16 %v49
  %v294 = vunpack.c.l.bf16 %v50
  %v295 = vunpack.c.l.bf16 %v51
  %v296 = vunpack.c.l.bf16 %v52
  %v297 = vunpack.c.l.bf16 %v53
  %v298 = vunpack.c.l.bf16 %v54
  %v299 = vmul.f32 %v201, %v283
  %v300 = vmul.f32 %v205, %v284
  %v301 = vmul.f32 %v212, %v285
  %v302 = vmul.f32 %v216, %v286
  %v303 = vmul.f32 %v223, %v287
  %v304 = vmul.f32 %v227, %v288
  %v305 = vmul.f32 %v234, %v289
  %v306 = vmul.f32 %v238, %v290
  %v307 = vmul.f32 %v245, %v291
  %v308 = vmul.f32 %v249, %v292
  %v309 = vmul.f32 %v256, %v293
  %v310 = vmul.f32 %v260, %v294
  %v311 = vmul.f32 %v267, %v295
  %v312 = vmul.f32 %v271, %v296
  %v313 = vmul.f32 %v278, %v297
  %v314 = vmul.f32 %v282, %v298
  %v315 = vadd.f32 %v299, %v300
  %v316 = vrot.slane %v315, 4
  %v317 = vadd.f32 %v315, %v316
  %v318 = vrot.slane %v317, 2
  %v319 = vadd.f32 %v317, %v318
  %v320 = vrot.slane %v319, 1
  %v321 = vadd.f32 %v319, %v320
  %v322 = vadd.f32 %v301, %v302
  %v323 = vrot.slane %v322, 4
  %v324 = vadd.f32 %v322, %v323
  %v325 = vrot.slane %v324, 2
  %v326 = vadd.f32 %v324, %v325
  %v327 = vrot.slane %v326, 1
  %v328 = vadd.f32 %v326, %v327
  %v329 = vadd.f32 %v303, %v304
  %v330 = vrot.slane %v329, 4
  %v331 = vadd.f32 %v329, %v330
  %v332 = vrot.slane %v331, 2
  %v333 = vadd.f32 %v331, %v332
  %v334 = vrot.slane %v333, 1
  %v335 = vadd.f32 %v333, %v334
  %v336 = vadd.f32 %v305, %v306
  %v337 = vrot.slane %v336, 4
  %v338 = vadd.f32 %v336, %v337
  %v339 = vrot.slane %v338, 2
  %v340 = vadd.f32 %v338, %v339
  %v341 = vrot.slane %v340, 1
  %v342 = vadd.f32 %v340, %v341
  %v343 = vadd.f32 %v307, %v308
  %v344 = vrot.slane %v343, 4
  %v345 = vadd.f32 %v343, %v344
  %v346 = vrot.slane %v345, 2
  %v347 = vadd.f32 %v345, %v346
  %v348 = vrot.slane %v347, 1
  %v349 = vadd.f32 %v347, %v348
  %v350 = vadd.f32 %v309, %v310
  %v351 = vrot.slane %v350, 4
  %v352 = vadd.f32 %v350, %v351
  %v353 = vrot.slane %v352, 2
  %v354 = vadd.f32 %v352, %v353
  %v355 = vrot.slane %v354, 1
  %v356 = vadd.f32 %v354, %v355
  %v357 = vadd.f32 %v311, %v312
  %v358 = vrot.slane %v357, 4
  %v359 = vadd.f32 %v357, %v358
  %v360 = vrot.slane %v359, 2
  %v361 = vadd.f32 %v359, %v360
  %v362 = vrot.slane %v361, 1
  %v363 = vadd.f32 %v361, %v362
  %v364 = vadd.f32 %v313, %v314
  %v365 = vrot.slane %v364, 4
  %v366 = vadd.f32 %v364, %v365
  %v367 = vrot.slane %v366, 2
  %v368 = vadd.f32 %v366, %v367
  %v369 = vrot.slane %v368, 1
  %v370 = vadd.f32 %v368, %v369
  %v371 = vld [vmem:[%s0] sm:$0xf]
  %v372 = vpack.c.bf16 %v321, %v321
  %v373 = vpack.c.bf16 %v328, %v328
  %v374 = vpack.c.bf16 %v335, %v335
  %v375 = vpack.c.bf16 %v342, %v342
  %v376 = vpack.c.bf16 %v349, %v349
  %v377 = vpack.c.bf16 %v356, %v356
  %v378 = vpack.c.bf16 %v363, %v363
  %v379 = vpack.c.bf16 %v370, %v370
  %v388 = vunpack.c.l.b16 %v372
  %v389 = vunpack.c.l.b16 %v373
  %v390 = vunpack.c.l.b16 %v374
  %v391 = vunpack.c.l.b16 %v375
  %v392 = vunpack.c.l.b16 %v376
  %v393 = vunpack.c.l.b16 %v377
  %v394 = vunpack.c.l.b16 %v378
  %v395 = vunpack.c.l.b16 %v379
  %vm396 = vcmask 1041409
  %v397 = vsel %vm396, %v389, %v388
  %vm398 = vcmask 1042434
  %v399 = vsel %vm398, %v390, %v397
  %vm400 = vcmask 1043459
  %v401 = vsel %vm400, %v391, %v399
  %vm402 = vcmask 1044484
  %v403 = vsel %vm402, %v392, %v401
  %vm404 = vcmask 1045509
  %v405 = vsel %vm404, %v393, %v403
  %vm406 = vcmask 1046534
  %v407 = vsel %vm406, %v394, %v405
  %vm408 = vcmask 1047559
  %v409 = vsel %vm408, %v395, %v407
  %v410 = vpack.c.b16 %v409, %v409
  %v413 = vlaneseq
  %v414 = vshrl.u32 %v413, 7
  %v415 = vsub.s32 0, %v414
  %v416 = vrot.slane %v169, %v415
  %v417 = vlaneseq
  %v418 = vshrl.u32 %v417, 7
  %v419 = vsub.s32 1, %v418
  %v420 = vrot.slane %v169, %v419
  %v421 = vlaneseq
  %v422 = vshrl.u32 %v421, 7
  %v423 = vsub.s32 2, %v422
  %v424 = vrot.slane %v169, %v423
  %v492 = vunpack.c.l.b16 %v57
  %v493 = vunpack.c.h.b16 %v57
  %v494 = vunpack.c.l.b16 %v58
  %v495 = vunpack.c.l.b16 %v59
  %v496 = vunpack.c.h.b16 %v59
  %v497 = vunpack.c.l.b16 %v60
  %v498 = vunpack.c.l.b16 %v61
  %v499 = vunpack.c.h.b16 %v61
  %v500 = vunpack.c.l.b16 %v62
  %v501 = vunpack.c.l.b16 %v63
  %v502 = vunpack.c.h.b16 %v63
  %v503 = vunpack.c.l.b16 %v64
  %v504 = vunpack.c.l.b16 %v65
  %v505 = vunpack.c.h.b16 %v65
  %v506 = vunpack.c.l.b16 %v66
  %v507 = vunpack.c.l.b16 %v67
  %v508 = vunpack.c.h.b16 %v67
  %v509 = vunpack.c.l.b16 %v68
  %v510 = vunpack.c.l.b16 %v69
  %v511 = vunpack.c.h.b16 %v69
  %v512 = vunpack.c.l.b16 %v70
  %v513 = vunpack.c.l.b16 %v71
  %v514 = vunpack.c.h.b16 %v71
  %v515 = vunpack.c.l.b16 %v72
  %v516 = vunpack.c.l.b16 %v73
  %v517 = vunpack.c.h.b16 %v73
  %v518 = vunpack.c.l.b16 %v74
  %v519 = vunpack.c.l.b16 %v75
  %v520 = vunpack.c.h.b16 %v75
  %v521 = vunpack.c.l.b16 %v76
  %v522 = vunpack.c.l.b16 %v77
  %v523 = vunpack.c.h.b16 %v77
  %v524 = vunpack.c.l.b16 %v78
  %v525 = vunpack.c.l.b16 %v79
  %v526 = vunpack.c.h.b16 %v79
  %v527 = vunpack.c.l.b16 %v80
  %v528 = vunpack.c.l.b16 %v81
  %v529 = vunpack.c.h.b16 %v81
  %v530 = vunpack.c.l.b16 %v82
  %v531 = vunpack.c.l.b16 %v83
  %v532 = vunpack.c.h.b16 %v83
  %v533 = vunpack.c.l.b16 %v84
  %v534 = vunpack.c.l.b16 %v85
  %v535 = vunpack.c.h.b16 %v85
  %v536 = vunpack.c.l.b16 %v86
  %v537 = vunpack.c.l.b16 %v87
  %v538 = vunpack.c.h.b16 %v87
  %v539 = vunpack.c.l.b16 %v88
  %v540 = vunpack.c.l.b16 %v89
  %v541 = vunpack.c.h.b16 %v89
  %v542 = vunpack.c.l.b16 %v90
  %v543 = vunpack.c.l.b16 %v91
  %v544 = vunpack.c.h.b16 %v91
  %v545 = vunpack.c.l.b16 %v92
  %v546 = vunpack.c.l.b16 %v93
  %v547 = vunpack.c.h.b16 %v93
  %v548 = vunpack.c.l.b16 %v94
  %v549 = vunpack.c.l.b16 %v95
  %v550 = vunpack.c.h.b16 %v95
  %v551 = vunpack.c.l.b16 %v96
  %v552 = vunpack.c.l.b16 %v97
  %v553 = vunpack.c.h.b16 %v97
  %v554 = vunpack.c.l.b16 %v98
  %v555 = vunpack.c.l.b16 %v99
  %v556 = vunpack.c.h.b16 %v99
  %v557 = vunpack.c.l.b16 %v100
  %v558 = vunpack.c.l.b16 %v101
  %v559 = vunpack.c.h.b16 %v101
  %v560 = vunpack.c.l.b16 %v102
  %v561 = vunpack.c.l.b16 %v103
  %v562 = vunpack.c.h.b16 %v103
  %v563 = vunpack.c.l.b16 %v104
  %v564 = vunpack.c.l.b16 %v105
  %v565 = vunpack.c.h.b16 %v105
  %v566 = vunpack.c.l.b16 %v106
  %v567 = vunpack.c.l.b16 %v107
  %v568 = vunpack.c.h.b16 %v107
  %v569 = vunpack.c.l.b16 %v108
  %v570 = vunpack.c.l.b16 %v109
  %v571 = vunpack.c.h.b16 %v109
  %v572 = vunpack.c.l.b16 %v110
  %v573 = vunpack.c.l.b16 %v111
  %v574 = vunpack.c.h.b16 %v111
  %v575 = vunpack.c.l.b16 %v112
  %v576 = vunpack.c.l.b16 %v113
  %v577 = vunpack.c.h.b16 %v113
  %v578 = vunpack.c.l.b16 %v114
  %v579 = vunpack.c.l.b16 %v115
  %v580 = vunpack.c.h.b16 %v115
  %v581 = vunpack.c.l.b16 %v116
  %v582 = vunpack.c.l.b16 %v117
  %v583 = vunpack.c.h.b16 %v117
  %v584 = vunpack.c.l.b16 %v118
  %v585 = vunpack.c.l.b16 %v119
  %v586 = vunpack.c.h.b16 %v119
  %v587 = vunpack.c.l.b16 %v120
  %v588 = vpack.c.b16 %v495, %v492
  %v589 = vpack.c.b16 %v496, %v493
  %v590 = vpack.c.b16 %v497, %v494
  %v591 = vpack.c.b16 %v501, %v498
  %v592 = vpack.c.b16 %v502, %v499
  %v593 = vpack.c.b16 %v503, %v500
  %v594 = vpack.c.b16 %v507, %v504
  %v595 = vpack.c.b16 %v508, %v505
  %v596 = vpack.c.b16 %v509, %v506
  %v597 = vpack.c.b16 %v513, %v510
  %v598 = vpack.c.b16 %v514, %v511
  %v599 = vpack.c.b16 %v515, %v512
  %v600 = vpack.c.b16 %v519, %v516
  %v601 = vpack.c.b16 %v520, %v517
  %v602 = vpack.c.b16 %v521, %v518
  %v603 = vpack.c.b16 %v525, %v522
  %v604 = vpack.c.b16 %v526, %v523
  %v605 = vpack.c.b16 %v527, %v524
  %v606 = vpack.c.b16 %v531, %v528
  %v607 = vpack.c.b16 %v532, %v529
  %v608 = vpack.c.b16 %v533, %v530
  %v609 = vpack.c.b16 %v537, %v534
  %v610 = vpack.c.b16 %v538, %v535
  %v611 = vpack.c.b16 %v539, %v536
  %v612 = vpack.c.b16 %v543, %v540
  %v613 = vpack.c.b16 %v544, %v541
  %v614 = vpack.c.b16 %v545, %v542
  %v615 = vpack.c.b16 %v549, %v546
  %v616 = vpack.c.b16 %v550, %v547
  %v617 = vpack.c.b16 %v551, %v548
  %v618 = vpack.c.b16 %v555, %v552
  %v619 = vpack.c.b16 %v556, %v553
  %v620 = vpack.c.b16 %v557, %v554
  %v621 = vpack.c.b16 %v561, %v558
  %v622 = vpack.c.b16 %v562, %v559
  %v623 = vpack.c.b16 %v563, %v560
  %v624 = vpack.c.b16 %v567, %v564
  %v625 = vpack.c.b16 %v568, %v565
  %v626 = vpack.c.b16 %v569, %v566
  %v627 = vpack.c.b16 %v573, %v570
  %v628 = vpack.c.b16 %v574, %v571
  %v629 = vpack.c.b16 %v575, %v572
  %v630 = vpack.c.b16 %v579, %v576
  %v631 = vpack.c.b16 %v580, %v577
  %v632 = vpack.c.b16 %v581, %v578
  %v633 = vpack.c.b16 %v585, %v582
  %v634 = vpack.c.b16 %v586, %v583
  %v635 = vpack.c.b16 %v587, %v584
  %684 = vmatprep.subr.bf16.mxu0 %v610
  %685 = vmatpush1.bf16.msra.mxu0 %v609
  %686 = vmatprep.subr.bf16.mxu0 %v607
  %687 = vmatpush1.bf16.msra.mxu0 %v606
  %688 = vmatprep.subr.bf16.mxu0 %v604
  %689 = vmatpush1.bf16.msra.mxu0 %v603
  %690 = vmatprep.subr.bf16.mxu0 %v601
  %691 = vmatpush1.bf16.msra.mxu0 %v600
  %692 = vmatprep.subr.bf16.mxu0 %v598
  %693 = vmatpush1.bf16.msra.mxu0 %v597
  %694 = vmatprep.subr.bf16.mxu0 %v595
  %695 = vmatpush1.bf16.msra.mxu0 %v594
  %696 = vmatprep.subr.bf16.mxu0 %v592
  %697 = vmatpush1.bf16.msra.mxu0 %v591
  %698 = vmatprep.subr.bf16.mxu0 %v589
  %699 = vmatpush1.bf16.msra.mxu0 %v588
  %700 = vmatprep.subr.bf16.mxu0 %v634
  %701 = vmatpush2.bf16.msra.mxu0 %v633
  %702 = vmatprep.subr.bf16.mxu0 %v631
  %703 = vmatpush2.bf16.msra.mxu0 %v630
  %704 = vmatprep.subr.bf16.mxu0 %v628
  %705 = vmatpush2.bf16.msra.mxu0 %v627
  %706 = vmatprep.subr.bf16.mxu0 %v625
  %707 = vmatpush2.bf16.msra.mxu0 %v624
  %708 = vmatprep.subr.bf16.mxu0 %v622
  %709 = vmatpush2.bf16.msra.mxu0 %v621
  %710 = vmatprep.subr.bf16.mxu0 %v619
  %711 = vmatpush2.bf16.msra.mxu0 %v618
  %712 = vmatprep.subr.bf16.mxu0 %v616
  %713 = vmatpush2.bf16.msra.mxu0 %v615
  %714 = vmatprep.subr.bf16.mxu0 %v613
  %715 = vmatpush2.bf16.msra.mxu0 %v612
  %716 = vmatprep.mubr.bf16.mxu0 %v410
  %717 = vmatmul.mubr.bf16.gmra.mxu0 %v371
  %v718 = vpop.f32.mrf.mxu0
  %v719 = vadd.f32 %v416, %v718
  %v720 = vpop.f32.mrf.mxu0
  %v721 = vadd.f32 %v420, %v720
  %v722 = vpop.f32.mrf.mxu0
  %v723 = vpop.f32.mrf.mxu0
  %724 = vdwg.mxu0
  %725 = vmatprep.subr.bf16.mxu0 0
  %726 = vmatpush1.bf16.msra.mxu0 %v611
  %727 = vmatprep.subr.bf16.mxu0 0
  %728 = vmatpush1.bf16.msra.mxu0 %v608
  %729 = vmatprep.subr.bf16.mxu0 0
  %730 = vmatpush1.bf16.msra.mxu0 %v605
  %731 = vmatprep.subr.bf16.mxu0 0
  %732 = vmatpush1.bf16.msra.mxu0 %v602
  %733 = vmatprep.subr.bf16.mxu0 0
  %734 = vmatpush1.bf16.msra.mxu0 %v599
  %735 = vmatprep.subr.bf16.mxu0 0
  %736 = vmatpush1.bf16.msra.mxu0 %v596
  %737 = vmatprep.subr.bf16.mxu0 0
  %738 = vmatpush1.bf16.msra.mxu0 %v593
  %739 = vmatprep.subr.bf16.mxu0 0
  %740 = vmatpush1.bf16.msra.mxu0 %v590
  %741 = vmatprep.subr.bf16.mxu0 0
  %742 = vmatpush2.bf16.msra.mxu0 %v635
  %743 = vmatprep.subr.bf16.mxu0 0
  %744 = vmatpush2.bf16.msra.mxu0 %v632
  %745 = vmatprep.subr.bf16.mxu0 0
  %746 = vmatpush2.bf16.msra.mxu0 %v629
  %747 = vmatprep.subr.bf16.mxu0 0
  %748 = vmatpush2.bf16.msra.mxu0 %v626
  %749 = vmatprep.subr.bf16.mxu0 0
  %750 = vmatpush2.bf16.msra.mxu0 %v623
  %751 = vmatprep.subr.bf16.mxu0 0
  %752 = vmatpush2.bf16.msra.mxu0 %v620
  %753 = vmatprep.subr.bf16.mxu0 0
  %754 = vmatpush2.bf16.msra.mxu0 %v617
  %755 = vmatprep.subr.bf16.mxu0 0
  %756 = vmatpush2.bf16.msra.mxu0 %v614
  %757 = vmatprep.mubr.bf16.mxu0 %v410
  %758 = vmatmul.mubr.bf16.gmra.mxu0 %v371
  %v759 = vpop.f32.mrf.mxu0
  %v760 = vadd.f32 %v424, %v759
  %v761 = vpop.f32.mrf.mxu0
  %v762 = vpop.f32.mrf.mxu0
  %v763 = vpop.f32.mrf.mxu0
  %764 = vdwg.mxu0
  %v765 = vpack.c.bf16 %v172, %v172
  %v767 = vlaneseq
  %v768 = vshrl.u32 %v767, 7
  %v769 = vsub.s32 0, %v768
  %v770 = vrot.slane %v170, %v769
  %v771 = vlaneseq
  %v772 = vshrl.u32 %v771, 7
  %v773 = vsub.s32 1, %v772
  %v774 = vrot.slane %v170, %v773
  %v775 = vlaneseq
  %v776 = vshrl.u32 %v775, 7
  %v777 = vsub.s32 2, %v776
  %v778 = vrot.slane %v170, %v777
  %v814 = vunpack.c.l.b16 %v121
  %v815 = vunpack.c.h.b16 %v121
  %v816 = vunpack.c.l.b16 %v122
  %v817 = vunpack.c.l.b16 %v123
  %v818 = vunpack.c.h.b16 %v123
  %v819 = vunpack.c.l.b16 %v124
  %v820 = vunpack.c.l.b16 %v125
  %v821 = vunpack.c.h.b16 %v125
  %v822 = vunpack.c.l.b16 %v126
  %v823 = vunpack.c.l.b16 %v127
  %v824 = vunpack.c.h.b16 %v127
  %v825 = vunpack.c.l.b16 %v128
  %v826 = vunpack.c.l.b16 %v129
  %v827 = vunpack.c.h.b16 %v129
  %v828 = vunpack.c.l.b16 %v130
  %v829 = vunpack.c.l.b16 %v131
  %v830 = vunpack.c.h.b16 %v131
  %v831 = vunpack.c.l.b16 %v132
  %v832 = vunpack.c.l.b16 %v133
  %v833 = vunpack.c.h.b16 %v133
  %v834 = vunpack.c.l.b16 %v134
  %v835 = vunpack.c.l.b16 %v135
  %v836 = vunpack.c.h.b16 %v135
  %v837 = vunpack.c.l.b16 %v136
  %v838 = vunpack.c.l.b16 %v137
  %v839 = vunpack.c.h.b16 %v137
  %v840 = vunpack.c.l.b16 %v138
  %v841 = vunpack.c.l.b16 %v139
  %v842 = vunpack.c.h.b16 %v139
  %v843 = vunpack.c.l.b16 %v140
  %v844 = vunpack.c.l.b16 %v141
  %v845 = vunpack.c.h.b16 %v141
  %v846 = vunpack.c.l.b16 %v142
  %v847 = vunpack.c.l.b16 %v143
  %v848 = vunpack.c.h.b16 %v143
  %v849 = vunpack.c.l.b16 %v144
  %v850 = vunpack.c.l.b16 %v145
  %v851 = vunpack.c.h.b16 %v145
  %v852 = vunpack.c.l.b16 %v146
  %v853 = vunpack.c.l.b16 %v147
  %v854 = vunpack.c.h.b16 %v147
  %v855 = vunpack.c.l.b16 %v148
  %v856 = vunpack.c.l.b16 %v149
  %v857 = vunpack.c.h.b16 %v149
  %v858 = vunpack.c.l.b16 %v150
  %v859 = vunpack.c.l.b16 %v151
  %v860 = vunpack.c.h.b16 %v151
  %v861 = vunpack.c.l.b16 %v152
  %v862 = vpack.c.b16 %v817, %v814
  %v863 = vpack.c.b16 %v818, %v815
  %v864 = vpack.c.b16 %v819, %v816
  %v865 = vpack.c.b16 %v823, %v820
  %v866 = vpack.c.b16 %v824, %v821
  %v867 = vpack.c.b16 %v825, %v822
  %v868 = vpack.c.b16 %v829, %v826
  %v869 = vpack.c.b16 %v830, %v827
  %v870 = vpack.c.b16 %v831, %v828
  %v871 = vpack.c.b16 %v835, %v832
  %v872 = vpack.c.b16 %v836, %v833
  %v873 = vpack.c.b16 %v837, %v834
  %v874 = vpack.c.b16 %v841, %v838
  %v875 = vpack.c.b16 %v842, %v839
  %v876 = vpack.c.b16 %v843, %v840
  %v877 = vpack.c.b16 %v847, %v844
  %v878 = vpack.c.b16 %v848, %v845
  %v879 = vpack.c.b16 %v849, %v846
  %v880 = vpack.c.b16 %v853, %v850
  %v881 = vpack.c.b16 %v854, %v851
  %v882 = vpack.c.b16 %v855, %v852
  %v883 = vpack.c.b16 %v859, %v856
  %v884 = vpack.c.b16 %v860, %v857
  %v885 = vpack.c.b16 %v861, %v858
  %910 = vmatprep.subr.bf16.mxu0 %v884
  %911 = vmatpush1.bf16.msra.mxu0 %v883
  %912 = vmatprep.subr.bf16.mxu0 %v881
  %913 = vmatpush1.bf16.msra.mxu0 %v880
  %914 = vmatprep.subr.bf16.mxu0 %v878
  %915 = vmatpush1.bf16.msra.mxu0 %v877
  %916 = vmatprep.subr.bf16.mxu0 %v875
  %917 = vmatpush1.bf16.msra.mxu0 %v874
  %918 = vmatprep.subr.bf16.mxu0 %v872
  %919 = vmatpush1.bf16.msra.mxu0 %v871
  %920 = vmatprep.subr.bf16.mxu0 %v869
  %921 = vmatpush1.bf16.msra.mxu0 %v868
  %922 = vmatprep.subr.bf16.mxu0 %v866
  %923 = vmatpush1.bf16.msra.mxu0 %v865
  %924 = vmatprep.subr.bf16.mxu0 %v863
  %925 = vmatpush1.bf16.msra.mxu0 %v862
  %926 = vmatprep.subr.bf16.mxu0 0
  %927 = vmatpush2.bf16.msra.mxu0 0
  %928 = vmatprep.subr.bf16.mxu0 0
  %929 = vmatpush2.bf16.msra.mxu0 0
  %930 = vmatprep.subr.bf16.mxu0 0
  %931 = vmatpush2.bf16.msra.mxu0 0
  %932 = vmatprep.subr.bf16.mxu0 0
  %933 = vmatpush2.bf16.msra.mxu0 0
  %934 = vmatprep.subr.bf16.mxu0 0
  %935 = vmatpush2.bf16.msra.mxu0 0
  %936 = vmatprep.subr.bf16.mxu0 0
  %937 = vmatpush2.bf16.msra.mxu0 0
  %938 = vmatprep.subr.bf16.mxu0 0
  %939 = vmatpush2.bf16.msra.mxu0 0
  %940 = vmatprep.subr.bf16.mxu0 0
  %941 = vmatpush2.bf16.msra.mxu0 0
  %942 = vmatprep.mubr.bf16.mxu0 0
  %943 = vmatmul.mubr.bf16.gmra.mxu0 %v765
  %v944 = vpop.f32.mrf.mxu0
  %v945 = vadd.f32 %v770, %v944
  %v946 = vpop.f32.mrf.mxu0
  %v947 = vadd.f32 %v774, %v946
  %v948 = vpop.f32.mrf.mxu0
  %v949 = vpop.f32.mrf.mxu0
  %950 = vdwg.mxu0
  %951 = vmatprep.subr.bf16.mxu0 0
  %952 = vmatpush1.bf16.msra.mxu0 %v885
  %953 = vmatprep.subr.bf16.mxu0 0
  %954 = vmatpush1.bf16.msra.mxu0 %v882
  %955 = vmatprep.subr.bf16.mxu0 0
  %956 = vmatpush1.bf16.msra.mxu0 %v879
  %957 = vmatprep.subr.bf16.mxu0 0
  %958 = vmatpush1.bf16.msra.mxu0 %v876
  %959 = vmatprep.subr.bf16.mxu0 0
  %960 = vmatpush1.bf16.msra.mxu0 %v873
  %961 = vmatprep.subr.bf16.mxu0 0
  %962 = vmatpush1.bf16.msra.mxu0 %v870
  %963 = vmatprep.subr.bf16.mxu0 0
  %964 = vmatpush1.bf16.msra.mxu0 %v867
  %965 = vmatprep.subr.bf16.mxu0 0
  %966 = vmatpush1.bf16.msra.mxu0 %v864
  %967 = vmatprep.subr.bf16.mxu0 0
  %968 = vmatpush2.bf16.msra.mxu0 0
  %969 = vmatprep.subr.bf16.mxu0 0
  %970 = vmatpush2.bf16.msra.mxu0 0
  %971 = vmatprep.subr.bf16.mxu0 0
  %972 = vmatpush2.bf16.msra.mxu0 0
  %973 = vmatprep.subr.bf16.mxu0 0
  %974 = vmatpush2.bf16.msra.mxu0 0
  %975 = vmatprep.subr.bf16.mxu0 0
  %976 = vmatpush2.bf16.msra.mxu0 0
  %977 = vmatprep.subr.bf16.mxu0 0
  %978 = vmatpush2.bf16.msra.mxu0 0
  %979 = vmatprep.subr.bf16.mxu0 0
  %980 = vmatpush2.bf16.msra.mxu0 0
  %981 = vmatprep.subr.bf16.mxu0 0
  %982 = vmatpush2.bf16.msra.mxu0 0
  %983 = vmatprep.mubr.bf16.mxu0 0
  %984 = vmatmul.mubr.bf16.gmra.mxu0 %v765
  %v985 = vpop.f32.mrf.mxu0
  %v986 = vadd.f32 %v778, %v985
  %v987 = vpop.f32.mrf.mxu0
  %v988 = vpop.f32.mrf.mxu0
  %v989 = vpop.f32.mrf.mxu0
  %990 = vdwg.mxu0
  %v991 = vadd.f32 %v719, %v945
  %v992 = vxor.u32 %v991, 2147483648
  %v993 = vmul.f32 %v992, 1.442695
  %v994 = vpow.pop %v993
  %v995 = vadd.f32 %v994, 1.0
  %v996 = vrcp.pop %v995
  %v997 = vmul.f32 1.0, %v996
  %v998 = vadd.f32 %v721, %v947
  %v999 = vxor.u32 %v998, 2147483648
  %v1000 = vmul.f32 %v999, 1.442695
  %v1001 = vpow.pop %v1000
  %v1002 = vadd.f32 %v1001, 1.0
  %v1003 = vrcp.pop %v1002
  %v1004 = vmul.f32 1.0, %v1003
  %v1005 = vmul.f32 %v997, %v986
  %v1006 = vadd.f32 %v760, %v1005
  %v1007 = vtanh.pop %v1006
  %v1008 = vsub.f32 1.0, %v1004
  %v1009 = vmul.f32 %v1008, %v1007
  %v1010 = vmul.f32 %v1004, %v172
  %v1011 = vadd.f32 %v1009, %v1010
  %v1012 = vpack.c.bf16 %v1011, %v1011
  %v1014 = vlaneseq
  %v1015 = vshrl.u32 %v1014, 7
  %v1016 = vsub.s32 0, %v1015
  %v1017 = vrot.slane %v171, %v1016
  %v1018 = vlaneseq
  %v1019 = vshrl.u32 %v1018, 7
  %v1020 = vsub.s32 1, %v1019
  %v1021 = vrot.slane %v171, %v1020
  %v1040 = vunpack.c.l.b16 %v153
  %v1041 = vunpack.c.h.b16 %v153
  %v1042 = vunpack.c.l.b16 %v154
  %v1043 = vunpack.c.h.b16 %v154
  %v1044 = vunpack.c.l.b16 %v155
  %v1045 = vunpack.c.h.b16 %v155
  %v1046 = vunpack.c.l.b16 %v156
  %v1047 = vunpack.c.h.b16 %v156
  %v1048 = vunpack.c.l.b16 %v157
  %v1049 = vunpack.c.h.b16 %v157
  %v1050 = vunpack.c.l.b16 %v158
  %v1051 = vunpack.c.h.b16 %v158
  %v1052 = vunpack.c.l.b16 %v159
  %v1053 = vunpack.c.h.b16 %v159
  %v1054 = vunpack.c.l.b16 %v160
  %v1055 = vunpack.c.h.b16 %v160
  %v1056 = vunpack.c.l.b16 %v161
  %v1057 = vunpack.c.h.b16 %v161
  %v1058 = vunpack.c.l.b16 %v162
  %v1059 = vunpack.c.h.b16 %v162
  %v1060 = vunpack.c.l.b16 %v163
  %v1061 = vunpack.c.h.b16 %v163
  %v1062 = vunpack.c.l.b16 %v164
  %v1063 = vunpack.c.h.b16 %v164
  %v1064 = vunpack.c.l.b16 %v165
  %v1065 = vunpack.c.h.b16 %v165
  %v1066 = vunpack.c.l.b16 %v166
  %v1067 = vunpack.c.h.b16 %v166
  %v1068 = vunpack.c.l.b16 %v167
  %v1069 = vunpack.c.h.b16 %v167
  %v1070 = vunpack.c.l.b16 %v168
  %v1071 = vunpack.c.h.b16 %v168
  %v1072 = vpack.c.b16 %v1042, %v1040
  %v1073 = vpack.c.b16 %v1043, %v1041
  %v1074 = vpack.c.b16 %v1046, %v1044
  %v1075 = vpack.c.b16 %v1047, %v1045
  %v1076 = vpack.c.b16 %v1050, %v1048
  %v1077 = vpack.c.b16 %v1051, %v1049
  %v1078 = vpack.c.b16 %v1054, %v1052
  %v1079 = vpack.c.b16 %v1055, %v1053
  %v1080 = vpack.c.b16 %v1058, %v1056
  %v1081 = vpack.c.b16 %v1059, %v1057
  %v1082 = vpack.c.b16 %v1062, %v1060
  %v1083 = vpack.c.b16 %v1063, %v1061
  %v1084 = vpack.c.b16 %v1066, %v1064
  %v1085 = vpack.c.b16 %v1067, %v1065
  %v1086 = vpack.c.b16 %v1070, %v1068
  %v1087 = vpack.c.b16 %v1071, %v1069
  %1104 = vmatprep.subr.bf16.mxu0 %v1087
  %1105 = vmatpush1.bf16.msra.mxu0 %v1086
  %1106 = vmatprep.subr.bf16.mxu0 %v1085
  %1107 = vmatpush1.bf16.msra.mxu0 %v1084
  %1108 = vmatprep.subr.bf16.mxu0 %v1083
  %1109 = vmatpush1.bf16.msra.mxu0 %v1082
  %1110 = vmatprep.subr.bf16.mxu0 %v1081
  %1111 = vmatpush1.bf16.msra.mxu0 %v1080
  %1112 = vmatprep.subr.bf16.mxu0 %v1079
  %1113 = vmatpush1.bf16.msra.mxu0 %v1078
  %1114 = vmatprep.subr.bf16.mxu0 %v1077
  %1115 = vmatpush1.bf16.msra.mxu0 %v1076
  %1116 = vmatprep.subr.bf16.mxu0 %v1075
  %1117 = vmatpush1.bf16.msra.mxu0 %v1074
  %1118 = vmatprep.subr.bf16.mxu0 %v1073
  %1119 = vmatpush1.bf16.msra.mxu0 %v1072
  %1120 = vmatprep.subr.bf16.mxu0 0
  %1121 = vmatpush2.bf16.msra.mxu0 0
  %1122 = vmatprep.subr.bf16.mxu0 0
  %1123 = vmatpush2.bf16.msra.mxu0 0
  %1124 = vmatprep.subr.bf16.mxu0 0
  %1125 = vmatpush2.bf16.msra.mxu0 0
  %1126 = vmatprep.subr.bf16.mxu0 0
  %1127 = vmatpush2.bf16.msra.mxu0 0
  %1128 = vmatprep.subr.bf16.mxu0 0
  %1129 = vmatpush2.bf16.msra.mxu0 0
  %1130 = vmatprep.subr.bf16.mxu0 0
  %1131 = vmatpush2.bf16.msra.mxu0 0
  %1132 = vmatprep.subr.bf16.mxu0 0
  %1133 = vmatpush2.bf16.msra.mxu0 0
  %1134 = vmatprep.subr.bf16.mxu0 0
  %1135 = vmatpush2.bf16.msra.mxu0 0
  %1136 = vmatprep.mubr.bf16.mxu0 0
  %1137 = vmatmul.mubr.bf16.gmra.mxu0 %v1012
  %v1138 = vpop.f32.mrf.mxu0
  %v1139 = vadd.f32 %v1017, %v1138
  %v1140 = vpop.f32.mrf.mxu0
  %v1141 = vadd.f32 %v1021, %v1140
  %v1142 = vpop.f32.mrf.mxu0
  %v1143 = vpop.f32.mrf.mxu0
  %1144 = vdwg.mxu0
  %1145 = vst [vmem:[%s11] sm:$0xff] %v1139
  %1146 = vst [vmem:[%s11 + $0x8] sm:$0xff] %v1141
  %v1147 = vmul.f32 %v1011, %v177
  %1148 = vadd.xlane.f32.xlu0 %v1147
  %v1149 = vpop.xlane.xlu0 %1148
  %v1150 = vadd.f32 %v55, %v1149
  %v1151 = vsel %vm183, %v1150, -inf
  %1152 = vmax.xlane.f32.xlu0 %v1151
  %v1153 = vpop.xlane.xlu0 %1152
  %v1154 = vsub.f32 %v1150, %v1153
  %v1155 = vmul.f32 %v1154, 1.442695
  %v1156 = vpow.pop %v1155
  %v1157 = vsel %vm183, %v1156, 0.0
  %1158 = vadd.xlane.f32.xlu0 %v1157
  %v1159 = vpop.xlane.xlu0 %1158
  %v1160 = vrcp.pop %v1159
  %v1161 = vmul.f32 %v1156, %v1160
  %v1162 = vlaneseq
  %v1163 = vshrl.u32 %v1162, 7
  %v1164 = vsub.s32 0, %v1163
  %v1165 = vrot.slane %v1161, %v1164
  %1167 = vbcast.lane.b32.xlu0 %v1165, 256
  %v1168 = vpop.permute.xlu0 %1167
  %s1170 = sor.u32 256, 8
  %1171 = vbcast.lane.b32.xlu0 %v1165, %s1170
  %v1172 = vpop.permute.xlu0 %1171
  %v1173 = vlaneseq
  %v1174 = vshrl.u32 %v1173, 7
  %v1175 = vsub.s32 1, %v1174
  %v1176 = vrot.slane %v1161, %v1175
  %1178 = vbcast.lane.b32.xlu0 %v1176, 256
  %v1179 = vpop.permute.xlu0 %1178
  %s1181 = sor.u32 256, 8
  %1182 = vbcast.lane.b32.xlu0 %v1176, %s1181
  %v1183 = vpop.permute.xlu0 %1182
  %v1184 = vlaneseq
  %v1185 = vshrl.u32 %v1184, 7
  %v1186 = vsub.s32 2, %v1185
  %v1187 = vrot.slane %v1161, %v1186
  %1189 = vbcast.lane.b32.xlu0 %v1187, 256
  %v1190 = vpop.permute.xlu0 %1189
  %s1192 = sor.u32 256, 8
  %1193 = vbcast.lane.b32.xlu0 %v1187, %s1192
  %v1194 = vpop.permute.xlu0 %1193
  %v1195 = vlaneseq
  %v1196 = vshrl.u32 %v1195, 7
  %v1197 = vsub.s32 3, %v1196
  %v1198 = vrot.slane %v1161, %v1197
  %1200 = vbcast.lane.b32.xlu0 %v1198, 256
  %v1201 = vpop.permute.xlu0 %1200
  %s1203 = sor.u32 256, 8
  %1204 = vbcast.lane.b32.xlu0 %v1198, %s1203
  %v1205 = vpop.permute.xlu0 %1204
  %v1206 = vlaneseq
  %v1207 = vshrl.u32 %v1206, 7
  %v1208 = vsub.s32 4, %v1207
  %v1209 = vrot.slane %v1161, %v1208
  %1211 = vbcast.lane.b32.xlu0 %v1209, 256
  %v1212 = vpop.permute.xlu0 %1211
  %s1214 = sor.u32 256, 8
  %1215 = vbcast.lane.b32.xlu0 %v1209, %s1214
  %v1216 = vpop.permute.xlu0 %1215
  %v1217 = vlaneseq
  %v1218 = vshrl.u32 %v1217, 7
  %v1219 = vsub.s32 5, %v1218
  %v1220 = vrot.slane %v1161, %v1219
  %1222 = vbcast.lane.b32.xlu0 %v1220, 256
  %v1223 = vpop.permute.xlu0 %1222
  %s1225 = sor.u32 256, 8
  %1226 = vbcast.lane.b32.xlu0 %v1220, %s1225
  %v1227 = vpop.permute.xlu0 %1226
  %v1228 = vlaneseq
  %v1229 = vshrl.u32 %v1228, 7
  %v1230 = vsub.s32 6, %v1229
  %v1231 = vrot.slane %v1161, %v1230
  %1233 = vbcast.lane.b32.xlu0 %v1231, 256
  %v1234 = vpop.permute.xlu0 %1233
  %s1236 = sor.u32 256, 8
  %1237 = vbcast.lane.b32.xlu0 %v1231, %s1236
  %v1238 = vpop.permute.xlu0 %1237
  %v1239 = vlaneseq
  %v1240 = vshrl.u32 %v1239, 7
  %v1241 = vsub.s32 7, %v1240
  %v1242 = vrot.slane %v1161, %v1241
  %1244 = vbcast.lane.b32.xlu0 %v1242, 256
  %v1245 = vpop.permute.xlu0 %1244
  %s1247 = sor.u32 256, 8
  %1248 = vbcast.lane.b32.xlu0 %v1242, %s1247
  %v1249 = vpop.permute.xlu0 %1248
  %v1250 = vmul.f32 %v1168, %v283
  %v1251 = vmul.f32 %v1172, %v284
  %v1252 = vmul.f32 %v1179, %v285
  %v1253 = vmul.f32 %v1183, %v286
  %v1254 = vmul.f32 %v1190, %v287
  %v1255 = vmul.f32 %v1194, %v288
  %v1256 = vmul.f32 %v1201, %v289
  %v1257 = vmul.f32 %v1205, %v290
  %v1258 = vmul.f32 %v1212, %v291
  %v1259 = vmul.f32 %v1216, %v292
  %v1260 = vmul.f32 %v1223, %v293
  %v1261 = vmul.f32 %v1227, %v294
  %v1262 = vmul.f32 %v1234, %v295
  %v1263 = vmul.f32 %v1238, %v296
  %v1264 = vmul.f32 %v1245, %v297
  %v1265 = vmul.f32 %v1249, %v298
  %v1266 = vadd.f32 %v1250, %v1251
  %v1267 = vrot.slane %v1266, 4
  %v1268 = vadd.f32 %v1266, %v1267
  %v1269 = vrot.slane %v1268, 2
  %v1270 = vadd.f32 %v1268, %v1269
  %v1271 = vrot.slane %v1270, 1
  %v1272 = vadd.f32 %v1270, %v1271
  %v1273 = vadd.f32 %v1252, %v1253
  %v1274 = vrot.slane %v1273, 4
  %v1275 = vadd.f32 %v1273, %v1274
  %v1276 = vrot.slane %v1275, 2
  %v1277 = vadd.f32 %v1275, %v1276
  %v1278 = vrot.slane %v1277, 1
  %v1279 = vadd.f32 %v1277, %v1278
  %v1280 = vadd.f32 %v1254, %v1255
  %v1281 = vrot.slane %v1280, 4
  %v1282 = vadd.f32 %v1280, %v1281
  %v1283 = vrot.slane %v1282, 2
  %v1284 = vadd.f32 %v1282, %v1283
  %v1285 = vrot.slane %v1284, 1
  %v1286 = vadd.f32 %v1284, %v1285
  %v1287 = vadd.f32 %v1256, %v1257
  %v1288 = vrot.slane %v1287, 4
  %v1289 = vadd.f32 %v1287, %v1288
  %v1290 = vrot.slane %v1289, 2
  %v1291 = vadd.f32 %v1289, %v1290
  %v1292 = vrot.slane %v1291, 1
  %v1293 = vadd.f32 %v1291, %v1292
  %v1294 = vadd.f32 %v1258, %v1259
  %v1295 = vrot.slane %v1294, 4
  %v1296 = vadd.f32 %v1294, %v1295
  %v1297 = vrot.slane %v1296, 2
  %v1298 = vadd.f32 %v1296, %v1297
  %v1299 = vrot.slane %v1298, 1
  %v1300 = vadd.f32 %v1298, %v1299
  %v1301 = vadd.f32 %v1260, %v1261
  %v1302 = vrot.slane %v1301, 4
  %v1303 = vadd.f32 %v1301, %v1302
  %v1304 = vrot.slane %v1303, 2
  %v1305 = vadd.f32 %v1303, %v1304
  %v1306 = vrot.slane %v1305, 1
  %v1307 = vadd.f32 %v1305, %v1306
  %v1308 = vadd.f32 %v1262, %v1263
  %v1309 = vrot.slane %v1308, 4
  %v1310 = vadd.f32 %v1308, %v1309
  %v1311 = vrot.slane %v1310, 2
  %v1312 = vadd.f32 %v1310, %v1311
  %v1313 = vrot.slane %v1312, 1
  %v1314 = vadd.f32 %v1312, %v1313
  %v1315 = vadd.f32 %v1264, %v1265
  %v1316 = vrot.slane %v1315, 4
  %v1317 = vadd.f32 %v1315, %v1316
  %v1318 = vrot.slane %v1317, 2
  %v1319 = vadd.f32 %v1317, %v1318
  %v1320 = vrot.slane %v1319, 1
  %v1321 = vadd.f32 %v1319, %v1320
  %s1322 = scalar_lea.vmem %s0, 4
  %v1323 = vld [vmem:[%s1322] sm:$0xf]
  %v1324 = vpack.c.bf16 %v1272, %v1272
  %v1325 = vpack.c.bf16 %v1279, %v1279
  %v1326 = vpack.c.bf16 %v1286, %v1286
  %v1327 = vpack.c.bf16 %v1293, %v1293
  %v1328 = vpack.c.bf16 %v1300, %v1300
  %v1329 = vpack.c.bf16 %v1307, %v1307
  %v1330 = vpack.c.bf16 %v1314, %v1314
  %v1331 = vpack.c.bf16 %v1321, %v1321
  %v1340 = vunpack.c.l.b16 %v1324
  %v1341 = vunpack.c.l.b16 %v1325
  %v1342 = vunpack.c.l.b16 %v1326
  %v1343 = vunpack.c.l.b16 %v1327
  %v1344 = vunpack.c.l.b16 %v1328
  %v1345 = vunpack.c.l.b16 %v1329
  %v1346 = vunpack.c.l.b16 %v1330
  %v1347 = vunpack.c.l.b16 %v1331
  %v1348 = vsel %vm396, %v1341, %v1340
  %v1349 = vsel %vm398, %v1342, %v1348
  %v1350 = vsel %vm400, %v1343, %v1349
  %v1351 = vsel %vm402, %v1344, %v1350
  %v1352 = vsel %vm404, %v1345, %v1351
  %v1353 = vsel %vm406, %v1346, %v1352
  %v1354 = vsel %vm408, %v1347, %v1353
  %v1355 = vpack.c.b16 %v1354, %v1354
  %1357 = vmatprep.subr.bf16.mxu0 %v610
  %1358 = vmatpush1.bf16.msra.mxu0 %v609
  %1359 = vmatprep.subr.bf16.mxu0 %v607
  %1360 = vmatpush1.bf16.msra.mxu0 %v606
  %1361 = vmatprep.subr.bf16.mxu0 %v604
  %1362 = vmatpush1.bf16.msra.mxu0 %v603
  %1363 = vmatprep.subr.bf16.mxu0 %v601
  %1364 = vmatpush1.bf16.msra.mxu0 %v600
  %1365 = vmatprep.subr.bf16.mxu0 %v598
  %1366 = vmatpush1.bf16.msra.mxu0 %v597
  %1367 = vmatprep.subr.bf16.mxu0 %v595
  %1368 = vmatpush1.bf16.msra.mxu0 %v594
  %1369 = vmatprep.subr.bf16.mxu0 %v592
  %1370 = vmatpush1.bf16.msra.mxu0 %v591
  %1371 = vmatprep.subr.bf16.mxu0 %v589
  %1372 = vmatpush1.bf16.msra.mxu0 %v588
  %1373 = vmatprep.subr.bf16.mxu0 %v634
  %1374 = vmatpush2.bf16.msra.mxu0 %v633
  %1375 = vmatprep.subr.bf16.mxu0 %v631
  %1376 = vmatpush2.bf16.msra.mxu0 %v630
  %1377 = vmatprep.subr.bf16.mxu0 %v628
  %1378 = vmatpush2.bf16.msra.mxu0 %v627
  %1379 = vmatprep.subr.bf16.mxu0 %v625
  %1380 = vmatpush2.bf16.msra.mxu0 %v624
  %1381 = vmatprep.subr.bf16.mxu0 %v622
  %1382 = vmatpush2.bf16.msra.mxu0 %v621
  %1383 = vmatprep.subr.bf16.mxu0 %v619
  %1384 = vmatpush2.bf16.msra.mxu0 %v618
  %1385 = vmatprep.subr.bf16.mxu0 %v616
  %1386 = vmatpush2.bf16.msra.mxu0 %v615
  %1387 = vmatprep.subr.bf16.mxu0 %v613
  %1388 = vmatpush2.bf16.msra.mxu0 %v612
  %1389 = vmatprep.mubr.bf16.mxu0 %v1355
  %1390 = vmatmul.mubr.bf16.gmra.mxu0 %v1323
  %v1391 = vpop.f32.mrf.mxu0
  %v1392 = vadd.f32 %v416, %v1391
  %v1393 = vpop.f32.mrf.mxu0
  %v1394 = vadd.f32 %v420, %v1393
  %v1395 = vpop.f32.mrf.mxu0
  %v1396 = vpop.f32.mrf.mxu0
  %1397 = vdwg.mxu0
  %1398 = vmatprep.subr.bf16.mxu0 0
  %1399 = vmatpush1.bf16.msra.mxu0 %v611
  %1400 = vmatprep.subr.bf16.mxu0 0
  %1401 = vmatpush1.bf16.msra.mxu0 %v608
  %1402 = vmatprep.subr.bf16.mxu0 0
  %1403 = vmatpush1.bf16.msra.mxu0 %v605
  %1404 = vmatprep.subr.bf16.mxu0 0
  %1405 = vmatpush1.bf16.msra.mxu0 %v602
  %1406 = vmatprep.subr.bf16.mxu0 0
  %1407 = vmatpush1.bf16.msra.mxu0 %v599
  %1408 = vmatprep.subr.bf16.mxu0 0
  %1409 = vmatpush1.bf16.msra.mxu0 %v596
  %1410 = vmatprep.subr.bf16.mxu0 0
  %1411 = vmatpush1.bf16.msra.mxu0 %v593
  %1412 = vmatprep.subr.bf16.mxu0 0
  %1413 = vmatpush1.bf16.msra.mxu0 %v590
  %1414 = vmatprep.subr.bf16.mxu0 0
  %1415 = vmatpush2.bf16.msra.mxu0 %v635
  %1416 = vmatprep.subr.bf16.mxu0 0
  %1417 = vmatpush2.bf16.msra.mxu0 %v632
  %1418 = vmatprep.subr.bf16.mxu0 0
  %1419 = vmatpush2.bf16.msra.mxu0 %v629
  %1420 = vmatprep.subr.bf16.mxu0 0
  %1421 = vmatpush2.bf16.msra.mxu0 %v626
  %1422 = vmatprep.subr.bf16.mxu0 0
  %1423 = vmatpush2.bf16.msra.mxu0 %v623
  %1424 = vmatprep.subr.bf16.mxu0 0
  %1425 = vmatpush2.bf16.msra.mxu0 %v620
  %1426 = vmatprep.subr.bf16.mxu0 0
  %1427 = vmatpush2.bf16.msra.mxu0 %v617
  %1428 = vmatprep.subr.bf16.mxu0 0
  %1429 = vmatpush2.bf16.msra.mxu0 %v614
  %1430 = vmatprep.mubr.bf16.mxu0 %v1355
  %1431 = vmatmul.mubr.bf16.gmra.mxu0 %v1323
  %v1432 = vpop.f32.mrf.mxu0
  %v1433 = vadd.f32 %v424, %v1432
  %v1434 = vpop.f32.mrf.mxu0
  %v1435 = vpop.f32.mrf.mxu0
  %v1436 = vpop.f32.mrf.mxu0
  %1437 = vdwg.mxu0
  %1438 = vmatprep.subr.bf16.mxu0 %v884
  %1439 = vmatpush1.bf16.msra.mxu0 %v883
  %1440 = vmatprep.subr.bf16.mxu0 %v881
  %1441 = vmatpush1.bf16.msra.mxu0 %v880
  %1442 = vmatprep.subr.bf16.mxu0 %v878
  %1443 = vmatpush1.bf16.msra.mxu0 %v877
  %1444 = vmatprep.subr.bf16.mxu0 %v875
  %1445 = vmatpush1.bf16.msra.mxu0 %v874
  %1446 = vmatprep.subr.bf16.mxu0 %v872
  %1447 = vmatpush1.bf16.msra.mxu0 %v871
  %1448 = vmatprep.subr.bf16.mxu0 %v869
  %1449 = vmatpush1.bf16.msra.mxu0 %v868
  %1450 = vmatprep.subr.bf16.mxu0 %v866
  %1451 = vmatpush1.bf16.msra.mxu0 %v865
  %1452 = vmatprep.subr.bf16.mxu0 %v863
  %1453 = vmatpush1.bf16.msra.mxu0 %v862
  %1454 = vmatprep.subr.bf16.mxu0 0
  %1455 = vmatpush2.bf16.msra.mxu0 0
  %1456 = vmatprep.subr.bf16.mxu0 0
  %1457 = vmatpush2.bf16.msra.mxu0 0
  %1458 = vmatprep.subr.bf16.mxu0 0
  %1459 = vmatpush2.bf16.msra.mxu0 0
  %1460 = vmatprep.subr.bf16.mxu0 0
  %1461 = vmatpush2.bf16.msra.mxu0 0
  %1462 = vmatprep.subr.bf16.mxu0 0
  %1463 = vmatpush2.bf16.msra.mxu0 0
  %1464 = vmatprep.subr.bf16.mxu0 0
  %1465 = vmatpush2.bf16.msra.mxu0 0
  %1466 = vmatprep.subr.bf16.mxu0 0
  %1467 = vmatpush2.bf16.msra.mxu0 0
  %1468 = vmatprep.subr.bf16.mxu0 0
  %1469 = vmatpush2.bf16.msra.mxu0 0
  %1470 = vmatprep.mubr.bf16.mxu0 0
  %1471 = vmatmul.mubr.bf16.gmra.mxu0 %v1012
  %v1472 = vpop.f32.mrf.mxu0
  %v1473 = vadd.f32 %v770, %v1472
  %v1474 = vpop.f32.mrf.mxu0
  %v1475 = vadd.f32 %v774, %v1474
  %v1476 = vpop.f32.mrf.mxu0
  %v1477 = vpop.f32.mrf.mxu0
  %1478 = vdwg.mxu0
  %1479 = vmatprep.subr.bf16.mxu0 0
  %1480 = vmatpush1.bf16.msra.mxu0 %v885
  %1481 = vmatprep.subr.bf16.mxu0 0
  %1482 = vmatpush1.bf16.msra.mxu0 %v882
  %1483 = vmatprep.subr.bf16.mxu0 0
  %1484 = vmatpush1.bf16.msra.mxu0 %v879
  %1485 = vmatprep.subr.bf16.mxu0 0
  %1486 = vmatpush1.bf16.msra.mxu0 %v876
  %1487 = vmatprep.subr.bf16.mxu0 0
  %1488 = vmatpush1.bf16.msra.mxu0 %v873
  %1489 = vmatprep.subr.bf16.mxu0 0
  %1490 = vmatpush1.bf16.msra.mxu0 %v870
  %1491 = vmatprep.subr.bf16.mxu0 0
  %1492 = vmatpush1.bf16.msra.mxu0 %v867
  %1493 = vmatprep.subr.bf16.mxu0 0
  %1494 = vmatpush1.bf16.msra.mxu0 %v864
  %1495 = vmatprep.subr.bf16.mxu0 0
  %1496 = vmatpush2.bf16.msra.mxu0 0
  %1497 = vmatprep.subr.bf16.mxu0 0
  %1498 = vmatpush2.bf16.msra.mxu0 0
  %1499 = vmatprep.subr.bf16.mxu0 0
  %1500 = vmatpush2.bf16.msra.mxu0 0
  %1501 = vmatprep.subr.bf16.mxu0 0
  %1502 = vmatpush2.bf16.msra.mxu0 0
  %1503 = vmatprep.subr.bf16.mxu0 0
  %1504 = vmatpush2.bf16.msra.mxu0 0
  %1505 = vmatprep.subr.bf16.mxu0 0
  %1506 = vmatpush2.bf16.msra.mxu0 0
  %1507 = vmatprep.subr.bf16.mxu0 0
  %1508 = vmatpush2.bf16.msra.mxu0 0
  %1509 = vmatprep.subr.bf16.mxu0 0
  %1510 = vmatpush2.bf16.msra.mxu0 0
  %1511 = vmatprep.mubr.bf16.mxu0 0
  %1512 = vmatmul.mubr.bf16.gmra.mxu0 %v1012
  %v1513 = vpop.f32.mrf.mxu0
  %v1514 = vadd.f32 %v778, %v1513
  %v1515 = vpop.f32.mrf.mxu0
  %v1516 = vpop.f32.mrf.mxu0
  %v1517 = vpop.f32.mrf.mxu0
  %1518 = vdwg.mxu0
  %v1519 = vadd.f32 %v1392, %v1473
  %v1520 = vxor.u32 %v1519, 2147483648
  %v1521 = vmul.f32 %v1520, 1.442695
  %v1522 = vpow.pop %v1521
  %v1523 = vadd.f32 %v1522, 1.0
  %v1524 = vrcp.pop %v1523
  %v1525 = vmul.f32 1.0, %v1524
  %v1526 = vadd.f32 %v1394, %v1475
  %v1527 = vxor.u32 %v1526, 2147483648
  %v1528 = vmul.f32 %v1527, 1.442695
  %v1529 = vpow.pop %v1528
  %v1530 = vadd.f32 %v1529, 1.0
  %v1531 = vrcp.pop %v1530
  %v1532 = vmul.f32 1.0, %v1531
  %v1533 = vmul.f32 %v1525, %v1514
  %v1534 = vadd.f32 %v1433, %v1533
  %v1535 = vtanh.pop %v1534
  %v1536 = vsub.f32 1.0, %v1532
  %v1537 = vmul.f32 %v1536, %v1535
  %v1538 = vmul.f32 %v1532, %v1011
  %v1539 = vadd.f32 %v1537, %v1538
  %v1540 = vpack.c.bf16 %v1539, %v1539
  %1541 = vmatprep.subr.bf16.mxu0 %v1087
  %1542 = vmatpush1.bf16.msra.mxu0 %v1086
  %1543 = vmatprep.subr.bf16.mxu0 %v1085
  %1544 = vmatpush1.bf16.msra.mxu0 %v1084
  %1545 = vmatprep.subr.bf16.mxu0 %v1083
  %1546 = vmatpush1.bf16.msra.mxu0 %v1082
  %1547 = vmatprep.subr.bf16.mxu0 %v1081
  %1548 = vmatpush1.bf16.msra.mxu0 %v1080
  %1549 = vmatprep.subr.bf16.mxu0 %v1079
  %1550 = vmatpush1.bf16.msra.mxu0 %v1078
  %1551 = vmatprep.subr.bf16.mxu0 %v1077
  %1552 = vmatpush1.bf16.msra.mxu0 %v1076
  %1553 = vmatprep.subr.bf16.mxu0 %v1075
  %1554 = vmatpush1.bf16.msra.mxu0 %v1074
  %1555 = vmatprep.subr.bf16.mxu0 %v1073
  %1556 = vmatpush1.bf16.msra.mxu0 %v1072
  %1557 = vmatprep.subr.bf16.mxu0 0
  %1558 = vmatpush2.bf16.msra.mxu0 0
  %1559 = vmatprep.subr.bf16.mxu0 0
  %1560 = vmatpush2.bf16.msra.mxu0 0
  %1561 = vmatprep.subr.bf16.mxu0 0
  %1562 = vmatpush2.bf16.msra.mxu0 0
  %1563 = vmatprep.subr.bf16.mxu0 0
  %1564 = vmatpush2.bf16.msra.mxu0 0
  %1565 = vmatprep.subr.bf16.mxu0 0
  %1566 = vmatpush2.bf16.msra.mxu0 0
  %1567 = vmatprep.subr.bf16.mxu0 0
  %1568 = vmatpush2.bf16.msra.mxu0 0
  %1569 = vmatprep.subr.bf16.mxu0 0
  %1570 = vmatpush2.bf16.msra.mxu0 0
  %1571 = vmatprep.subr.bf16.mxu0 0
  %1572 = vmatpush2.bf16.msra.mxu0 0
  %1573 = vmatprep.mubr.bf16.mxu0 0
  %1574 = vmatmul.mubr.bf16.gmra.mxu0 %v1540
  %v1575 = vpop.f32.mrf.mxu0
  %v1576 = vadd.f32 %v1017, %v1575
  %v1577 = vpop.f32.mrf.mxu0
  %v1578 = vadd.f32 %v1021, %v1577
  %v1579 = vpop.f32.mrf.mxu0
  %v1580 = vpop.f32.mrf.mxu0
  %1581 = vdwg.mxu0
  %s1582 = scalar_lea.vmem %s11, 16
  %1583 = vst [vmem:[%s1582] sm:$0xff] %v1576
  %1584 = vst [vmem:[%s1582 + $0x8] sm:$0xff] %v1578
  %v1585 = vmul.f32 %v1539, %v177
  %1586 = vadd.xlane.f32.xlu0 %v1585
  %v1587 = vpop.xlane.xlu0 %1586
  %v1588 = vadd.f32 %v55, %v1587
  %v1589 = vsel %vm183, %v1588, -inf
  %1590 = vmax.xlane.f32.xlu0 %v1589
  %v1591 = vpop.xlane.xlu0 %1590
  %v1592 = vsub.f32 %v1588, %v1591
  %v1593 = vmul.f32 %v1592, 1.442695
  %v1594 = vpow.pop %v1593
  %v1595 = vsel %vm183, %v1594, 0.0
  %1596 = vadd.xlane.f32.xlu0 %v1595
  %v1597 = vpop.xlane.xlu0 %1596
  %v1598 = vrcp.pop %v1597
  %v1599 = vmul.f32 %v1594, %v1598
  %v1600 = vlaneseq
  %v1601 = vshrl.u32 %v1600, 7
  %v1602 = vsub.s32 0, %v1601
  %v1603 = vrot.slane %v1599, %v1602
  %1605 = vbcast.lane.b32.xlu0 %v1603, 256
  %v1606 = vpop.permute.xlu0 %1605
  %s1608 = sor.u32 256, 8
  %1609 = vbcast.lane.b32.xlu0 %v1603, %s1608
  %v1610 = vpop.permute.xlu0 %1609
  %v1611 = vlaneseq
  %v1612 = vshrl.u32 %v1611, 7
  %v1613 = vsub.s32 1, %v1612
  %v1614 = vrot.slane %v1599, %v1613
  %1616 = vbcast.lane.b32.xlu0 %v1614, 256
  %v1617 = vpop.permute.xlu0 %1616
  %s1619 = sor.u32 256, 8
  %1620 = vbcast.lane.b32.xlu0 %v1614, %s1619
  %v1621 = vpop.permute.xlu0 %1620
  %v1622 = vlaneseq
  %v1623 = vshrl.u32 %v1622, 7
  %v1624 = vsub.s32 2, %v1623
  %v1625 = vrot.slane %v1599, %v1624
  %1627 = vbcast.lane.b32.xlu0 %v1625, 256
  %v1628 = vpop.permute.xlu0 %1627
  %s1630 = sor.u32 256, 8
  %1631 = vbcast.lane.b32.xlu0 %v1625, %s1630
  %v1632 = vpop.permute.xlu0 %1631
  %v1633 = vlaneseq
  %v1634 = vshrl.u32 %v1633, 7
  %v1635 = vsub.s32 3, %v1634
  %v1636 = vrot.slane %v1599, %v1635
  %1638 = vbcast.lane.b32.xlu0 %v1636, 256
  %v1639 = vpop.permute.xlu0 %1638
  %s1641 = sor.u32 256, 8
  %1642 = vbcast.lane.b32.xlu0 %v1636, %s1641
  %v1643 = vpop.permute.xlu0 %1642
  %v1644 = vlaneseq
  %v1645 = vshrl.u32 %v1644, 7
  %v1646 = vsub.s32 4, %v1645
  %v1647 = vrot.slane %v1599, %v1646
  %1649 = vbcast.lane.b32.xlu0 %v1647, 256
  %v1650 = vpop.permute.xlu0 %1649
  %s1652 = sor.u32 256, 8
  %1653 = vbcast.lane.b32.xlu0 %v1647, %s1652
  %v1654 = vpop.permute.xlu0 %1653
  %v1655 = vlaneseq
  %v1656 = vshrl.u32 %v1655, 7
  %v1657 = vsub.s32 5, %v1656
  %v1658 = vrot.slane %v1599, %v1657
  %1660 = vbcast.lane.b32.xlu0 %v1658, 256
  %v1661 = vpop.permute.xlu0 %1660
  %s1663 = sor.u32 256, 8
  %1664 = vbcast.lane.b32.xlu0 %v1658, %s1663
  %v1665 = vpop.permute.xlu0 %1664
  %v1666 = vlaneseq
  %v1667 = vshrl.u32 %v1666, 7
  %v1668 = vsub.s32 6, %v1667
  %v1669 = vrot.slane %v1599, %v1668
  %1671 = vbcast.lane.b32.xlu0 %v1669, 256
  %v1672 = vpop.permute.xlu0 %1671
  %s1674 = sor.u32 256, 8
  %1675 = vbcast.lane.b32.xlu0 %v1669, %s1674
  %v1676 = vpop.permute.xlu0 %1675
  %v1677 = vlaneseq
  %v1678 = vshrl.u32 %v1677, 7
  %v1679 = vsub.s32 7, %v1678
  %v1680 = vrot.slane %v1599, %v1679
  %1682 = vbcast.lane.b32.xlu0 %v1680, 256
  %v1683 = vpop.permute.xlu0 %1682
  %s1685 = sor.u32 256, 8
  %1686 = vbcast.lane.b32.xlu0 %v1680, %s1685
  %v1687 = vpop.permute.xlu0 %1686
  %v1688 = vmul.f32 %v1606, %v283
  %v1689 = vmul.f32 %v1610, %v284
  %v1690 = vmul.f32 %v1617, %v285
  %v1691 = vmul.f32 %v1621, %v286
  %v1692 = vmul.f32 %v1628, %v287
  %v1693 = vmul.f32 %v1632, %v288
  %v1694 = vmul.f32 %v1639, %v289
  %v1695 = vmul.f32 %v1643, %v290
  %v1696 = vmul.f32 %v1650, %v291
  %v1697 = vmul.f32 %v1654, %v292
  %v1698 = vmul.f32 %v1661, %v293
  %v1699 = vmul.f32 %v1665, %v294
  %v1700 = vmul.f32 %v1672, %v295
  %v1701 = vmul.f32 %v1676, %v296
  %v1702 = vmul.f32 %v1683, %v297
  %v1703 = vmul.f32 %v1687, %v298
  %v1704 = vadd.f32 %v1688, %v1689
  %v1705 = vrot.slane %v1704, 4
  %v1706 = vadd.f32 %v1704, %v1705
  %v1707 = vrot.slane %v1706, 2
  %v1708 = vadd.f32 %v1706, %v1707
  %v1709 = vrot.slane %v1708, 1
  %v1710 = vadd.f32 %v1708, %v1709
  %v1711 = vadd.f32 %v1690, %v1691
  %v1712 = vrot.slane %v1711, 4
  %v1713 = vadd.f32 %v1711, %v1712
  %v1714 = vrot.slane %v1713, 2
  %v1715 = vadd.f32 %v1713, %v1714
  %v1716 = vrot.slane %v1715, 1
  %v1717 = vadd.f32 %v1715, %v1716
  %v1718 = vadd.f32 %v1692, %v1693
  %v1719 = vrot.slane %v1718, 4
  %v1720 = vadd.f32 %v1718, %v1719
  %v1721 = vrot.slane %v1720, 2
  %v1722 = vadd.f32 %v1720, %v1721
  %v1723 = vrot.slane %v1722, 1
  %v1724 = vadd.f32 %v1722, %v1723
  %v1725 = vadd.f32 %v1694, %v1695
  %v1726 = vrot.slane %v1725, 4
  %v1727 = vadd.f32 %v1725, %v1726
  %v1728 = vrot.slane %v1727, 2
  %v1729 = vadd.f32 %v1727, %v1728
  %v1730 = vrot.slane %v1729, 1
  %v1731 = vadd.f32 %v1729, %v1730
  %v1732 = vadd.f32 %v1696, %v1697
  %v1733 = vrot.slane %v1732, 4
  %v1734 = vadd.f32 %v1732, %v1733
  %v1735 = vrot.slane %v1734, 2
  %v1736 = vadd.f32 %v1734, %v1735
  %v1737 = vrot.slane %v1736, 1
  %v1738 = vadd.f32 %v1736, %v1737
  %v1739 = vadd.f32 %v1698, %v1699
  %v1740 = vrot.slane %v1739, 4
  %v1741 = vadd.f32 %v1739, %v1740
  %v1742 = vrot.slane %v1741, 2
  %v1743 = vadd.f32 %v1741, %v1742
  %v1744 = vrot.slane %v1743, 1
  %v1745 = vadd.f32 %v1743, %v1744
  %v1746 = vadd.f32 %v1700, %v1701
  %v1747 = vrot.slane %v1746, 4
  %v1748 = vadd.f32 %v1746, %v1747
  %v1749 = vrot.slane %v1748, 2
  %v1750 = vadd.f32 %v1748, %v1749
  %v1751 = vrot.slane %v1750, 1
  %v1752 = vadd.f32 %v1750, %v1751
  %v1753 = vadd.f32 %v1702, %v1703
  %v1754 = vrot.slane %v1753, 4
  %v1755 = vadd.f32 %v1753, %v1754
  %v1756 = vrot.slane %v1755, 2
  %v1757 = vadd.f32 %v1755, %v1756
  %v1758 = vrot.slane %v1757, 1
  %v1759 = vadd.f32 %v1757, %v1758
  %s1760 = scalar_lea.vmem %s0, 8
  %v1761 = vld [vmem:[%s1760] sm:$0xf]
  %v1762 = vpack.c.bf16 %v1710, %v1710
  %v1763 = vpack.c.bf16 %v1717, %v1717
  %v1764 = vpack.c.bf16 %v1724, %v1724
  %v1765 = vpack.c.bf16 %v1731, %v1731
  %v1766 = vpack.c.bf16 %v1738, %v1738
  %v1767 = vpack.c.bf16 %v1745, %v1745
  %v1768 = vpack.c.bf16 %v1752, %v1752
  %v1769 = vpack.c.bf16 %v1759, %v1759
  %v1778 = vunpack.c.l.b16 %v1762
  %v1779 = vunpack.c.l.b16 %v1763
  %v1780 = vunpack.c.l.b16 %v1764
  %v1781 = vunpack.c.l.b16 %v1765
  %v1782 = vunpack.c.l.b16 %v1766
  %v1783 = vunpack.c.l.b16 %v1767
  %v1784 = vunpack.c.l.b16 %v1768
  %v1785 = vunpack.c.l.b16 %v1769
  %v1786 = vsel %vm396, %v1779, %v1778
  %v1787 = vsel %vm398, %v1780, %v1786
  %v1788 = vsel %vm400, %v1781, %v1787
  %v1789 = vsel %vm402, %v1782, %v1788
  %v1790 = vsel %vm404, %v1783, %v1789
  %v1791 = vsel %vm406, %v1784, %v1790
  %v1792 = vsel %vm408, %v1785, %v1791
  %v1793 = vpack.c.b16 %v1792, %v1792
  %1795 = vmatprep.subr.bf16.mxu0 %v610
  %1796 = vmatpush1.bf16.msra.mxu0 %v609
  %1797 = vmatprep.subr.bf16.mxu0 %v607
  %1798 = vmatpush1.bf16.msra.mxu0 %v606
  %1799 = vmatprep.subr.bf16.mxu0 %v604
  %1800 = vmatpush1.bf16.msra.mxu0 %v603
  %1801 = vmatprep.subr.bf16.mxu0 %v601
  %1802 = vmatpush1.bf16.msra.mxu0 %v600
  %1803 = vmatprep.subr.bf16.mxu0 %v598
  %1804 = vmatpush1.bf16.msra.mxu0 %v597
  %1805 = vmatprep.subr.bf16.mxu0 %v595
  %1806 = vmatpush1.bf16.msra.mxu0 %v594
  %1807 = vmatprep.subr.bf16.mxu0 %v592
  %1808 = vmatpush1.bf16.msra.mxu0 %v591
  %1809 = vmatprep.subr.bf16.mxu0 %v589
  %1810 = vmatpush1.bf16.msra.mxu0 %v588
  %1811 = vmatprep.subr.bf16.mxu0 %v634
  %1812 = vmatpush2.bf16.msra.mxu0 %v633
  %1813 = vmatprep.subr.bf16.mxu0 %v631
  %1814 = vmatpush2.bf16.msra.mxu0 %v630
  %1815 = vmatprep.subr.bf16.mxu0 %v628
  %1816 = vmatpush2.bf16.msra.mxu0 %v627
  %1817 = vmatprep.subr.bf16.mxu0 %v625
  %1818 = vmatpush2.bf16.msra.mxu0 %v624
  %1819 = vmatprep.subr.bf16.mxu0 %v622
  %1820 = vmatpush2.bf16.msra.mxu0 %v621
  %1821 = vmatprep.subr.bf16.mxu0 %v619
  %1822 = vmatpush2.bf16.msra.mxu0 %v618
  %1823 = vmatprep.subr.bf16.mxu0 %v616
  %1824 = vmatpush2.bf16.msra.mxu0 %v615
  %1825 = vmatprep.subr.bf16.mxu0 %v613
  %1826 = vmatpush2.bf16.msra.mxu0 %v612
  %1827 = vmatprep.mubr.bf16.mxu0 %v1793
  %1828 = vmatmul.mubr.bf16.gmra.mxu0 %v1761
  %v1829 = vpop.f32.mrf.mxu0
  %v1830 = vadd.f32 %v416, %v1829
  %v1831 = vpop.f32.mrf.mxu0
  %v1832 = vadd.f32 %v420, %v1831
  %v1833 = vpop.f32.mrf.mxu0
  %v1834 = vpop.f32.mrf.mxu0
  %1835 = vdwg.mxu0
  %1836 = vmatprep.subr.bf16.mxu0 0
  %1837 = vmatpush1.bf16.msra.mxu0 %v611
  %1838 = vmatprep.subr.bf16.mxu0 0
  %1839 = vmatpush1.bf16.msra.mxu0 %v608
  %1840 = vmatprep.subr.bf16.mxu0 0
  %1841 = vmatpush1.bf16.msra.mxu0 %v605
  %1842 = vmatprep.subr.bf16.mxu0 0
  %1843 = vmatpush1.bf16.msra.mxu0 %v602
  %1844 = vmatprep.subr.bf16.mxu0 0
  %1845 = vmatpush1.bf16.msra.mxu0 %v599
  %1846 = vmatprep.subr.bf16.mxu0 0
  %1847 = vmatpush1.bf16.msra.mxu0 %v596
  %1848 = vmatprep.subr.bf16.mxu0 0
  %1849 = vmatpush1.bf16.msra.mxu0 %v593
  %1850 = vmatprep.subr.bf16.mxu0 0
  %1851 = vmatpush1.bf16.msra.mxu0 %v590
  %1852 = vmatprep.subr.bf16.mxu0 0
  %1853 = vmatpush2.bf16.msra.mxu0 %v635
  %1854 = vmatprep.subr.bf16.mxu0 0
  %1855 = vmatpush2.bf16.msra.mxu0 %v632
  %1856 = vmatprep.subr.bf16.mxu0 0
  %1857 = vmatpush2.bf16.msra.mxu0 %v629
  %1858 = vmatprep.subr.bf16.mxu0 0
  %1859 = vmatpush2.bf16.msra.mxu0 %v626
  %1860 = vmatprep.subr.bf16.mxu0 0
  %1861 = vmatpush2.bf16.msra.mxu0 %v623
  %1862 = vmatprep.subr.bf16.mxu0 0
  %1863 = vmatpush2.bf16.msra.mxu0 %v620
  %1864 = vmatprep.subr.bf16.mxu0 0
  %1865 = vmatpush2.bf16.msra.mxu0 %v617
  %1866 = vmatprep.subr.bf16.mxu0 0
  %1867 = vmatpush2.bf16.msra.mxu0 %v614
  %1868 = vmatprep.mubr.bf16.mxu0 %v1793
  %1869 = vmatmul.mubr.bf16.gmra.mxu0 %v1761
  %v1870 = vpop.f32.mrf.mxu0
  %v1871 = vadd.f32 %v424, %v1870
  %v1872 = vpop.f32.mrf.mxu0
  %v1873 = vpop.f32.mrf.mxu0
  %v1874 = vpop.f32.mrf.mxu0
  %1875 = vdwg.mxu0
  %1876 = vmatprep.subr.bf16.mxu0 %v884
  %1877 = vmatpush1.bf16.msra.mxu0 %v883
  %1878 = vmatprep.subr.bf16.mxu0 %v881
  %1879 = vmatpush1.bf16.msra.mxu0 %v880
  %1880 = vmatprep.subr.bf16.mxu0 %v878
  %1881 = vmatpush1.bf16.msra.mxu0 %v877
  %1882 = vmatprep.subr.bf16.mxu0 %v875
  %1883 = vmatpush1.bf16.msra.mxu0 %v874
  %1884 = vmatprep.subr.bf16.mxu0 %v872
  %1885 = vmatpush1.bf16.msra.mxu0 %v871
  %1886 = vmatprep.subr.bf16.mxu0 %v869
  %1887 = vmatpush1.bf16.msra.mxu0 %v868
  %1888 = vmatprep.subr.bf16.mxu0 %v866
  %1889 = vmatpush1.bf16.msra.mxu0 %v865
  %1890 = vmatprep.subr.bf16.mxu0 %v863
  %1891 = vmatpush1.bf16.msra.mxu0 %v862
  %1892 = vmatprep.subr.bf16.mxu0 0
  %1893 = vmatpush2.bf16.msra.mxu0 0
  %1894 = vmatprep.subr.bf16.mxu0 0
  %1895 = vmatpush2.bf16.msra.mxu0 0
  %1896 = vmatprep.subr.bf16.mxu0 0
  %1897 = vmatpush2.bf16.msra.mxu0 0
  %1898 = vmatprep.subr.bf16.mxu0 0
  %1899 = vmatpush2.bf16.msra.mxu0 0
  %1900 = vmatprep.subr.bf16.mxu0 0
  %1901 = vmatpush2.bf16.msra.mxu0 0
  %1902 = vmatprep.subr.bf16.mxu0 0
  %1903 = vmatpush2.bf16.msra.mxu0 0
  %1904 = vmatprep.subr.bf16.mxu0 0
  %1905 = vmatpush2.bf16.msra.mxu0 0
  %1906 = vmatprep.subr.bf16.mxu0 0
  %1907 = vmatpush2.bf16.msra.mxu0 0
  %1908 = vmatprep.mubr.bf16.mxu0 0
  %1909 = vmatmul.mubr.bf16.gmra.mxu0 %v1540
  %v1910 = vpop.f32.mrf.mxu0
  %v1911 = vadd.f32 %v770, %v1910
  %v1912 = vpop.f32.mrf.mxu0
  %v1913 = vadd.f32 %v774, %v1912
  %v1914 = vpop.f32.mrf.mxu0
  %v1915 = vpop.f32.mrf.mxu0
  %1916 = vdwg.mxu0
  %1917 = vmatprep.subr.bf16.mxu0 0
  %1918 = vmatpush1.bf16.msra.mxu0 %v885
  %1919 = vmatprep.subr.bf16.mxu0 0
  %1920 = vmatpush1.bf16.msra.mxu0 %v882
  %1921 = vmatprep.subr.bf16.mxu0 0
  %1922 = vmatpush1.bf16.msra.mxu0 %v879
  %1923 = vmatprep.subr.bf16.mxu0 0
  %1924 = vmatpush1.bf16.msra.mxu0 %v876
  %1925 = vmatprep.subr.bf16.mxu0 0
  %1926 = vmatpush1.bf16.msra.mxu0 %v873
  %1927 = vmatprep.subr.bf16.mxu0 0
  %1928 = vmatpush1.bf16.msra.mxu0 %v870
  %1929 = vmatprep.subr.bf16.mxu0 0
  %1930 = vmatpush1.bf16.msra.mxu0 %v867
  %1931 = vmatprep.subr.bf16.mxu0 0
  %1932 = vmatpush1.bf16.msra.mxu0 %v864
  %1933 = vmatprep.subr.bf16.mxu0 0
  %1934 = vmatpush2.bf16.msra.mxu0 0
  %1935 = vmatprep.subr.bf16.mxu0 0
  %1936 = vmatpush2.bf16.msra.mxu0 0
  %1937 = vmatprep.subr.bf16.mxu0 0
  %1938 = vmatpush2.bf16.msra.mxu0 0
  %1939 = vmatprep.subr.bf16.mxu0 0
  %1940 = vmatpush2.bf16.msra.mxu0 0
  %1941 = vmatprep.subr.bf16.mxu0 0
  %1942 = vmatpush2.bf16.msra.mxu0 0
  %1943 = vmatprep.subr.bf16.mxu0 0
  %1944 = vmatpush2.bf16.msra.mxu0 0
  %1945 = vmatprep.subr.bf16.mxu0 0
  %1946 = vmatpush2.bf16.msra.mxu0 0
  %1947 = vmatprep.subr.bf16.mxu0 0
  %1948 = vmatpush2.bf16.msra.mxu0 0
  %1949 = vmatprep.mubr.bf16.mxu0 0
  %1950 = vmatmul.mubr.bf16.gmra.mxu0 %v1540
  %v1951 = vpop.f32.mrf.mxu0
  %v1952 = vadd.f32 %v778, %v1951
  %v1953 = vpop.f32.mrf.mxu0
  %v1954 = vpop.f32.mrf.mxu0
  %v1955 = vpop.f32.mrf.mxu0
  %1956 = vdwg.mxu0
  %v1957 = vadd.f32 %v1830, %v1911
  %v1958 = vxor.u32 %v1957, 2147483648
  %v1959 = vmul.f32 %v1958, 1.442695
  %v1960 = vpow.pop %v1959
  %v1961 = vadd.f32 %v1960, 1.0
  %v1962 = vrcp.pop %v1961
  %v1963 = vmul.f32 1.0, %v1962
  %v1964 = vadd.f32 %v1832, %v1913
  %v1965 = vxor.u32 %v1964, 2147483648
  %v1966 = vmul.f32 %v1965, 1.442695
  %v1967 = vpow.pop %v1966
  %v1968 = vadd.f32 %v1967, 1.0
  %v1969 = vrcp.pop %v1968
  %v1970 = vmul.f32 1.0, %v1969
  %v1971 = vmul.f32 %v1963, %v1952
  %v1972 = vadd.f32 %v1871, %v1971
  %v1973 = vtanh.pop %v1972
  %v1974 = vsub.f32 1.0, %v1970
  %v1975 = vmul.f32 %v1974, %v1973
  %v1976 = vmul.f32 %v1970, %v1539
  %v1977 = vadd.f32 %v1975, %v1976
  %v1978 = vpack.c.bf16 %v1977, %v1977
  %1979 = vmatprep.subr.bf16.mxu0 %v1087
  %1980 = vmatpush1.bf16.msra.mxu0 %v1086
  %1981 = vmatprep.subr.bf16.mxu0 %v1085
  %1982 = vmatpush1.bf16.msra.mxu0 %v1084
  %1983 = vmatprep.subr.bf16.mxu0 %v1083
  %1984 = vmatpush1.bf16.msra.mxu0 %v1082
  %1985 = vmatprep.subr.bf16.mxu0 %v1081
  %1986 = vmatpush1.bf16.msra.mxu0 %v1080
  %1987 = vmatprep.subr.bf16.mxu0 %v1079
  %1988 = vmatpush1.bf16.msra.mxu0 %v1078
  %1989 = vmatprep.subr.bf16.mxu0 %v1077
  %1990 = vmatpush1.bf16.msra.mxu0 %v1076
  %1991 = vmatprep.subr.bf16.mxu0 %v1075
  %1992 = vmatpush1.bf16.msra.mxu0 %v1074
  %1993 = vmatprep.subr.bf16.mxu0 %v1073
  %1994 = vmatpush1.bf16.msra.mxu0 %v1072
  %1995 = vmatprep.subr.bf16.mxu0 0
  %1996 = vmatpush2.bf16.msra.mxu0 0
  %1997 = vmatprep.subr.bf16.mxu0 0
  %1998 = vmatpush2.bf16.msra.mxu0 0
  %1999 = vmatprep.subr.bf16.mxu0 0
  %2000 = vmatpush2.bf16.msra.mxu0 0
  %2001 = vmatprep.subr.bf16.mxu0 0
  %2002 = vmatpush2.bf16.msra.mxu0 0
  %2003 = vmatprep.subr.bf16.mxu0 0
  %2004 = vmatpush2.bf16.msra.mxu0 0
  %2005 = vmatprep.subr.bf16.mxu0 0
  %2006 = vmatpush2.bf16.msra.mxu0 0
  %2007 = vmatprep.subr.bf16.mxu0 0
  %2008 = vmatpush2.bf16.msra.mxu0 0
  %2009 = vmatprep.subr.bf16.mxu0 0
  %2010 = vmatpush2.bf16.msra.mxu0 0
  %2011 = vmatprep.mubr.bf16.mxu0 0
  %2012 = vmatmul.mubr.bf16.gmra.mxu0 %v1978
  %v2013 = vpop.f32.mrf.mxu0
  %v2014 = vadd.f32 %v1017, %v2013
  %v2015 = vpop.f32.mrf.mxu0
  %v2016 = vadd.f32 %v1021, %v2015
  %v2017 = vpop.f32.mrf.mxu0
  %v2018 = vpop.f32.mrf.mxu0
  %2019 = vdwg.mxu0
  %s2020 = scalar_lea.vmem %s11, 32
  %2021 = vst [vmem:[%s2020] sm:$0xff] %v2014
  %2022 = vst [vmem:[%s2020 + $0x8] sm:$0xff] %v2016
  %v2023 = vmul.f32 %v1977, %v177
  %2024 = vadd.xlane.f32.xlu0 %v2023
  %v2025 = vpop.xlane.xlu0 %2024
  %v2026 = vadd.f32 %v55, %v2025
  %v2027 = vsel %vm183, %v2026, -inf
  %2028 = vmax.xlane.f32.xlu0 %v2027
  %v2029 = vpop.xlane.xlu0 %2028
  %v2030 = vsub.f32 %v2026, %v2029
  %v2031 = vmul.f32 %v2030, 1.442695
  %v2032 = vpow.pop %v2031
  %v2033 = vsel %vm183, %v2032, 0.0
  %2034 = vadd.xlane.f32.xlu0 %v2033
  %v2035 = vpop.xlane.xlu0 %2034
  %v2036 = vrcp.pop %v2035
  %v2037 = vmul.f32 %v2032, %v2036
  %v2038 = vlaneseq
  %v2039 = vshrl.u32 %v2038, 7
  %v2040 = vsub.s32 0, %v2039
  %v2041 = vrot.slane %v2037, %v2040
  %2043 = vbcast.lane.b32.xlu0 %v2041, 256
  %v2044 = vpop.permute.xlu0 %2043
  %s2046 = sor.u32 256, 8
  %2047 = vbcast.lane.b32.xlu0 %v2041, %s2046
  %v2048 = vpop.permute.xlu0 %2047
  %v2049 = vlaneseq
  %v2050 = vshrl.u32 %v2049, 7
  %v2051 = vsub.s32 1, %v2050
  %v2052 = vrot.slane %v2037, %v2051
  %2054 = vbcast.lane.b32.xlu0 %v2052, 256
  %v2055 = vpop.permute.xlu0 %2054
  %s2057 = sor.u32 256, 8
  %2058 = vbcast.lane.b32.xlu0 %v2052, %s2057
  %v2059 = vpop.permute.xlu0 %2058
  %v2060 = vlaneseq
  %v2061 = vshrl.u32 %v2060, 7
  %v2062 = vsub.s32 2, %v2061
  %v2063 = vrot.slane %v2037, %v2062
  %2065 = vbcast.lane.b32.xlu0 %v2063, 256
  %v2066 = vpop.permute.xlu0 %2065
  %s2068 = sor.u32 256, 8
  %2069 = vbcast.lane.b32.xlu0 %v2063, %s2068
  %v2070 = vpop.permute.xlu0 %2069
  %v2071 = vlaneseq
  %v2072 = vshrl.u32 %v2071, 7
  %v2073 = vsub.s32 3, %v2072
  %v2074 = vrot.slane %v2037, %v2073
  %2076 = vbcast.lane.b32.xlu0 %v2074, 256
  %v2077 = vpop.permute.xlu0 %2076
  %s2079 = sor.u32 256, 8
  %2080 = vbcast.lane.b32.xlu0 %v2074, %s2079
  %v2081 = vpop.permute.xlu0 %2080
  %v2082 = vlaneseq
  %v2083 = vshrl.u32 %v2082, 7
  %v2084 = vsub.s32 4, %v2083
  %v2085 = vrot.slane %v2037, %v2084
  %2087 = vbcast.lane.b32.xlu0 %v2085, 256
  %v2088 = vpop.permute.xlu0 %2087
  %s2090 = sor.u32 256, 8
  %2091 = vbcast.lane.b32.xlu0 %v2085, %s2090
  %v2092 = vpop.permute.xlu0 %2091
  %v2093 = vlaneseq
  %v2094 = vshrl.u32 %v2093, 7
  %v2095 = vsub.s32 5, %v2094
  %v2096 = vrot.slane %v2037, %v2095
  %2098 = vbcast.lane.b32.xlu0 %v2096, 256
  %v2099 = vpop.permute.xlu0 %2098
  %s2101 = sor.u32 256, 8
  %2102 = vbcast.lane.b32.xlu0 %v2096, %s2101
  %v2103 = vpop.permute.xlu0 %2102
  %v2104 = vlaneseq
  %v2105 = vshrl.u32 %v2104, 7
  %v2106 = vsub.s32 6, %v2105
  %v2107 = vrot.slane %v2037, %v2106
  %2109 = vbcast.lane.b32.xlu0 %v2107, 256
  %v2110 = vpop.permute.xlu0 %2109
  %s2112 = sor.u32 256, 8
  %2113 = vbcast.lane.b32.xlu0 %v2107, %s2112
  %v2114 = vpop.permute.xlu0 %2113
  %v2115 = vlaneseq
  %v2116 = vshrl.u32 %v2115, 7
  %v2117 = vsub.s32 7, %v2116
  %v2118 = vrot.slane %v2037, %v2117
  %2120 = vbcast.lane.b32.xlu0 %v2118, 256
  %v2121 = vpop.permute.xlu0 %2120
  %s2123 = sor.u32 256, 8
  %2124 = vbcast.lane.b32.xlu0 %v2118, %s2123
  %v2125 = vpop.permute.xlu0 %2124
  %v2126 = vmul.f32 %v2044, %v283
  %v2127 = vmul.f32 %v2048, %v284
  %v2128 = vmul.f32 %v2055, %v285
  %v2129 = vmul.f32 %v2059, %v286
  %v2130 = vmul.f32 %v2066, %v287
  %v2131 = vmul.f32 %v2070, %v288
  %v2132 = vmul.f32 %v2077, %v289
  %v2133 = vmul.f32 %v2081, %v290
  %v2134 = vmul.f32 %v2088, %v291
  %v2135 = vmul.f32 %v2092, %v292
  %v2136 = vmul.f32 %v2099, %v293
  %v2137 = vmul.f32 %v2103, %v294
  %v2138 = vmul.f32 %v2110, %v295
  %v2139 = vmul.f32 %v2114, %v296
  %v2140 = vmul.f32 %v2121, %v297
  %v2141 = vmul.f32 %v2125, %v298
  %v2142 = vadd.f32 %v2126, %v2127
  %v2143 = vrot.slane %v2142, 4
  %v2144 = vadd.f32 %v2142, %v2143
  %v2145 = vrot.slane %v2144, 2
  %v2146 = vadd.f32 %v2144, %v2145
  %v2147 = vrot.slane %v2146, 1
  %v2148 = vadd.f32 %v2146, %v2147
  %v2149 = vadd.f32 %v2128, %v2129
  %v2150 = vrot.slane %v2149, 4
  %v2151 = vadd.f32 %v2149, %v2150
  %v2152 = vrot.slane %v2151, 2
  %v2153 = vadd.f32 %v2151, %v2152
  %v2154 = vrot.slane %v2153, 1
  %v2155 = vadd.f32 %v2153, %v2154
  %v2156 = vadd.f32 %v2130, %v2131
  %v2157 = vrot.slane %v2156, 4
  %v2158 = vadd.f32 %v2156, %v2157
  %v2159 = vrot.slane %v2158, 2
  %v2160 = vadd.f32 %v2158, %v2159
  %v2161 = vrot.slane %v2160, 1
  %v2162 = vadd.f32 %v2160, %v2161
  %v2163 = vadd.f32 %v2132, %v2133
  %v2164 = vrot.slane %v2163, 4
  %v2165 = vadd.f32 %v2163, %v2164
  %v2166 = vrot.slane %v2165, 2
  %v2167 = vadd.f32 %v2165, %v2166
  %v2168 = vrot.slane %v2167, 1
  %v2169 = vadd.f32 %v2167, %v2168
  %v2170 = vadd.f32 %v2134, %v2135
  %v2171 = vrot.slane %v2170, 4
  %v2172 = vadd.f32 %v2170, %v2171
  %v2173 = vrot.slane %v2172, 2
  %v2174 = vadd.f32 %v2172, %v2173
  %v2175 = vrot.slane %v2174, 1
  %v2176 = vadd.f32 %v2174, %v2175
  %v2177 = vadd.f32 %v2136, %v2137
  %v2178 = vrot.slane %v2177, 4
  %v2179 = vadd.f32 %v2177, %v2178
  %v2180 = vrot.slane %v2179, 2
  %v2181 = vadd.f32 %v2179, %v2180
  %v2182 = vrot.slane %v2181, 1
  %v2183 = vadd.f32 %v2181, %v2182
  %v2184 = vadd.f32 %v2138, %v2139
  %v2185 = vrot.slane %v2184, 4
  %v2186 = vadd.f32 %v2184, %v2185
  %v2187 = vrot.slane %v2186, 2
  %v2188 = vadd.f32 %v2186, %v2187
  %v2189 = vrot.slane %v2188, 1
  %v2190 = vadd.f32 %v2188, %v2189
  %v2191 = vadd.f32 %v2140, %v2141
  %v2192 = vrot.slane %v2191, 4
  %v2193 = vadd.f32 %v2191, %v2192
  %v2194 = vrot.slane %v2193, 2
  %v2195 = vadd.f32 %v2193, %v2194
  %v2196 = vrot.slane %v2195, 1
  %v2197 = vadd.f32 %v2195, %v2196
  %s2198 = scalar_lea.vmem %s0, 12
  %v2199 = vld [vmem:[%s2198] sm:$0xf]
  %v2200 = vpack.c.bf16 %v2148, %v2148
  %v2201 = vpack.c.bf16 %v2155, %v2155
  %v2202 = vpack.c.bf16 %v2162, %v2162
  %v2203 = vpack.c.bf16 %v2169, %v2169
  %v2204 = vpack.c.bf16 %v2176, %v2176
  %v2205 = vpack.c.bf16 %v2183, %v2183
  %v2206 = vpack.c.bf16 %v2190, %v2190
  %v2207 = vpack.c.bf16 %v2197, %v2197
  %v2216 = vunpack.c.l.b16 %v2200
  %v2217 = vunpack.c.l.b16 %v2201
  %v2218 = vunpack.c.l.b16 %v2202
  %v2219 = vunpack.c.l.b16 %v2203
  %v2220 = vunpack.c.l.b16 %v2204
  %v2221 = vunpack.c.l.b16 %v2205
  %v2222 = vunpack.c.l.b16 %v2206
  %v2223 = vunpack.c.l.b16 %v2207
  %v2224 = vsel %vm396, %v2217, %v2216
  %v2225 = vsel %vm398, %v2218, %v2224
  %v2226 = vsel %vm400, %v2219, %v2225
  %v2227 = vsel %vm402, %v2220, %v2226
  %v2228 = vsel %vm404, %v2221, %v2227
  %v2229 = vsel %vm406, %v2222, %v2228
  %v2230 = vsel %vm408, %v2223, %v2229
  %v2231 = vpack.c.b16 %v2230, %v2230
  %2233 = vmatprep.subr.bf16.mxu0 %v610
  %2234 = vmatpush1.bf16.msra.mxu0 %v609
  %2235 = vmatprep.subr.bf16.mxu0 %v607
  %2236 = vmatpush1.bf16.msra.mxu0 %v606
  %2237 = vmatprep.subr.bf16.mxu0 %v604
  %2238 = vmatpush1.bf16.msra.mxu0 %v603
  %2239 = vmatprep.subr.bf16.mxu0 %v601
  %2240 = vmatpush1.bf16.msra.mxu0 %v600
  %2241 = vmatprep.subr.bf16.mxu0 %v598
  %2242 = vmatpush1.bf16.msra.mxu0 %v597
  %2243 = vmatprep.subr.bf16.mxu0 %v595
  %2244 = vmatpush1.bf16.msra.mxu0 %v594
  %2245 = vmatprep.subr.bf16.mxu0 %v592
  %2246 = vmatpush1.bf16.msra.mxu0 %v591
  %2247 = vmatprep.subr.bf16.mxu0 %v589
  %2248 = vmatpush1.bf16.msra.mxu0 %v588
  %2249 = vmatprep.subr.bf16.mxu0 %v634
  %2250 = vmatpush2.bf16.msra.mxu0 %v633
  %2251 = vmatprep.subr.bf16.mxu0 %v631
  %2252 = vmatpush2.bf16.msra.mxu0 %v630
  %2253 = vmatprep.subr.bf16.mxu0 %v628
  %2254 = vmatpush2.bf16.msra.mxu0 %v627
  %2255 = vmatprep.subr.bf16.mxu0 %v625
  %2256 = vmatpush2.bf16.msra.mxu0 %v624
  %2257 = vmatprep.subr.bf16.mxu0 %v622
  %2258 = vmatpush2.bf16.msra.mxu0 %v621
  %2259 = vmatprep.subr.bf16.mxu0 %v619
  %2260 = vmatpush2.bf16.msra.mxu0 %v618
  %2261 = vmatprep.subr.bf16.mxu0 %v616
  %2262 = vmatpush2.bf16.msra.mxu0 %v615
  %2263 = vmatprep.subr.bf16.mxu0 %v613
  %2264 = vmatpush2.bf16.msra.mxu0 %v612
  %2265 = vmatprep.mubr.bf16.mxu0 %v2231
  %2266 = vmatmul.mubr.bf16.gmra.mxu0 %v2199
  %v2267 = vpop.f32.mrf.mxu0
  %v2268 = vadd.f32 %v416, %v2267
  %v2269 = vpop.f32.mrf.mxu0
  %v2270 = vadd.f32 %v420, %v2269
  %v2271 = vpop.f32.mrf.mxu0
  %v2272 = vpop.f32.mrf.mxu0
  %2273 = vdwg.mxu0
  %2274 = vmatprep.subr.bf16.mxu0 0
  %2275 = vmatpush1.bf16.msra.mxu0 %v611
  %2276 = vmatprep.subr.bf16.mxu0 0
  %2277 = vmatpush1.bf16.msra.mxu0 %v608
  %2278 = vmatprep.subr.bf16.mxu0 0
  %2279 = vmatpush1.bf16.msra.mxu0 %v605
  %2280 = vmatprep.subr.bf16.mxu0 0
  %2281 = vmatpush1.bf16.msra.mxu0 %v602
  %2282 = vmatprep.subr.bf16.mxu0 0
  %2283 = vmatpush1.bf16.msra.mxu0 %v599
  %2284 = vmatprep.subr.bf16.mxu0 0
  %2285 = vmatpush1.bf16.msra.mxu0 %v596
  %2286 = vmatprep.subr.bf16.mxu0 0
  %2287 = vmatpush1.bf16.msra.mxu0 %v593
  %2288 = vmatprep.subr.bf16.mxu0 0
  %2289 = vmatpush1.bf16.msra.mxu0 %v590
  %2290 = vmatprep.subr.bf16.mxu0 0
  %2291 = vmatpush2.bf16.msra.mxu0 %v635
  %2292 = vmatprep.subr.bf16.mxu0 0
  %2293 = vmatpush2.bf16.msra.mxu0 %v632
  %2294 = vmatprep.subr.bf16.mxu0 0
  %2295 = vmatpush2.bf16.msra.mxu0 %v629
  %2296 = vmatprep.subr.bf16.mxu0 0
  %2297 = vmatpush2.bf16.msra.mxu0 %v626
  %2298 = vmatprep.subr.bf16.mxu0 0
  %2299 = vmatpush2.bf16.msra.mxu0 %v623
  %2300 = vmatprep.subr.bf16.mxu0 0
  %2301 = vmatpush2.bf16.msra.mxu0 %v620
  %2302 = vmatprep.subr.bf16.mxu0 0
  %2303 = vmatpush2.bf16.msra.mxu0 %v617
  %2304 = vmatprep.subr.bf16.mxu0 0
  %2305 = vmatpush2.bf16.msra.mxu0 %v614
  %2306 = vmatprep.mubr.bf16.mxu0 %v2231
  %2307 = vmatmul.mubr.bf16.gmra.mxu0 %v2199
  %v2308 = vpop.f32.mrf.mxu0
  %v2309 = vadd.f32 %v424, %v2308
  %v2310 = vpop.f32.mrf.mxu0
  %v2311 = vpop.f32.mrf.mxu0
  %v2312 = vpop.f32.mrf.mxu0
  %2313 = vdwg.mxu0
  %2314 = vmatprep.subr.bf16.mxu0 %v884
  %2315 = vmatpush1.bf16.msra.mxu0 %v883
  %2316 = vmatprep.subr.bf16.mxu0 %v881
  %2317 = vmatpush1.bf16.msra.mxu0 %v880
  %2318 = vmatprep.subr.bf16.mxu0 %v878
  %2319 = vmatpush1.bf16.msra.mxu0 %v877
  %2320 = vmatprep.subr.bf16.mxu0 %v875
  %2321 = vmatpush1.bf16.msra.mxu0 %v874
  %2322 = vmatprep.subr.bf16.mxu0 %v872
  %2323 = vmatpush1.bf16.msra.mxu0 %v871
  %2324 = vmatprep.subr.bf16.mxu0 %v869
  %2325 = vmatpush1.bf16.msra.mxu0 %v868
  %2326 = vmatprep.subr.bf16.mxu0 %v866
  %2327 = vmatpush1.bf16.msra.mxu0 %v865
  %2328 = vmatprep.subr.bf16.mxu0 %v863
  %2329 = vmatpush1.bf16.msra.mxu0 %v862
  %2330 = vmatprep.subr.bf16.mxu0 0
  %2331 = vmatpush2.bf16.msra.mxu0 0
  %2332 = vmatprep.subr.bf16.mxu0 0
  %2333 = vmatpush2.bf16.msra.mxu0 0
  %2334 = vmatprep.subr.bf16.mxu0 0
  %2335 = vmatpush2.bf16.msra.mxu0 0
  %2336 = vmatprep.subr.bf16.mxu0 0
  %2337 = vmatpush2.bf16.msra.mxu0 0
  %2338 = vmatprep.subr.bf16.mxu0 0
  %2339 = vmatpush2.bf16.msra.mxu0 0
  %2340 = vmatprep.subr.bf16.mxu0 0
  %2341 = vmatpush2.bf16.msra.mxu0 0
  %2342 = vmatprep.subr.bf16.mxu0 0
  %2343 = vmatpush2.bf16.msra.mxu0 0
  %2344 = vmatprep.subr.bf16.mxu0 0
  %2345 = vmatpush2.bf16.msra.mxu0 0
  %2346 = vmatprep.mubr.bf16.mxu0 0
  %2347 = vmatmul.mubr.bf16.gmra.mxu0 %v1978
  %v2348 = vpop.f32.mrf.mxu0
  %v2349 = vadd.f32 %v770, %v2348
  %v2350 = vpop.f32.mrf.mxu0
  %v2351 = vadd.f32 %v774, %v2350
  %v2352 = vpop.f32.mrf.mxu0
  %v2353 = vpop.f32.mrf.mxu0
  %2354 = vdwg.mxu0
  %2355 = vmatprep.subr.bf16.mxu0 0
  %2356 = vmatpush1.bf16.msra.mxu0 %v885
  %2357 = vmatprep.subr.bf16.mxu0 0
  %2358 = vmatpush1.bf16.msra.mxu0 %v882
  %2359 = vmatprep.subr.bf16.mxu0 0
  %2360 = vmatpush1.bf16.msra.mxu0 %v879
  %2361 = vmatprep.subr.bf16.mxu0 0
  %2362 = vmatpush1.bf16.msra.mxu0 %v876
  %2363 = vmatprep.subr.bf16.mxu0 0
  %2364 = vmatpush1.bf16.msra.mxu0 %v873
  %2365 = vmatprep.subr.bf16.mxu0 0
  %2366 = vmatpush1.bf16.msra.mxu0 %v870
  %2367 = vmatprep.subr.bf16.mxu0 0
  %2368 = vmatpush1.bf16.msra.mxu0 %v867
  %2369 = vmatprep.subr.bf16.mxu0 0
  %2370 = vmatpush1.bf16.msra.mxu0 %v864
  %2371 = vmatprep.subr.bf16.mxu0 0
  %2372 = vmatpush2.bf16.msra.mxu0 0
  %2373 = vmatprep.subr.bf16.mxu0 0
  %2374 = vmatpush2.bf16.msra.mxu0 0
  %2375 = vmatprep.subr.bf16.mxu0 0
  %2376 = vmatpush2.bf16.msra.mxu0 0
  %2377 = vmatprep.subr.bf16.mxu0 0
  %2378 = vmatpush2.bf16.msra.mxu0 0
  %2379 = vmatprep.subr.bf16.mxu0 0
  %2380 = vmatpush2.bf16.msra.mxu0 0
  %2381 = vmatprep.subr.bf16.mxu0 0
  %2382 = vmatpush2.bf16.msra.mxu0 0
  %2383 = vmatprep.subr.bf16.mxu0 0
  %2384 = vmatpush2.bf16.msra.mxu0 0
  %2385 = vmatprep.subr.bf16.mxu0 0
  %2386 = vmatpush2.bf16.msra.mxu0 0
  %2387 = vmatprep.mubr.bf16.mxu0 0
  %2388 = vmatmul.mubr.bf16.gmra.mxu0 %v1978
  %v2389 = vpop.f32.mrf.mxu0
  %v2390 = vadd.f32 %v778, %v2389
  %v2391 = vpop.f32.mrf.mxu0
  %v2392 = vpop.f32.mrf.mxu0
  %v2393 = vpop.f32.mrf.mxu0
  %2394 = vdwg.mxu0
  %v2395 = vadd.f32 %v2268, %v2349
  %v2396 = vxor.u32 %v2395, 2147483648
  %v2397 = vmul.f32 %v2396, 1.442695
  %v2398 = vpow.pop %v2397
  %v2399 = vadd.f32 %v2398, 1.0
  %v2400 = vrcp.pop %v2399
  %v2401 = vmul.f32 1.0, %v2400
  %v2402 = vadd.f32 %v2270, %v2351
  %v2403 = vxor.u32 %v2402, 2147483648
  %v2404 = vmul.f32 %v2403, 1.442695
  %v2405 = vpow.pop %v2404
  %v2406 = vadd.f32 %v2405, 1.0
  %v2407 = vrcp.pop %v2406
  %v2408 = vmul.f32 1.0, %v2407
  %v2409 = vmul.f32 %v2401, %v2390
  %v2410 = vadd.f32 %v2309, %v2409
  %v2411 = vtanh.pop %v2410
  %v2412 = vsub.f32 1.0, %v2408
  %v2413 = vmul.f32 %v2412, %v2411
  %v2414 = vmul.f32 %v2408, %v1977
  %v2415 = vadd.f32 %v2413, %v2414
  %v2416 = vpack.c.bf16 %v2415, %v2415
  %2417 = vmatprep.subr.bf16.mxu0 %v1087
  %2418 = vmatpush1.bf16.msra.mxu0 %v1086
  %2419 = vmatprep.subr.bf16.mxu0 %v1085
  %2420 = vmatpush1.bf16.msra.mxu0 %v1084
  %2421 = vmatprep.subr.bf16.mxu0 %v1083
  %2422 = vmatpush1.bf16.msra.mxu0 %v1082
  %2423 = vmatprep.subr.bf16.mxu0 %v1081
  %2424 = vmatpush1.bf16.msra.mxu0 %v1080
  %2425 = vmatprep.subr.bf16.mxu0 %v1079
  %2426 = vmatpush1.bf16.msra.mxu0 %v1078
  %2427 = vmatprep.subr.bf16.mxu0 %v1077
  %2428 = vmatpush1.bf16.msra.mxu0 %v1076
  %2429 = vmatprep.subr.bf16.mxu0 %v1075
  %2430 = vmatpush1.bf16.msra.mxu0 %v1074
  %2431 = vmatprep.subr.bf16.mxu0 %v1073
  %2432 = vmatpush1.bf16.msra.mxu0 %v1072
  %2433 = vmatprep.subr.bf16.mxu0 0
  %2434 = vmatpush2.bf16.msra.mxu0 0
  %2435 = vmatprep.subr.bf16.mxu0 0
  %2436 = vmatpush2.bf16.msra.mxu0 0
  %2437 = vmatprep.subr.bf16.mxu0 0
  %2438 = vmatpush2.bf16.msra.mxu0 0
  %2439 = vmatprep.subr.bf16.mxu0 0
  %2440 = vmatpush2.bf16.msra.mxu0 0
  %2441 = vmatprep.subr.bf16.mxu0 0
  %2442 = vmatpush2.bf16.msra.mxu0 0
  %2443 = vmatprep.subr.bf16.mxu0 0
  %2444 = vmatpush2.bf16.msra.mxu0 0
  %2445 = vmatprep.subr.bf16.mxu0 0
  %2446 = vmatpush2.bf16.msra.mxu0 0
  %2447 = vmatprep.subr.bf16.mxu0 0
  %2448 = vmatpush2.bf16.msra.mxu0 0
  %2449 = vmatprep.mubr.bf16.mxu0 0
  %2450 = vmatmul.mubr.bf16.gmra.mxu0 %v2416
  %v2451 = vpop.f32.mrf.mxu0
  %v2452 = vadd.f32 %v1017, %v2451
  %v2453 = vpop.f32.mrf.mxu0
  %v2454 = vadd.f32 %v1021, %v2453
  %v2455 = vpop.f32.mrf.mxu0
  %v2456 = vpop.f32.mrf.mxu0
  %2457 = vdwg.mxu0
  %s2458 = scalar_lea.vmem %s11, 48
  %2459 = vst [vmem:[%s2458] sm:$0xff] %v2452
  %2460 = vst [vmem:[%s2458 + $0x8] sm:$0xff] %v2454
  %v2461 = vmul.f32 %v2415, %v177
  %2462 = vadd.xlane.f32.xlu0 %v2461
  %v2463 = vpop.xlane.xlu0 %2462
  %v2464 = vadd.f32 %v55, %v2463
  %v2465 = vsel %vm183, %v2464, -inf
  %2466 = vmax.xlane.f32.xlu0 %v2465
  %v2467 = vpop.xlane.xlu0 %2466
  %v2468 = vsub.f32 %v2464, %v2467
  %v2469 = vmul.f32 %v2468, 1.442695
  %v2470 = vpow.pop %v2469
  %v2471 = vsel %vm183, %v2470, 0.0
  %2472 = vadd.xlane.f32.xlu0 %v2471
  %v2473 = vpop.xlane.xlu0 %2472
  %v2474 = vrcp.pop %v2473
  %v2475 = vmul.f32 %v2470, %v2474
  %v2476 = vlaneseq
  %v2477 = vshrl.u32 %v2476, 7
  %v2478 = vsub.s32 0, %v2477
  %v2479 = vrot.slane %v2475, %v2478
  %2481 = vbcast.lane.b32.xlu0 %v2479, 256
  %v2482 = vpop.permute.xlu0 %2481
  %s2484 = sor.u32 256, 8
  %2485 = vbcast.lane.b32.xlu0 %v2479, %s2484
  %v2486 = vpop.permute.xlu0 %2485
  %v2487 = vlaneseq
  %v2488 = vshrl.u32 %v2487, 7
  %v2489 = vsub.s32 1, %v2488
  %v2490 = vrot.slane %v2475, %v2489
  %2492 = vbcast.lane.b32.xlu0 %v2490, 256
  %v2493 = vpop.permute.xlu0 %2492
  %s2495 = sor.u32 256, 8
  %2496 = vbcast.lane.b32.xlu0 %v2490, %s2495
  %v2497 = vpop.permute.xlu0 %2496
  %v2498 = vlaneseq
  %v2499 = vshrl.u32 %v2498, 7
  %v2500 = vsub.s32 2, %v2499
  %v2501 = vrot.slane %v2475, %v2500
  %2503 = vbcast.lane.b32.xlu0 %v2501, 256
  %v2504 = vpop.permute.xlu0 %2503
  %s2506 = sor.u32 256, 8
  %2507 = vbcast.lane.b32.xlu0 %v2501, %s2506
  %v2508 = vpop.permute.xlu0 %2507
  %v2509 = vlaneseq
  %v2510 = vshrl.u32 %v2509, 7
  %v2511 = vsub.s32 3, %v2510
  %v2512 = vrot.slane %v2475, %v2511
  %2514 = vbcast.lane.b32.xlu0 %v2512, 256
  %v2515 = vpop.permute.xlu0 %2514
  %s2517 = sor.u32 256, 8
  %2518 = vbcast.lane.b32.xlu0 %v2512, %s2517
  %v2519 = vpop.permute.xlu0 %2518
  %v2520 = vlaneseq
  %v2521 = vshrl.u32 %v2520, 7
  %v2522 = vsub.s32 4, %v2521
  %v2523 = vrot.slane %v2475, %v2522
  %2525 = vbcast.lane.b32.xlu0 %v2523, 256
  %v2526 = vpop.permute.xlu0 %2525
  %s2528 = sor.u32 256, 8
  %2529 = vbcast.lane.b32.xlu0 %v2523, %s2528
  %v2530 = vpop.permute.xlu0 %2529
  %v2531 = vlaneseq
  %v2532 = vshrl.u32 %v2531, 7
  %v2533 = vsub.s32 5, %v2532
  %v2534 = vrot.slane %v2475, %v2533
  %2536 = vbcast.lane.b32.xlu0 %v2534, 256
  %v2537 = vpop.permute.xlu0 %2536
  %s2539 = sor.u32 256, 8
  %2540 = vbcast.lane.b32.xlu0 %v2534, %s2539
  %v2541 = vpop.permute.xlu0 %2540
  %v2542 = vlaneseq
  %v2543 = vshrl.u32 %v2542, 7
  %v2544 = vsub.s32 6, %v2543
  %v2545 = vrot.slane %v2475, %v2544
  %2547 = vbcast.lane.b32.xlu0 %v2545, 256
  %v2548 = vpop.permute.xlu0 %2547
  %s2550 = sor.u32 256, 8
  %2551 = vbcast.lane.b32.xlu0 %v2545, %s2550
  %v2552 = vpop.permute.xlu0 %2551
  %v2553 = vlaneseq
  %v2554 = vshrl.u32 %v2553, 7
  %v2555 = vsub.s32 7, %v2554
  %v2556 = vrot.slane %v2475, %v2555
  %2558 = vbcast.lane.b32.xlu0 %v2556, 256
  %v2559 = vpop.permute.xlu0 %2558
  %s2561 = sor.u32 256, 8
  %2562 = vbcast.lane.b32.xlu0 %v2556, %s2561
  %v2563 = vpop.permute.xlu0 %2562
  %v2564 = vmul.f32 %v2482, %v283
  %v2565 = vmul.f32 %v2486, %v284
  %v2566 = vmul.f32 %v2493, %v285
  %v2567 = vmul.f32 %v2497, %v286
  %v2568 = vmul.f32 %v2504, %v287
  %v2569 = vmul.f32 %v2508, %v288
  %v2570 = vmul.f32 %v2515, %v289
  %v2571 = vmul.f32 %v2519, %v290
  %v2572 = vmul.f32 %v2526, %v291
  %v2573 = vmul.f32 %v2530, %v292
  %v2574 = vmul.f32 %v2537, %v293
  %v2575 = vmul.f32 %v2541, %v294
  %v2576 = vmul.f32 %v2548, %v295
  %v2577 = vmul.f32 %v2552, %v296
  %v2578 = vmul.f32 %v2559, %v297
  %v2579 = vmul.f32 %v2563, %v298
  %v2580 = vadd.f32 %v2564, %v2565
  %v2581 = vrot.slane %v2580, 4
  %v2582 = vadd.f32 %v2580, %v2581
  %v2583 = vrot.slane %v2582, 2
  %v2584 = vadd.f32 %v2582, %v2583
  %v2585 = vrot.slane %v2584, 1
  %v2586 = vadd.f32 %v2584, %v2585
  %v2587 = vadd.f32 %v2566, %v2567
  %v2588 = vrot.slane %v2587, 4
  %v2589 = vadd.f32 %v2587, %v2588
  %v2590 = vrot.slane %v2589, 2
  %v2591 = vadd.f32 %v2589, %v2590
  %v2592 = vrot.slane %v2591, 1
  %v2593 = vadd.f32 %v2591, %v2592
  %v2594 = vadd.f32 %v2568, %v2569
  %v2595 = vrot.slane %v2594, 4
  %v2596 = vadd.f32 %v2594, %v2595
  %v2597 = vrot.slane %v2596, 2
  %v2598 = vadd.f32 %v2596, %v2597
  %v2599 = vrot.slane %v2598, 1
  %v2600 = vadd.f32 %v2598, %v2599
  %v2601 = vadd.f32 %v2570, %v2571
  %v2602 = vrot.slane %v2601, 4
  %v2603 = vadd.f32 %v2601, %v2602
  %v2604 = vrot.slane %v2603, 2
  %v2605 = vadd.f32 %v2603, %v2604
  %v2606 = vrot.slane %v2605, 1
  %v2607 = vadd.f32 %v2605, %v2606
  %v2608 = vadd.f32 %v2572, %v2573
  %v2609 = vrot.slane %v2608, 4
  %v2610 = vadd.f32 %v2608, %v2609
  %v2611 = vrot.slane %v2610, 2
  %v2612 = vadd.f32 %v2610, %v2611
  %v2613 = vrot.slane %v2612, 1
  %v2614 = vadd.f32 %v2612, %v2613
  %v2615 = vadd.f32 %v2574, %v2575
  %v2616 = vrot.slane %v2615, 4
  %v2617 = vadd.f32 %v2615, %v2616
  %v2618 = vrot.slane %v2617, 2
  %v2619 = vadd.f32 %v2617, %v2618
  %v2620 = vrot.slane %v2619, 1
  %v2621 = vadd.f32 %v2619, %v2620
  %v2622 = vadd.f32 %v2576, %v2577
  %v2623 = vrot.slane %v2622, 4
  %v2624 = vadd.f32 %v2622, %v2623
  %v2625 = vrot.slane %v2624, 2
  %v2626 = vadd.f32 %v2624, %v2625
  %v2627 = vrot.slane %v2626, 1
  %v2628 = vadd.f32 %v2626, %v2627
  %v2629 = vadd.f32 %v2578, %v2579
  %v2630 = vrot.slane %v2629, 4
  %v2631 = vadd.f32 %v2629, %v2630
  %v2632 = vrot.slane %v2631, 2
  %v2633 = vadd.f32 %v2631, %v2632
  %v2634 = vrot.slane %v2633, 1
  %v2635 = vadd.f32 %v2633, %v2634
  %s2636 = scalar_lea.vmem %s0, 16
  %v2637 = vld [vmem:[%s2636] sm:$0xf]
  %v2638 = vpack.c.bf16 %v2586, %v2586
  %v2639 = vpack.c.bf16 %v2593, %v2593
  %v2640 = vpack.c.bf16 %v2600, %v2600
  %v2641 = vpack.c.bf16 %v2607, %v2607
  %v2642 = vpack.c.bf16 %v2614, %v2614
  %v2643 = vpack.c.bf16 %v2621, %v2621
  %v2644 = vpack.c.bf16 %v2628, %v2628
  %v2645 = vpack.c.bf16 %v2635, %v2635
  %v2654 = vunpack.c.l.b16 %v2638
  %v2655 = vunpack.c.l.b16 %v2639
  %v2656 = vunpack.c.l.b16 %v2640
  %v2657 = vunpack.c.l.b16 %v2641
  %v2658 = vunpack.c.l.b16 %v2642
  %v2659 = vunpack.c.l.b16 %v2643
  %v2660 = vunpack.c.l.b16 %v2644
  %v2661 = vunpack.c.l.b16 %v2645
  %v2662 = vsel %vm396, %v2655, %v2654
  %v2663 = vsel %vm398, %v2656, %v2662
  %v2664 = vsel %vm400, %v2657, %v2663
  %v2665 = vsel %vm402, %v2658, %v2664
  %v2666 = vsel %vm404, %v2659, %v2665
  %v2667 = vsel %vm406, %v2660, %v2666
  %v2668 = vsel %vm408, %v2661, %v2667
  %v2669 = vpack.c.b16 %v2668, %v2668
  %2671 = vmatprep.subr.bf16.mxu0 %v610
  %2672 = vmatpush1.bf16.msra.mxu0 %v609
  %2673 = vmatprep.subr.bf16.mxu0 %v607
  %2674 = vmatpush1.bf16.msra.mxu0 %v606
  %2675 = vmatprep.subr.bf16.mxu0 %v604
  %2676 = vmatpush1.bf16.msra.mxu0 %v603
  %2677 = vmatprep.subr.bf16.mxu0 %v601
  %2678 = vmatpush1.bf16.msra.mxu0 %v600
  %2679 = vmatprep.subr.bf16.mxu0 %v598
  %2680 = vmatpush1.bf16.msra.mxu0 %v597
  %2681 = vmatprep.subr.bf16.mxu0 %v595
  %2682 = vmatpush1.bf16.msra.mxu0 %v594
  %2683 = vmatprep.subr.bf16.mxu0 %v592
  %2684 = vmatpush1.bf16.msra.mxu0 %v591
  %2685 = vmatprep.subr.bf16.mxu0 %v589
  %2686 = vmatpush1.bf16.msra.mxu0 %v588
  %2687 = vmatprep.subr.bf16.mxu0 %v634
  %2688 = vmatpush2.bf16.msra.mxu0 %v633
  %2689 = vmatprep.subr.bf16.mxu0 %v631
  %2690 = vmatpush2.bf16.msra.mxu0 %v630
  %2691 = vmatprep.subr.bf16.mxu0 %v628
  %2692 = vmatpush2.bf16.msra.mxu0 %v627
  %2693 = vmatprep.subr.bf16.mxu0 %v625
  %2694 = vmatpush2.bf16.msra.mxu0 %v624
  %2695 = vmatprep.subr.bf16.mxu0 %v622
  %2696 = vmatpush2.bf16.msra.mxu0 %v621
  %2697 = vmatprep.subr.bf16.mxu0 %v619
  %2698 = vmatpush2.bf16.msra.mxu0 %v618
  %2699 = vmatprep.subr.bf16.mxu0 %v616
  %2700 = vmatpush2.bf16.msra.mxu0 %v615
  %2701 = vmatprep.subr.bf16.mxu0 %v613
  %2702 = vmatpush2.bf16.msra.mxu0 %v612
  %2703 = vmatprep.mubr.bf16.mxu0 %v2669
  %2704 = vmatmul.mubr.bf16.gmra.mxu0 %v2637
  %v2705 = vpop.f32.mrf.mxu0
  %v2706 = vadd.f32 %v416, %v2705
  %v2707 = vpop.f32.mrf.mxu0
  %v2708 = vadd.f32 %v420, %v2707
  %v2709 = vpop.f32.mrf.mxu0
  %v2710 = vpop.f32.mrf.mxu0
  %2711 = vdwg.mxu0
  %2712 = vmatprep.subr.bf16.mxu0 0
  %2713 = vmatpush1.bf16.msra.mxu0 %v611
  %2714 = vmatprep.subr.bf16.mxu0 0
  %2715 = vmatpush1.bf16.msra.mxu0 %v608
  %2716 = vmatprep.subr.bf16.mxu0 0
  %2717 = vmatpush1.bf16.msra.mxu0 %v605
  %2718 = vmatprep.subr.bf16.mxu0 0
  %2719 = vmatpush1.bf16.msra.mxu0 %v602
  %2720 = vmatprep.subr.bf16.mxu0 0
  %2721 = vmatpush1.bf16.msra.mxu0 %v599
  %2722 = vmatprep.subr.bf16.mxu0 0
  %2723 = vmatpush1.bf16.msra.mxu0 %v596
  %2724 = vmatprep.subr.bf16.mxu0 0
  %2725 = vmatpush1.bf16.msra.mxu0 %v593
  %2726 = vmatprep.subr.bf16.mxu0 0
  %2727 = vmatpush1.bf16.msra.mxu0 %v590
  %2728 = vmatprep.subr.bf16.mxu0 0
  %2729 = vmatpush2.bf16.msra.mxu0 %v635
  %2730 = vmatprep.subr.bf16.mxu0 0
  %2731 = vmatpush2.bf16.msra.mxu0 %v632
  %2732 = vmatprep.subr.bf16.mxu0 0
  %2733 = vmatpush2.bf16.msra.mxu0 %v629
  %2734 = vmatprep.subr.bf16.mxu0 0
  %2735 = vmatpush2.bf16.msra.mxu0 %v626
  %2736 = vmatprep.subr.bf16.mxu0 0
  %2737 = vmatpush2.bf16.msra.mxu0 %v623
  %2738 = vmatprep.subr.bf16.mxu0 0
  %2739 = vmatpush2.bf16.msra.mxu0 %v620
  %2740 = vmatprep.subr.bf16.mxu0 0
  %2741 = vmatpush2.bf16.msra.mxu0 %v617
  %2742 = vmatprep.subr.bf16.mxu0 0
  %2743 = vmatpush2.bf16.msra.mxu0 %v614
  %2744 = vmatprep.mubr.bf16.mxu0 %v2669
  %2745 = vmatmul.mubr.bf16.gmra.mxu0 %v2637
  %v2746 = vpop.f32.mrf.mxu0
  %v2747 = vadd.f32 %v424, %v2746
  %v2748 = vpop.f32.mrf.mxu0
  %v2749 = vpop.f32.mrf.mxu0
  %v2750 = vpop.f32.mrf.mxu0
  %2751 = vdwg.mxu0
  %2752 = vmatprep.subr.bf16.mxu0 %v884
  %2753 = vmatpush1.bf16.msra.mxu0 %v883
  %2754 = vmatprep.subr.bf16.mxu0 %v881
  %2755 = vmatpush1.bf16.msra.mxu0 %v880
  %2756 = vmatprep.subr.bf16.mxu0 %v878
  %2757 = vmatpush1.bf16.msra.mxu0 %v877
  %2758 = vmatprep.subr.bf16.mxu0 %v875
  %2759 = vmatpush1.bf16.msra.mxu0 %v874
  %2760 = vmatprep.subr.bf16.mxu0 %v872
  %2761 = vmatpush1.bf16.msra.mxu0 %v871
  %2762 = vmatprep.subr.bf16.mxu0 %v869
  %2763 = vmatpush1.bf16.msra.mxu0 %v868
  %2764 = vmatprep.subr.bf16.mxu0 %v866
  %2765 = vmatpush1.bf16.msra.mxu0 %v865
  %2766 = vmatprep.subr.bf16.mxu0 %v863
  %2767 = vmatpush1.bf16.msra.mxu0 %v862
  %2768 = vmatprep.subr.bf16.mxu0 0
  %2769 = vmatpush2.bf16.msra.mxu0 0
  %2770 = vmatprep.subr.bf16.mxu0 0
  %2771 = vmatpush2.bf16.msra.mxu0 0
  %2772 = vmatprep.subr.bf16.mxu0 0
  %2773 = vmatpush2.bf16.msra.mxu0 0
  %2774 = vmatprep.subr.bf16.mxu0 0
  %2775 = vmatpush2.bf16.msra.mxu0 0
  %2776 = vmatprep.subr.bf16.mxu0 0
  %2777 = vmatpush2.bf16.msra.mxu0 0
  %2778 = vmatprep.subr.bf16.mxu0 0
  %2779 = vmatpush2.bf16.msra.mxu0 0
  %2780 = vmatprep.subr.bf16.mxu0 0
  %2781 = vmatpush2.bf16.msra.mxu0 0
  %2782 = vmatprep.subr.bf16.mxu0 0
  %2783 = vmatpush2.bf16.msra.mxu0 0
  %2784 = vmatprep.mubr.bf16.mxu0 0
  %2785 = vmatmul.mubr.bf16.gmra.mxu0 %v2416
  %v2786 = vpop.f32.mrf.mxu0
  %v2787 = vadd.f32 %v770, %v2786
  %v2788 = vpop.f32.mrf.mxu0
  %v2789 = vadd.f32 %v774, %v2788
  %v2790 = vpop.f32.mrf.mxu0
  %v2791 = vpop.f32.mrf.mxu0
  %2792 = vdwg.mxu0
  %2793 = vmatprep.subr.bf16.mxu0 0
  %2794 = vmatpush1.bf16.msra.mxu0 %v885
  %2795 = vmatprep.subr.bf16.mxu0 0
  %2796 = vmatpush1.bf16.msra.mxu0 %v882
  %2797 = vmatprep.subr.bf16.mxu0 0
  %2798 = vmatpush1.bf16.msra.mxu0 %v879
  %2799 = vmatprep.subr.bf16.mxu0 0
  %2800 = vmatpush1.bf16.msra.mxu0 %v876
  %2801 = vmatprep.subr.bf16.mxu0 0
  %2802 = vmatpush1.bf16.msra.mxu0 %v873
  %2803 = vmatprep.subr.bf16.mxu0 0
  %2804 = vmatpush1.bf16.msra.mxu0 %v870
  %2805 = vmatprep.subr.bf16.mxu0 0
  %2806 = vmatpush1.bf16.msra.mxu0 %v867
  %2807 = vmatprep.subr.bf16.mxu0 0
  %2808 = vmatpush1.bf16.msra.mxu0 %v864
  %2809 = vmatprep.subr.bf16.mxu0 0
  %2810 = vmatpush2.bf16.msra.mxu0 0
  %2811 = vmatprep.subr.bf16.mxu0 0
  %2812 = vmatpush2.bf16.msra.mxu0 0
  %2813 = vmatprep.subr.bf16.mxu0 0
  %2814 = vmatpush2.bf16.msra.mxu0 0
  %2815 = vmatprep.subr.bf16.mxu0 0
  %2816 = vmatpush2.bf16.msra.mxu0 0
  %2817 = vmatprep.subr.bf16.mxu0 0
  %2818 = vmatpush2.bf16.msra.mxu0 0
  %2819 = vmatprep.subr.bf16.mxu0 0
  %2820 = vmatpush2.bf16.msra.mxu0 0
  %2821 = vmatprep.subr.bf16.mxu0 0
  %2822 = vmatpush2.bf16.msra.mxu0 0
  %2823 = vmatprep.subr.bf16.mxu0 0
  %2824 = vmatpush2.bf16.msra.mxu0 0
  %2825 = vmatprep.mubr.bf16.mxu0 0
  %2826 = vmatmul.mubr.bf16.gmra.mxu0 %v2416
  %v2827 = vpop.f32.mrf.mxu0
  %v2828 = vadd.f32 %v778, %v2827
  %v2829 = vpop.f32.mrf.mxu0
  %v2830 = vpop.f32.mrf.mxu0
  %v2831 = vpop.f32.mrf.mxu0
  %2832 = vdwg.mxu0
  %v2833 = vadd.f32 %v2706, %v2787
  %v2834 = vxor.u32 %v2833, 2147483648
  %v2835 = vmul.f32 %v2834, 1.442695
  %v2836 = vpow.pop %v2835
  %v2837 = vadd.f32 %v2836, 1.0
  %v2838 = vrcp.pop %v2837
  %v2839 = vmul.f32 1.0, %v2838
  %v2840 = vadd.f32 %v2708, %v2789
  %v2841 = vxor.u32 %v2840, 2147483648
  %v2842 = vmul.f32 %v2841, 1.442695
  %v2843 = vpow.pop %v2842
  %v2844 = vadd.f32 %v2843, 1.0
  %v2845 = vrcp.pop %v2844
  %v2846 = vmul.f32 1.0, %v2845
  %v2847 = vmul.f32 %v2839, %v2828
  %v2848 = vadd.f32 %v2747, %v2847
  %v2849 = vtanh.pop %v2848
  %v2850 = vsub.f32 1.0, %v2846
  %v2851 = vmul.f32 %v2850, %v2849
  %v2852 = vmul.f32 %v2846, %v2415
  %v2853 = vadd.f32 %v2851, %v2852
  %v2854 = vpack.c.bf16 %v2853, %v2853
  %2855 = vmatprep.subr.bf16.mxu0 %v1087
  %2856 = vmatpush1.bf16.msra.mxu0 %v1086
  %2857 = vmatprep.subr.bf16.mxu0 %v1085
  %2858 = vmatpush1.bf16.msra.mxu0 %v1084
  %2859 = vmatprep.subr.bf16.mxu0 %v1083
  %2860 = vmatpush1.bf16.msra.mxu0 %v1082
  %2861 = vmatprep.subr.bf16.mxu0 %v1081
  %2862 = vmatpush1.bf16.msra.mxu0 %v1080
  %2863 = vmatprep.subr.bf16.mxu0 %v1079
  %2864 = vmatpush1.bf16.msra.mxu0 %v1078
  %2865 = vmatprep.subr.bf16.mxu0 %v1077
  %2866 = vmatpush1.bf16.msra.mxu0 %v1076
  %2867 = vmatprep.subr.bf16.mxu0 %v1075
  %2868 = vmatpush1.bf16.msra.mxu0 %v1074
  %2869 = vmatprep.subr.bf16.mxu0 %v1073
  %2870 = vmatpush1.bf16.msra.mxu0 %v1072
  %2871 = vmatprep.subr.bf16.mxu0 0
  %2872 = vmatpush2.bf16.msra.mxu0 0
  %2873 = vmatprep.subr.bf16.mxu0 0
  %2874 = vmatpush2.bf16.msra.mxu0 0
  %2875 = vmatprep.subr.bf16.mxu0 0
  %2876 = vmatpush2.bf16.msra.mxu0 0
  %2877 = vmatprep.subr.bf16.mxu0 0
  %2878 = vmatpush2.bf16.msra.mxu0 0
  %2879 = vmatprep.subr.bf16.mxu0 0
  %2880 = vmatpush2.bf16.msra.mxu0 0
  %2881 = vmatprep.subr.bf16.mxu0 0
  %2882 = vmatpush2.bf16.msra.mxu0 0
  %2883 = vmatprep.subr.bf16.mxu0 0
  %2884 = vmatpush2.bf16.msra.mxu0 0
  %2885 = vmatprep.subr.bf16.mxu0 0
  %2886 = vmatpush2.bf16.msra.mxu0 0
  %2887 = vmatprep.mubr.bf16.mxu0 0
  %2888 = vmatmul.mubr.bf16.gmra.mxu0 %v2854
  %v2889 = vpop.f32.mrf.mxu0
  %v2890 = vadd.f32 %v1017, %v2889
  %v2891 = vpop.f32.mrf.mxu0
  %v2892 = vadd.f32 %v1021, %v2891
  %v2893 = vpop.f32.mrf.mxu0
  %v2894 = vpop.f32.mrf.mxu0
  %2895 = vdwg.mxu0
  %s2896 = scalar_lea.vmem %s11, 64
  %2897 = vst [vmem:[%s2896] sm:$0xff] %v2890
  %2898 = vst [vmem:[%s2896 + $0x8] sm:$0xff] %v2892
  %v2899 = vmul.f32 %v2853, %v177
  %2900 = vadd.xlane.f32.xlu0 %v2899
  %v2901 = vpop.xlane.xlu0 %2900
  %v2902 = vadd.f32 %v55, %v2901
  %v2903 = vsel %vm183, %v2902, -inf
  %2904 = vmax.xlane.f32.xlu0 %v2903
  %v2905 = vpop.xlane.xlu0 %2904
  %v2906 = vsub.f32 %v2902, %v2905
  %v2907 = vmul.f32 %v2906, 1.442695
  %v2908 = vpow.pop %v2907
  %v2909 = vsel %vm183, %v2908, 0.0
  %2910 = vadd.xlane.f32.xlu0 %v2909
  %v2911 = vpop.xlane.xlu0 %2910
  %v2912 = vrcp.pop %v2911
  %v2913 = vmul.f32 %v2908, %v2912
  %v2914 = vlaneseq
  %v2915 = vshrl.u32 %v2914, 7
  %v2916 = vsub.s32 0, %v2915
  %v2917 = vrot.slane %v2913, %v2916
  %2919 = vbcast.lane.b32.xlu0 %v2917, 256
  %v2920 = vpop.permute.xlu0 %2919
  %s2922 = sor.u32 256, 8
  %2923 = vbcast.lane.b32.xlu0 %v2917, %s2922
  %v2924 = vpop.permute.xlu0 %2923
  %v2925 = vlaneseq
  %v2926 = vshrl.u32 %v2925, 7
  %v2927 = vsub.s32 1, %v2926
  %v2928 = vrot.slane %v2913, %v2927
  %2930 = vbcast.lane.b32.xlu0 %v2928, 256
  %v2931 = vpop.permute.xlu0 %2930
  %s2933 = sor.u32 256, 8
  %2934 = vbcast.lane.b32.xlu0 %v2928, %s2933
  %v2935 = vpop.permute.xlu0 %2934
  %v2936 = vlaneseq
  %v2937 = vshrl.u32 %v2936, 7
  %v2938 = vsub.s32 2, %v2937
  %v2939 = vrot.slane %v2913, %v2938
  %2941 = vbcast.lane.b32.xlu0 %v2939, 256
  %v2942 = vpop.permute.xlu0 %2941
  %s2944 = sor.u32 256, 8
  %2945 = vbcast.lane.b32.xlu0 %v2939, %s2944
  %v2946 = vpop.permute.xlu0 %2945
  %v2947 = vlaneseq
  %v2948 = vshrl.u32 %v2947, 7
  %v2949 = vsub.s32 3, %v2948
  %v2950 = vrot.slane %v2913, %v2949
  %2952 = vbcast.lane.b32.xlu0 %v2950, 256
  %v2953 = vpop.permute.xlu0 %2952
  %s2955 = sor.u32 256, 8
  %2956 = vbcast.lane.b32.xlu0 %v2950, %s2955
  %v2957 = vpop.permute.xlu0 %2956
  %v2958 = vlaneseq
  %v2959 = vshrl.u32 %v2958, 7
  %v2960 = vsub.s32 4, %v2959
  %v2961 = vrot.slane %v2913, %v2960
  %2963 = vbcast.lane.b32.xlu0 %v2961, 256
  %v2964 = vpop.permute.xlu0 %2963
  %s2966 = sor.u32 256, 8
  %2967 = vbcast.lane.b32.xlu0 %v2961, %s2966
  %v2968 = vpop.permute.xlu0 %2967
  %v2969 = vlaneseq
  %v2970 = vshrl.u32 %v2969, 7
  %v2971 = vsub.s32 5, %v2970
  %v2972 = vrot.slane %v2913, %v2971
  %2974 = vbcast.lane.b32.xlu0 %v2972, 256
  %v2975 = vpop.permute.xlu0 %2974
  %s2977 = sor.u32 256, 8
  %2978 = vbcast.lane.b32.xlu0 %v2972, %s2977
  %v2979 = vpop.permute.xlu0 %2978
  %v2980 = vlaneseq
  %v2981 = vshrl.u32 %v2980, 7
  %v2982 = vsub.s32 6, %v2981
  %v2983 = vrot.slane %v2913, %v2982
  %2985 = vbcast.lane.b32.xlu0 %v2983, 256
  %v2986 = vpop.permute.xlu0 %2985
  %s2988 = sor.u32 256, 8
  %2989 = vbcast.lane.b32.xlu0 %v2983, %s2988
  %v2990 = vpop.permute.xlu0 %2989
  %v2991 = vlaneseq
  %v2992 = vshrl.u32 %v2991, 7
  %v2993 = vsub.s32 7, %v2992
  %v2994 = vrot.slane %v2913, %v2993
  %2996 = vbcast.lane.b32.xlu0 %v2994, 256
  %v2997 = vpop.permute.xlu0 %2996
  %s2999 = sor.u32 256, 8
  %3000 = vbcast.lane.b32.xlu0 %v2994, %s2999
  %v3001 = vpop.permute.xlu0 %3000
  %v3002 = vmul.f32 %v2920, %v283
  %v3003 = vmul.f32 %v2924, %v284
  %v3004 = vmul.f32 %v2931, %v285
  %v3005 = vmul.f32 %v2935, %v286
  %v3006 = vmul.f32 %v2942, %v287
  %v3007 = vmul.f32 %v2946, %v288
  %v3008 = vmul.f32 %v2953, %v289
  %v3009 = vmul.f32 %v2957, %v290
  %v3010 = vmul.f32 %v2964, %v291
  %v3011 = vmul.f32 %v2968, %v292
  %v3012 = vmul.f32 %v2975, %v293
  %v3013 = vmul.f32 %v2979, %v294
  %v3014 = vmul.f32 %v2986, %v295
  %v3015 = vmul.f32 %v2990, %v296
  %v3016 = vmul.f32 %v2997, %v297
  %v3017 = vmul.f32 %v3001, %v298
  %v3018 = vadd.f32 %v3002, %v3003
  %v3019 = vrot.slane %v3018, 4
  %v3020 = vadd.f32 %v3018, %v3019
  %v3021 = vrot.slane %v3020, 2
  %v3022 = vadd.f32 %v3020, %v3021
  %v3023 = vrot.slane %v3022, 1
  %v3024 = vadd.f32 %v3022, %v3023
  %v3025 = vadd.f32 %v3004, %v3005
  %v3026 = vrot.slane %v3025, 4
  %v3027 = vadd.f32 %v3025, %v3026
  %v3028 = vrot.slane %v3027, 2
  %v3029 = vadd.f32 %v3027, %v3028
  %v3030 = vrot.slane %v3029, 1
  %v3031 = vadd.f32 %v3029, %v3030
  %v3032 = vadd.f32 %v3006, %v3007
  %v3033 = vrot.slane %v3032, 4
  %v3034 = vadd.f32 %v3032, %v3033
  %v3035 = vrot.slane %v3034, 2
  %v3036 = vadd.f32 %v3034, %v3035
  %v3037 = vrot.slane %v3036, 1
  %v3038 = vadd.f32 %v3036, %v3037
  %v3039 = vadd.f32 %v3008, %v3009
  %v3040 = vrot.slane %v3039, 4
  %v3041 = vadd.f32 %v3039, %v3040
  %v3042 = vrot.slane %v3041, 2
  %v3043 = vadd.f32 %v3041, %v3042
  %v3044 = vrot.slane %v3043, 1
  %v3045 = vadd.f32 %v3043, %v3044
  %v3046 = vadd.f32 %v3010, %v3011
  %v3047 = vrot.slane %v3046, 4
  %v3048 = vadd.f32 %v3046, %v3047
  %v3049 = vrot.slane %v3048, 2
  %v3050 = vadd.f32 %v3048, %v3049
  %v3051 = vrot.slane %v3050, 1
  %v3052 = vadd.f32 %v3050, %v3051
  %v3053 = vadd.f32 %v3012, %v3013
  %v3054 = vrot.slane %v3053, 4
  %v3055 = vadd.f32 %v3053, %v3054
  %v3056 = vrot.slane %v3055, 2
  %v3057 = vadd.f32 %v3055, %v3056
  %v3058 = vrot.slane %v3057, 1
  %v3059 = vadd.f32 %v3057, %v3058
  %v3060 = vadd.f32 %v3014, %v3015
  %v3061 = vrot.slane %v3060, 4
  %v3062 = vadd.f32 %v3060, %v3061
  %v3063 = vrot.slane %v3062, 2
  %v3064 = vadd.f32 %v3062, %v3063
  %v3065 = vrot.slane %v3064, 1
  %v3066 = vadd.f32 %v3064, %v3065
  %v3067 = vadd.f32 %v3016, %v3017
  %v3068 = vrot.slane %v3067, 4
  %v3069 = vadd.f32 %v3067, %v3068
  %v3070 = vrot.slane %v3069, 2
  %v3071 = vadd.f32 %v3069, %v3070
  %v3072 = vrot.slane %v3071, 1
  %v3073 = vadd.f32 %v3071, %v3072
  %s3074 = scalar_lea.vmem %s0, 20
  %v3075 = vld [vmem:[%s3074] sm:$0xf]
  %v3076 = vpack.c.bf16 %v3024, %v3024
  %v3077 = vpack.c.bf16 %v3031, %v3031
  %v3078 = vpack.c.bf16 %v3038, %v3038
  %v3079 = vpack.c.bf16 %v3045, %v3045
  %v3080 = vpack.c.bf16 %v3052, %v3052
  %v3081 = vpack.c.bf16 %v3059, %v3059
  %v3082 = vpack.c.bf16 %v3066, %v3066
  %v3083 = vpack.c.bf16 %v3073, %v3073
  %v3092 = vunpack.c.l.b16 %v3076
  %v3093 = vunpack.c.l.b16 %v3077
  %v3094 = vunpack.c.l.b16 %v3078
  %v3095 = vunpack.c.l.b16 %v3079
  %v3096 = vunpack.c.l.b16 %v3080
  %v3097 = vunpack.c.l.b16 %v3081
  %v3098 = vunpack.c.l.b16 %v3082
  %v3099 = vunpack.c.l.b16 %v3083
  %v3100 = vsel %vm396, %v3093, %v3092
  %v3101 = vsel %vm398, %v3094, %v3100
  %v3102 = vsel %vm400, %v3095, %v3101
  %v3103 = vsel %vm402, %v3096, %v3102
  %v3104 = vsel %vm404, %v3097, %v3103
  %v3105 = vsel %vm406, %v3098, %v3104
  %v3106 = vsel %vm408, %v3099, %v3105
  %v3107 = vpack.c.b16 %v3106, %v3106
  %3109 = vmatprep.subr.bf16.mxu0 %v610
  %3110 = vmatpush1.bf16.msra.mxu0 %v609
  %3111 = vmatprep.subr.bf16.mxu0 %v607
  %3112 = vmatpush1.bf16.msra.mxu0 %v606
  %3113 = vmatprep.subr.bf16.mxu0 %v604
  %3114 = vmatpush1.bf16.msra.mxu0 %v603
  %3115 = vmatprep.subr.bf16.mxu0 %v601
  %3116 = vmatpush1.bf16.msra.mxu0 %v600
  %3117 = vmatprep.subr.bf16.mxu0 %v598
  %3118 = vmatpush1.bf16.msra.mxu0 %v597
  %3119 = vmatprep.subr.bf16.mxu0 %v595
  %3120 = vmatpush1.bf16.msra.mxu0 %v594
  %3121 = vmatprep.subr.bf16.mxu0 %v592
  %3122 = vmatpush1.bf16.msra.mxu0 %v591
  %3123 = vmatprep.subr.bf16.mxu0 %v589
  %3124 = vmatpush1.bf16.msra.mxu0 %v588
  %3125 = vmatprep.subr.bf16.mxu0 %v634
  %3126 = vmatpush2.bf16.msra.mxu0 %v633
  %3127 = vmatprep.subr.bf16.mxu0 %v631
  %3128 = vmatpush2.bf16.msra.mxu0 %v630
  %3129 = vmatprep.subr.bf16.mxu0 %v628
  %3130 = vmatpush2.bf16.msra.mxu0 %v627
  %3131 = vmatprep.subr.bf16.mxu0 %v625
  %3132 = vmatpush2.bf16.msra.mxu0 %v624
  %3133 = vmatprep.subr.bf16.mxu0 %v622
  %3134 = vmatpush2.bf16.msra.mxu0 %v621
  %3135 = vmatprep.subr.bf16.mxu0 %v619
  %3136 = vmatpush2.bf16.msra.mxu0 %v618
  %3137 = vmatprep.subr.bf16.mxu0 %v616
  %3138 = vmatpush2.bf16.msra.mxu0 %v615
  %3139 = vmatprep.subr.bf16.mxu0 %v613
  %3140 = vmatpush2.bf16.msra.mxu0 %v612
  %3141 = vmatprep.mubr.bf16.mxu0 %v3107
  %3142 = vmatmul.mubr.bf16.gmra.mxu0 %v3075
  %v3143 = vpop.f32.mrf.mxu0
  %v3144 = vadd.f32 %v416, %v3143
  %v3145 = vpop.f32.mrf.mxu0
  %v3146 = vadd.f32 %v420, %v3145
  %v3147 = vpop.f32.mrf.mxu0
  %v3148 = vpop.f32.mrf.mxu0
  %3149 = vdwg.mxu0
  %3150 = vmatprep.subr.bf16.mxu0 0
  %3151 = vmatpush1.bf16.msra.mxu0 %v611
  %3152 = vmatprep.subr.bf16.mxu0 0
  %3153 = vmatpush1.bf16.msra.mxu0 %v608
  %3154 = vmatprep.subr.bf16.mxu0 0
  %3155 = vmatpush1.bf16.msra.mxu0 %v605
  %3156 = vmatprep.subr.bf16.mxu0 0
  %3157 = vmatpush1.bf16.msra.mxu0 %v602
  %3158 = vmatprep.subr.bf16.mxu0 0
  %3159 = vmatpush1.bf16.msra.mxu0 %v599
  %3160 = vmatprep.subr.bf16.mxu0 0
  %3161 = vmatpush1.bf16.msra.mxu0 %v596
  %3162 = vmatprep.subr.bf16.mxu0 0
  %3163 = vmatpush1.bf16.msra.mxu0 %v593
  %3164 = vmatprep.subr.bf16.mxu0 0
  %3165 = vmatpush1.bf16.msra.mxu0 %v590
  %3166 = vmatprep.subr.bf16.mxu0 0
  %3167 = vmatpush2.bf16.msra.mxu0 %v635
  %3168 = vmatprep.subr.bf16.mxu0 0
  %3169 = vmatpush2.bf16.msra.mxu0 %v632
  %3170 = vmatprep.subr.bf16.mxu0 0
  %3171 = vmatpush2.bf16.msra.mxu0 %v629
  %3172 = vmatprep.subr.bf16.mxu0 0
  %3173 = vmatpush2.bf16.msra.mxu0 %v626
  %3174 = vmatprep.subr.bf16.mxu0 0
  %3175 = vmatpush2.bf16.msra.mxu0 %v623
  %3176 = vmatprep.subr.bf16.mxu0 0
  %3177 = vmatpush2.bf16.msra.mxu0 %v620
  %3178 = vmatprep.subr.bf16.mxu0 0
  %3179 = vmatpush2.bf16.msra.mxu0 %v617
  %3180 = vmatprep.subr.bf16.mxu0 0
  %3181 = vmatpush2.bf16.msra.mxu0 %v614
  %3182 = vmatprep.mubr.bf16.mxu0 %v3107
  %3183 = vmatmul.mubr.bf16.gmra.mxu0 %v3075
  %v3184 = vpop.f32.mrf.mxu0
  %v3185 = vadd.f32 %v424, %v3184
  %v3186 = vpop.f32.mrf.mxu0
  %v3187 = vpop.f32.mrf.mxu0
  %v3188 = vpop.f32.mrf.mxu0
  %3189 = vdwg.mxu0
  %3190 = vmatprep.subr.bf16.mxu0 %v884
  %3191 = vmatpush1.bf16.msra.mxu0 %v883
  %3192 = vmatprep.subr.bf16.mxu0 %v881
  %3193 = vmatpush1.bf16.msra.mxu0 %v880
  %3194 = vmatprep.subr.bf16.mxu0 %v878
  %3195 = vmatpush1.bf16.msra.mxu0 %v877
  %3196 = vmatprep.subr.bf16.mxu0 %v875
  %3197 = vmatpush1.bf16.msra.mxu0 %v874
  %3198 = vmatprep.subr.bf16.mxu0 %v872
  %3199 = vmatpush1.bf16.msra.mxu0 %v871
  %3200 = vmatprep.subr.bf16.mxu0 %v869
  %3201 = vmatpush1.bf16.msra.mxu0 %v868
  %3202 = vmatprep.subr.bf16.mxu0 %v866
  %3203 = vmatpush1.bf16.msra.mxu0 %v865
  %3204 = vmatprep.subr.bf16.mxu0 %v863
  %3205 = vmatpush1.bf16.msra.mxu0 %v862
  %3206 = vmatprep.subr.bf16.mxu0 0
  %3207 = vmatpush2.bf16.msra.mxu0 0
  %3208 = vmatprep.subr.bf16.mxu0 0
  %3209 = vmatpush2.bf16.msra.mxu0 0
  %3210 = vmatprep.subr.bf16.mxu0 0
  %3211 = vmatpush2.bf16.msra.mxu0 0
  %3212 = vmatprep.subr.bf16.mxu0 0
  %3213 = vmatpush2.bf16.msra.mxu0 0
  %3214 = vmatprep.subr.bf16.mxu0 0
  %3215 = vmatpush2.bf16.msra.mxu0 0
  %3216 = vmatprep.subr.bf16.mxu0 0
  %3217 = vmatpush2.bf16.msra.mxu0 0
  %3218 = vmatprep.subr.bf16.mxu0 0
  %3219 = vmatpush2.bf16.msra.mxu0 0
  %3220 = vmatprep.subr.bf16.mxu0 0
  %3221 = vmatpush2.bf16.msra.mxu0 0
  %3222 = vmatprep.mubr.bf16.mxu0 0
  %3223 = vmatmul.mubr.bf16.gmra.mxu0 %v2854
  %v3224 = vpop.f32.mrf.mxu0
  %v3225 = vadd.f32 %v770, %v3224
  %v3226 = vpop.f32.mrf.mxu0
  %v3227 = vadd.f32 %v774, %v3226
  %v3228 = vpop.f32.mrf.mxu0
  %v3229 = vpop.f32.mrf.mxu0
  %3230 = vdwg.mxu0
  %3231 = vmatprep.subr.bf16.mxu0 0
  %3232 = vmatpush1.bf16.msra.mxu0 %v885
  %3233 = vmatprep.subr.bf16.mxu0 0
  %3234 = vmatpush1.bf16.msra.mxu0 %v882
  %3235 = vmatprep.subr.bf16.mxu0 0
  %3236 = vmatpush1.bf16.msra.mxu0 %v879
  %3237 = vmatprep.subr.bf16.mxu0 0
  %3238 = vmatpush1.bf16.msra.mxu0 %v876
  %3239 = vmatprep.subr.bf16.mxu0 0
  %3240 = vmatpush1.bf16.msra.mxu0 %v873
  %3241 = vmatprep.subr.bf16.mxu0 0
  %3242 = vmatpush1.bf16.msra.mxu0 %v870
  %3243 = vmatprep.subr.bf16.mxu0 0
  %3244 = vmatpush1.bf16.msra.mxu0 %v867
  %3245 = vmatprep.subr.bf16.mxu0 0
  %3246 = vmatpush1.bf16.msra.mxu0 %v864
  %3247 = vmatprep.subr.bf16.mxu0 0
  %3248 = vmatpush2.bf16.msra.mxu0 0
  %3249 = vmatprep.subr.bf16.mxu0 0
  %3250 = vmatpush2.bf16.msra.mxu0 0
  %3251 = vmatprep.subr.bf16.mxu0 0
  %3252 = vmatpush2.bf16.msra.mxu0 0
  %3253 = vmatprep.subr.bf16.mxu0 0
  %3254 = vmatpush2.bf16.msra.mxu0 0
  %3255 = vmatprep.subr.bf16.mxu0 0
  %3256 = vmatpush2.bf16.msra.mxu0 0
  %3257 = vmatprep.subr.bf16.mxu0 0
  %3258 = vmatpush2.bf16.msra.mxu0 0
  %3259 = vmatprep.subr.bf16.mxu0 0
  %3260 = vmatpush2.bf16.msra.mxu0 0
  %3261 = vmatprep.subr.bf16.mxu0 0
  %3262 = vmatpush2.bf16.msra.mxu0 0
  %3263 = vmatprep.mubr.bf16.mxu0 0
  %3264 = vmatmul.mubr.bf16.gmra.mxu0 %v2854
  %v3265 = vpop.f32.mrf.mxu0
  %v3266 = vadd.f32 %v778, %v3265
  %v3267 = vpop.f32.mrf.mxu0
  %v3268 = vpop.f32.mrf.mxu0
  %v3269 = vpop.f32.mrf.mxu0
  %3270 = vdwg.mxu0
  %v3271 = vadd.f32 %v3144, %v3225
  %v3272 = vxor.u32 %v3271, 2147483648
  %v3273 = vmul.f32 %v3272, 1.442695
  %v3274 = vpow.pop %v3273
  %v3275 = vadd.f32 %v3274, 1.0
  %v3276 = vrcp.pop %v3275
  %v3277 = vmul.f32 1.0, %v3276
  %v3278 = vadd.f32 %v3146, %v3227
  %v3279 = vxor.u32 %v3278, 2147483648
  %v3280 = vmul.f32 %v3279, 1.442695
  %v3281 = vpow.pop %v3280
  %v3282 = vadd.f32 %v3281, 1.0
  %v3283 = vrcp.pop %v3282
  %v3284 = vmul.f32 1.0, %v3283
  %v3285 = vmul.f32 %v3277, %v3266
  %v3286 = vadd.f32 %v3185, %v3285
  %v3287 = vtanh.pop %v3286
  %v3288 = vsub.f32 1.0, %v3284
  %v3289 = vmul.f32 %v3288, %v3287
  %v3290 = vmul.f32 %v3284, %v2853
  %v3291 = vadd.f32 %v3289, %v3290
  %v3292 = vpack.c.bf16 %v3291, %v3291
  %3293 = vmatprep.subr.bf16.mxu0 %v1087
  %3294 = vmatpush1.bf16.msra.mxu0 %v1086
  %3295 = vmatprep.subr.bf16.mxu0 %v1085
  %3296 = vmatpush1.bf16.msra.mxu0 %v1084
  %3297 = vmatprep.subr.bf16.mxu0 %v1083
  %3298 = vmatpush1.bf16.msra.mxu0 %v1082
  %3299 = vmatprep.subr.bf16.mxu0 %v1081
  %3300 = vmatpush1.bf16.msra.mxu0 %v1080
  %3301 = vmatprep.subr.bf16.mxu0 %v1079
  %3302 = vmatpush1.bf16.msra.mxu0 %v1078
  %3303 = vmatprep.subr.bf16.mxu0 %v1077
  %3304 = vmatpush1.bf16.msra.mxu0 %v1076
  %3305 = vmatprep.subr.bf16.mxu0 %v1075
  %3306 = vmatpush1.bf16.msra.mxu0 %v1074
  %3307 = vmatprep.subr.bf16.mxu0 %v1073
  %3308 = vmatpush1.bf16.msra.mxu0 %v1072
  %3309 = vmatprep.subr.bf16.mxu0 0
  %3310 = vmatpush2.bf16.msra.mxu0 0
  %3311 = vmatprep.subr.bf16.mxu0 0
  %3312 = vmatpush2.bf16.msra.mxu0 0
  %3313 = vmatprep.subr.bf16.mxu0 0
  %3314 = vmatpush2.bf16.msra.mxu0 0
  %3315 = vmatprep.subr.bf16.mxu0 0
  %3316 = vmatpush2.bf16.msra.mxu0 0
  %3317 = vmatprep.subr.bf16.mxu0 0
  %3318 = vmatpush2.bf16.msra.mxu0 0
  %3319 = vmatprep.subr.bf16.mxu0 0
  %3320 = vmatpush2.bf16.msra.mxu0 0
  %3321 = vmatprep.subr.bf16.mxu0 0
  %3322 = vmatpush2.bf16.msra.mxu0 0
  %3323 = vmatprep.subr.bf16.mxu0 0
  %3324 = vmatpush2.bf16.msra.mxu0 0
  %3325 = vmatprep.mubr.bf16.mxu0 0
  %3326 = vmatmul.mubr.bf16.gmra.mxu0 %v3292
  %v3327 = vpop.f32.mrf.mxu0
  %v3328 = vadd.f32 %v1017, %v3327
  %v3329 = vpop.f32.mrf.mxu0
  %v3330 = vadd.f32 %v1021, %v3329
  %v3331 = vpop.f32.mrf.mxu0
  %v3332 = vpop.f32.mrf.mxu0
  %3333 = vdwg.mxu0
  %s3334 = scalar_lea.vmem %s11, 80
  %3335 = vst [vmem:[%s3334] sm:$0xff] %v3328
  %3336 = vst [vmem:[%s3334 + $0x8] sm:$0xff] %v3330
  %v3337 = vmul.f32 %v3291, %v177
  %3338 = vadd.xlane.f32.xlu0 %v3337
  %v3339 = vpop.xlane.xlu0 %3338
  %v3340 = vadd.f32 %v55, %v3339
  %v3341 = vsel %vm183, %v3340, -inf
  %3342 = vmax.xlane.f32.xlu0 %v3341
  %v3343 = vpop.xlane.xlu0 %3342
  %v3344 = vsub.f32 %v3340, %v3343
  %v3345 = vmul.f32 %v3344, 1.442695
  %v3346 = vpow.pop %v3345
  %v3347 = vsel %vm183, %v3346, 0.0
  %3348 = vadd.xlane.f32.xlu0 %v3347
  %v3349 = vpop.xlane.xlu0 %3348
  %v3350 = vrcp.pop %v3349
  %v3351 = vmul.f32 %v3346, %v3350
  %v3352 = vlaneseq
  %v3353 = vshrl.u32 %v3352, 7
  %v3354 = vsub.s32 0, %v3353
  %v3355 = vrot.slane %v3351, %v3354
  %3357 = vbcast.lane.b32.xlu0 %v3355, 256
  %v3358 = vpop.permute.xlu0 %3357
  %s3360 = sor.u32 256, 8
  %3361 = vbcast.lane.b32.xlu0 %v3355, %s3360
  %v3362 = vpop.permute.xlu0 %3361
  %v3363 = vlaneseq
  %v3364 = vshrl.u32 %v3363, 7
  %v3365 = vsub.s32 1, %v3364
  %v3366 = vrot.slane %v3351, %v3365
  %3368 = vbcast.lane.b32.xlu0 %v3366, 256
  %v3369 = vpop.permute.xlu0 %3368
  %s3371 = sor.u32 256, 8
  %3372 = vbcast.lane.b32.xlu0 %v3366, %s3371
  %v3373 = vpop.permute.xlu0 %3372
  %v3374 = vlaneseq
  %v3375 = vshrl.u32 %v3374, 7
  %v3376 = vsub.s32 2, %v3375
  %v3377 = vrot.slane %v3351, %v3376
  %3379 = vbcast.lane.b32.xlu0 %v3377, 256
  %v3380 = vpop.permute.xlu0 %3379
  %s3382 = sor.u32 256, 8
  %3383 = vbcast.lane.b32.xlu0 %v3377, %s3382
  %v3384 = vpop.permute.xlu0 %3383
  %v3385 = vlaneseq
  %v3386 = vshrl.u32 %v3385, 7
  %v3387 = vsub.s32 3, %v3386
  %v3388 = vrot.slane %v3351, %v3387
  %3390 = vbcast.lane.b32.xlu0 %v3388, 256
  %v3391 = vpop.permute.xlu0 %3390
  %s3393 = sor.u32 256, 8
  %3394 = vbcast.lane.b32.xlu0 %v3388, %s3393
  %v3395 = vpop.permute.xlu0 %3394
  %v3396 = vlaneseq
  %v3397 = vshrl.u32 %v3396, 7
  %v3398 = vsub.s32 4, %v3397
  %v3399 = vrot.slane %v3351, %v3398
  %3401 = vbcast.lane.b32.xlu0 %v3399, 256
  %v3402 = vpop.permute.xlu0 %3401
  %s3404 = sor.u32 256, 8
  %3405 = vbcast.lane.b32.xlu0 %v3399, %s3404
  %v3406 = vpop.permute.xlu0 %3405
  %v3407 = vlaneseq
  %v3408 = vshrl.u32 %v3407, 7
  %v3409 = vsub.s32 5, %v3408
  %v3410 = vrot.slane %v3351, %v3409
  %3412 = vbcast.lane.b32.xlu0 %v3410, 256
  %v3413 = vpop.permute.xlu0 %3412
  %s3415 = sor.u32 256, 8
  %3416 = vbcast.lane.b32.xlu0 %v3410, %s3415
  %v3417 = vpop.permute.xlu0 %3416
  %v3418 = vlaneseq
  %v3419 = vshrl.u32 %v3418, 7
  %v3420 = vsub.s32 6, %v3419
  %v3421 = vrot.slane %v3351, %v3420
  %3423 = vbcast.lane.b32.xlu0 %v3421, 256
  %v3424 = vpop.permute.xlu0 %3423
  %s3426 = sor.u32 256, 8
  %3427 = vbcast.lane.b32.xlu0 %v3421, %s3426
  %v3428 = vpop.permute.xlu0 %3427
  %v3429 = vlaneseq
  %v3430 = vshrl.u32 %v3429, 7
  %v3431 = vsub.s32 7, %v3430
  %v3432 = vrot.slane %v3351, %v3431
  %3434 = vbcast.lane.b32.xlu0 %v3432, 256
  %v3435 = vpop.permute.xlu0 %3434
  %s3437 = sor.u32 256, 8
  %3438 = vbcast.lane.b32.xlu0 %v3432, %s3437
  %v3439 = vpop.permute.xlu0 %3438
  %v3440 = vmul.f32 %v3358, %v283
  %v3441 = vmul.f32 %v3362, %v284
  %v3442 = vmul.f32 %v3369, %v285
  %v3443 = vmul.f32 %v3373, %v286
  %v3444 = vmul.f32 %v3380, %v287
  %v3445 = vmul.f32 %v3384, %v288
  %v3446 = vmul.f32 %v3391, %v289
  %v3447 = vmul.f32 %v3395, %v290
  %v3448 = vmul.f32 %v3402, %v291
  %v3449 = vmul.f32 %v3406, %v292
  %v3450 = vmul.f32 %v3413, %v293
  %v3451 = vmul.f32 %v3417, %v294
  %v3452 = vmul.f32 %v3424, %v295
  %v3453 = vmul.f32 %v3428, %v296
  %v3454 = vmul.f32 %v3435, %v297
  %v3455 = vmul.f32 %v3439, %v298
  %v3456 = vadd.f32 %v3440, %v3441
  %v3457 = vrot.slane %v3456, 4
  %v3458 = vadd.f32 %v3456, %v3457
  %v3459 = vrot.slane %v3458, 2
  %v3460 = vadd.f32 %v3458, %v3459
  %v3461 = vrot.slane %v3460, 1
  %v3462 = vadd.f32 %v3460, %v3461
  %v3463 = vadd.f32 %v3442, %v3443
  %v3464 = vrot.slane %v3463, 4
  %v3465 = vadd.f32 %v3463, %v3464
  %v3466 = vrot.slane %v3465, 2
  %v3467 = vadd.f32 %v3465, %v3466
  %v3468 = vrot.slane %v3467, 1
  %v3469 = vadd.f32 %v3467, %v3468
  %v3470 = vadd.f32 %v3444, %v3445
  %v3471 = vrot.slane %v3470, 4
  %v3472 = vadd.f32 %v3470, %v3471
  %v3473 = vrot.slane %v3472, 2
  %v3474 = vadd.f32 %v3472, %v3473
  %v3475 = vrot.slane %v3474, 1
  %v3476 = vadd.f32 %v3474, %v3475
  %v3477 = vadd.f32 %v3446, %v3447
  %v3478 = vrot.slane %v3477, 4
  %v3479 = vadd.f32 %v3477, %v3478
  %v3480 = vrot.slane %v3479, 2
  %v3481 = vadd.f32 %v3479, %v3480
  %v3482 = vrot.slane %v3481, 1
  %v3483 = vadd.f32 %v3481, %v3482
  %v3484 = vadd.f32 %v3448, %v3449
  %v3485 = vrot.slane %v3484, 4
  %v3486 = vadd.f32 %v3484, %v3485
  %v3487 = vrot.slane %v3486, 2
  %v3488 = vadd.f32 %v3486, %v3487
  %v3489 = vrot.slane %v3488, 1
  %v3490 = vadd.f32 %v3488, %v3489
  %v3491 = vadd.f32 %v3450, %v3451
  %v3492 = vrot.slane %v3491, 4
  %v3493 = vadd.f32 %v3491, %v3492
  %v3494 = vrot.slane %v3493, 2
  %v3495 = vadd.f32 %v3493, %v3494
  %v3496 = vrot.slane %v3495, 1
  %v3497 = vadd.f32 %v3495, %v3496
  %v3498 = vadd.f32 %v3452, %v3453
  %v3499 = vrot.slane %v3498, 4
  %v3500 = vadd.f32 %v3498, %v3499
  %v3501 = vrot.slane %v3500, 2
  %v3502 = vadd.f32 %v3500, %v3501
  %v3503 = vrot.slane %v3502, 1
  %v3504 = vadd.f32 %v3502, %v3503
  %v3505 = vadd.f32 %v3454, %v3455
  %v3506 = vrot.slane %v3505, 4
  %v3507 = vadd.f32 %v3505, %v3506
  %v3508 = vrot.slane %v3507, 2
  %v3509 = vadd.f32 %v3507, %v3508
  %v3510 = vrot.slane %v3509, 1
  %v3511 = vadd.f32 %v3509, %v3510
  %s3512 = scalar_lea.vmem %s0, 24
  %v3513 = vld [vmem:[%s3512] sm:$0xf]
  %v3514 = vpack.c.bf16 %v3462, %v3462
  %v3515 = vpack.c.bf16 %v3469, %v3469
  %v3516 = vpack.c.bf16 %v3476, %v3476
  %v3517 = vpack.c.bf16 %v3483, %v3483
  %v3518 = vpack.c.bf16 %v3490, %v3490
  %v3519 = vpack.c.bf16 %v3497, %v3497
  %v3520 = vpack.c.bf16 %v3504, %v3504
  %v3521 = vpack.c.bf16 %v3511, %v3511
  %v3530 = vunpack.c.l.b16 %v3514
  %v3531 = vunpack.c.l.b16 %v3515
  %v3532 = vunpack.c.l.b16 %v3516
  %v3533 = vunpack.c.l.b16 %v3517
  %v3534 = vunpack.c.l.b16 %v3518
  %v3535 = vunpack.c.l.b16 %v3519
  %v3536 = vunpack.c.l.b16 %v3520
  %v3537 = vunpack.c.l.b16 %v3521
  %v3538 = vsel %vm396, %v3531, %v3530
  %v3539 = vsel %vm398, %v3532, %v3538
  %v3540 = vsel %vm400, %v3533, %v3539
  %v3541 = vsel %vm402, %v3534, %v3540
  %v3542 = vsel %vm404, %v3535, %v3541
  %v3543 = vsel %vm406, %v3536, %v3542
  %v3544 = vsel %vm408, %v3537, %v3543
  %v3545 = vpack.c.b16 %v3544, %v3544
  %3547 = vmatprep.subr.bf16.mxu0 %v610
  %3548 = vmatpush1.bf16.msra.mxu0 %v609
  %3549 = vmatprep.subr.bf16.mxu0 %v607
  %3550 = vmatpush1.bf16.msra.mxu0 %v606
  %3551 = vmatprep.subr.bf16.mxu0 %v604
  %3552 = vmatpush1.bf16.msra.mxu0 %v603
  %3553 = vmatprep.subr.bf16.mxu0 %v601
  %3554 = vmatpush1.bf16.msra.mxu0 %v600
  %3555 = vmatprep.subr.bf16.mxu0 %v598
  %3556 = vmatpush1.bf16.msra.mxu0 %v597
  %3557 = vmatprep.subr.bf16.mxu0 %v595
  %3558 = vmatpush1.bf16.msra.mxu0 %v594
  %3559 = vmatprep.subr.bf16.mxu0 %v592
  %3560 = vmatpush1.bf16.msra.mxu0 %v591
  %3561 = vmatprep.subr.bf16.mxu0 %v589
  %3562 = vmatpush1.bf16.msra.mxu0 %v588
  %3563 = vmatprep.subr.bf16.mxu0 %v634
  %3564 = vmatpush2.bf16.msra.mxu0 %v633
  %3565 = vmatprep.subr.bf16.mxu0 %v631
  %3566 = vmatpush2.bf16.msra.mxu0 %v630
  %3567 = vmatprep.subr.bf16.mxu0 %v628
  %3568 = vmatpush2.bf16.msra.mxu0 %v627
  %3569 = vmatprep.subr.bf16.mxu0 %v625
  %3570 = vmatpush2.bf16.msra.mxu0 %v624
  %3571 = vmatprep.subr.bf16.mxu0 %v622
  %3572 = vmatpush2.bf16.msra.mxu0 %v621
  %3573 = vmatprep.subr.bf16.mxu0 %v619
  %3574 = vmatpush2.bf16.msra.mxu0 %v618
  %3575 = vmatprep.subr.bf16.mxu0 %v616
  %3576 = vmatpush2.bf16.msra.mxu0 %v615
  %3577 = vmatprep.subr.bf16.mxu0 %v613
  %3578 = vmatpush2.bf16.msra.mxu0 %v612
  %3579 = vmatprep.mubr.bf16.mxu0 %v3545
  %3580 = vmatmul.mubr.bf16.gmra.mxu0 %v3513
  %v3581 = vpop.f32.mrf.mxu0
  %v3582 = vadd.f32 %v416, %v3581
  %v3583 = vpop.f32.mrf.mxu0
  %v3584 = vadd.f32 %v420, %v3583
  %v3585 = vpop.f32.mrf.mxu0
  %v3586 = vpop.f32.mrf.mxu0
  %3587 = vdwg.mxu0
  %3588 = vmatprep.subr.bf16.mxu0 0
  %3589 = vmatpush1.bf16.msra.mxu0 %v611
  %3590 = vmatprep.subr.bf16.mxu0 0
  %3591 = vmatpush1.bf16.msra.mxu0 %v608
  %3592 = vmatprep.subr.bf16.mxu0 0
  %3593 = vmatpush1.bf16.msra.mxu0 %v605
  %3594 = vmatprep.subr.bf16.mxu0 0
  %3595 = vmatpush1.bf16.msra.mxu0 %v602
  %3596 = vmatprep.subr.bf16.mxu0 0
  %3597 = vmatpush1.bf16.msra.mxu0 %v599
  %3598 = vmatprep.subr.bf16.mxu0 0
  %3599 = vmatpush1.bf16.msra.mxu0 %v596
  %3600 = vmatprep.subr.bf16.mxu0 0
  %3601 = vmatpush1.bf16.msra.mxu0 %v593
  %3602 = vmatprep.subr.bf16.mxu0 0
  %3603 = vmatpush1.bf16.msra.mxu0 %v590
  %3604 = vmatprep.subr.bf16.mxu0 0
  %3605 = vmatpush2.bf16.msra.mxu0 %v635
  %3606 = vmatprep.subr.bf16.mxu0 0
  %3607 = vmatpush2.bf16.msra.mxu0 %v632
  %3608 = vmatprep.subr.bf16.mxu0 0
  %3609 = vmatpush2.bf16.msra.mxu0 %v629
  %3610 = vmatprep.subr.bf16.mxu0 0
  %3611 = vmatpush2.bf16.msra.mxu0 %v626
  %3612 = vmatprep.subr.bf16.mxu0 0
  %3613 = vmatpush2.bf16.msra.mxu0 %v623
  %3614 = vmatprep.subr.bf16.mxu0 0
  %3615 = vmatpush2.bf16.msra.mxu0 %v620
  %3616 = vmatprep.subr.bf16.mxu0 0
  %3617 = vmatpush2.bf16.msra.mxu0 %v617
  %3618 = vmatprep.subr.bf16.mxu0 0
  %3619 = vmatpush2.bf16.msra.mxu0 %v614
  %3620 = vmatprep.mubr.bf16.mxu0 %v3545
  %3621 = vmatmul.mubr.bf16.gmra.mxu0 %v3513
  %v3622 = vpop.f32.mrf.mxu0
  %v3623 = vadd.f32 %v424, %v3622
  %v3624 = vpop.f32.mrf.mxu0
  %v3625 = vpop.f32.mrf.mxu0
  %v3626 = vpop.f32.mrf.mxu0
  %3627 = vdwg.mxu0
  %3628 = vmatprep.subr.bf16.mxu0 %v884
  %3629 = vmatpush1.bf16.msra.mxu0 %v883
  %3630 = vmatprep.subr.bf16.mxu0 %v881
  %3631 = vmatpush1.bf16.msra.mxu0 %v880
  %3632 = vmatprep.subr.bf16.mxu0 %v878
  %3633 = vmatpush1.bf16.msra.mxu0 %v877
  %3634 = vmatprep.subr.bf16.mxu0 %v875
  %3635 = vmatpush1.bf16.msra.mxu0 %v874
  %3636 = vmatprep.subr.bf16.mxu0 %v872
  %3637 = vmatpush1.bf16.msra.mxu0 %v871
  %3638 = vmatprep.subr.bf16.mxu0 %v869
  %3639 = vmatpush1.bf16.msra.mxu0 %v868
  %3640 = vmatprep.subr.bf16.mxu0 %v866
  %3641 = vmatpush1.bf16.msra.mxu0 %v865
  %3642 = vmatprep.subr.bf16.mxu0 %v863
  %3643 = vmatpush1.bf16.msra.mxu0 %v862
  %3644 = vmatprep.subr.bf16.mxu0 0
  %3645 = vmatpush2.bf16.msra.mxu0 0
  %3646 = vmatprep.subr.bf16.mxu0 0
  %3647 = vmatpush2.bf16.msra.mxu0 0
  %3648 = vmatprep.subr.bf16.mxu0 0
  %3649 = vmatpush2.bf16.msra.mxu0 0
  %3650 = vmatprep.subr.bf16.mxu0 0
  %3651 = vmatpush2.bf16.msra.mxu0 0
  %3652 = vmatprep.subr.bf16.mxu0 0
  %3653 = vmatpush2.bf16.msra.mxu0 0
  %3654 = vmatprep.subr.bf16.mxu0 0
  %3655 = vmatpush2.bf16.msra.mxu0 0
  %3656 = vmatprep.subr.bf16.mxu0 0
  %3657 = vmatpush2.bf16.msra.mxu0 0
  %3658 = vmatprep.subr.bf16.mxu0 0
  %3659 = vmatpush2.bf16.msra.mxu0 0
  %3660 = vmatprep.mubr.bf16.mxu0 0
  %3661 = vmatmul.mubr.bf16.gmra.mxu0 %v3292
  %v3662 = vpop.f32.mrf.mxu0
  %v3663 = vadd.f32 %v770, %v3662
  %v3664 = vpop.f32.mrf.mxu0
  %v3665 = vadd.f32 %v774, %v3664
  %v3666 = vpop.f32.mrf.mxu0
  %v3667 = vpop.f32.mrf.mxu0
  %3668 = vdwg.mxu0
  %3669 = vmatprep.subr.bf16.mxu0 0
  %3670 = vmatpush1.bf16.msra.mxu0 %v885
  %3671 = vmatprep.subr.bf16.mxu0 0
  %3672 = vmatpush1.bf16.msra.mxu0 %v882
  %3673 = vmatprep.subr.bf16.mxu0 0
  %3674 = vmatpush1.bf16.msra.mxu0 %v879
  %3675 = vmatprep.subr.bf16.mxu0 0
  %3676 = vmatpush1.bf16.msra.mxu0 %v876
  %3677 = vmatprep.subr.bf16.mxu0 0
  %3678 = vmatpush1.bf16.msra.mxu0 %v873
  %3679 = vmatprep.subr.bf16.mxu0 0
  %3680 = vmatpush1.bf16.msra.mxu0 %v870
  %3681 = vmatprep.subr.bf16.mxu0 0
  %3682 = vmatpush1.bf16.msra.mxu0 %v867
  %3683 = vmatprep.subr.bf16.mxu0 0
  %3684 = vmatpush1.bf16.msra.mxu0 %v864
  %3685 = vmatprep.subr.bf16.mxu0 0
  %3686 = vmatpush2.bf16.msra.mxu0 0
  %3687 = vmatprep.subr.bf16.mxu0 0
  %3688 = vmatpush2.bf16.msra.mxu0 0
  %3689 = vmatprep.subr.bf16.mxu0 0
  %3690 = vmatpush2.bf16.msra.mxu0 0
  %3691 = vmatprep.subr.bf16.mxu0 0
  %3692 = vmatpush2.bf16.msra.mxu0 0
  %3693 = vmatprep.subr.bf16.mxu0 0
  %3694 = vmatpush2.bf16.msra.mxu0 0
  %3695 = vmatprep.subr.bf16.mxu0 0
  %3696 = vmatpush2.bf16.msra.mxu0 0
  %3697 = vmatprep.subr.bf16.mxu0 0
  %3698 = vmatpush2.bf16.msra.mxu0 0
  %3699 = vmatprep.subr.bf16.mxu0 0
  %3700 = vmatpush2.bf16.msra.mxu0 0
  %3701 = vmatprep.mubr.bf16.mxu0 0
  %3702 = vmatmul.mubr.bf16.gmra.mxu0 %v3292
  %v3703 = vpop.f32.mrf.mxu0
  %v3704 = vadd.f32 %v778, %v3703
  %v3705 = vpop.f32.mrf.mxu0
  %v3706 = vpop.f32.mrf.mxu0
  %v3707 = vpop.f32.mrf.mxu0
  %3708 = vdwg.mxu0
  %v3709 = vadd.f32 %v3582, %v3663
  %v3710 = vxor.u32 %v3709, 2147483648
  %v3711 = vmul.f32 %v3710, 1.442695
  %v3712 = vpow.pop %v3711
  %v3713 = vadd.f32 %v3712, 1.0
  %v3714 = vrcp.pop %v3713
  %v3715 = vmul.f32 1.0, %v3714
  %v3716 = vadd.f32 %v3584, %v3665
  %v3717 = vxor.u32 %v3716, 2147483648
  %v3718 = vmul.f32 %v3717, 1.442695
  %v3719 = vpow.pop %v3718
  %v3720 = vadd.f32 %v3719, 1.0
  %v3721 = vrcp.pop %v3720
  %v3722 = vmul.f32 1.0, %v3721
  %v3723 = vmul.f32 %v3715, %v3704
  %v3724 = vadd.f32 %v3623, %v3723
  %v3725 = vtanh.pop %v3724
  %v3726 = vsub.f32 1.0, %v3722
  %v3727 = vmul.f32 %v3726, %v3725
  %v3728 = vmul.f32 %v3722, %v3291
  %v3729 = vadd.f32 %v3727, %v3728
  %v3730 = vpack.c.bf16 %v3729, %v3729
  %3731 = vmatprep.subr.bf16.mxu0 %v1087
  %3732 = vmatpush1.bf16.msra.mxu0 %v1086
  %3733 = vmatprep.subr.bf16.mxu0 %v1085
  %3734 = vmatpush1.bf16.msra.mxu0 %v1084
  %3735 = vmatprep.subr.bf16.mxu0 %v1083
  %3736 = vmatpush1.bf16.msra.mxu0 %v1082
  %3737 = vmatprep.subr.bf16.mxu0 %v1081
  %3738 = vmatpush1.bf16.msra.mxu0 %v1080
  %3739 = vmatprep.subr.bf16.mxu0 %v1079
  %3740 = vmatpush1.bf16.msra.mxu0 %v1078
  %3741 = vmatprep.subr.bf16.mxu0 %v1077
  %3742 = vmatpush1.bf16.msra.mxu0 %v1076
  %3743 = vmatprep.subr.bf16.mxu0 %v1075
  %3744 = vmatpush1.bf16.msra.mxu0 %v1074
  %3745 = vmatprep.subr.bf16.mxu0 %v1073
  %3746 = vmatpush1.bf16.msra.mxu0 %v1072
  %3747 = vmatprep.subr.bf16.mxu0 0
  %3748 = vmatpush2.bf16.msra.mxu0 0
  %3749 = vmatprep.subr.bf16.mxu0 0
  %3750 = vmatpush2.bf16.msra.mxu0 0
  %3751 = vmatprep.subr.bf16.mxu0 0
  %3752 = vmatpush2.bf16.msra.mxu0 0
  %3753 = vmatprep.subr.bf16.mxu0 0
  %3754 = vmatpush2.bf16.msra.mxu0 0
  %3755 = vmatprep.subr.bf16.mxu0 0
  %3756 = vmatpush2.bf16.msra.mxu0 0
  %3757 = vmatprep.subr.bf16.mxu0 0
  %3758 = vmatpush2.bf16.msra.mxu0 0
  %3759 = vmatprep.subr.bf16.mxu0 0
  %3760 = vmatpush2.bf16.msra.mxu0 0
  %3761 = vmatprep.subr.bf16.mxu0 0
  %3762 = vmatpush2.bf16.msra.mxu0 0
  %3763 = vmatprep.mubr.bf16.mxu0 0
  %3764 = vmatmul.mubr.bf16.gmra.mxu0 %v3730
  %v3765 = vpop.f32.mrf.mxu0
  %v3766 = vadd.f32 %v1017, %v3765
  %v3767 = vpop.f32.mrf.mxu0
  %v3768 = vadd.f32 %v1021, %v3767
  %v3769 = vpop.f32.mrf.mxu0
  %v3770 = vpop.f32.mrf.mxu0
  %3771 = vdwg.mxu0
  %s3772 = scalar_lea.vmem %s11, 96
  %3773 = vst [vmem:[%s3772] sm:$0xff] %v3766
  %3774 = vst [vmem:[%s3772 + $0x8] sm:$0xff] %v3768
  // Predicated region
  $region46: #{decoder_forward.1} parent=0 // pred_check
    _
  $region47: #{decoder_forward.1} parent=0 // pred_check_branch
    %3776 = sbr.rel (0) target = $region49
  $region48: #{decoder_forward.1} parent=0 // pred_region
    _
  $region49: #{decoder_forward.1} parent=0 // pred_fallthru
    _
  // Predicated region
  $region50: #{decoder_forward.1} parent=0 // pred_check
    _
  $region51: #{decoder_forward.1} parent=0 // pred_check_branch
    %3778 = sbr.rel (0) target = $region53
  $region52: #{decoder_forward.1} parent=0 // pred_region
    _
  $region53: #{decoder_forward.1} parent=0 // pred_fallthru
    _

</llo_original>
